<compile_context>
chip_gen: v5e
topology: v5e:2x2
jax: 0.10.0
libtpu: 0.0.40
codegen_flags: <defaults>
</compile_context>

<pallas_src>
import functools

import jax
import jax.numpy as jnp
from jax.experimental import pallas as pl
from jax.experimental.pallas import tpu as pltpu

EPS = 1e-5
NEG_SLOPE = 0.01
LANE = 128
PADL = 8                      # aligned left zero-pad of the conv2 scratch
VMEM_LIMIT = 32 * 1024 * 1024  # safe scoped-VMEM limit on v5e / v6e / v7x


# ---------------------------------------------------------------- small helpers
def _round_up(x, m):
    return ((x + m - 1) // m) * m


def _pick_row_tile(ho, wo, cpad, budget=128 << 10):
    """Output-row tile: largest divisor of ho with acc = TH*Wo*Cpad*4 <= budget."""
    cap = max(1, budget // (wo * cpad * 4))
    for t in range(min(ho, cap), 0, -1):
        if ho % t == 0:
            return t
    return 1


def _pick_rows(nrows, wo, cpad, budget=2 << 20):
    """Row tile for the elementwise tail kernel."""
    cap = max(1, budget // (wo * cpad * 4))
    for t in range(min(nrows, cap), 0, -1):
        if nrows % t == 0:
            return t
    return 1


def _phase_split(xpad, s):
    """(N, Hp, Wp, C) padded NHWC -> (N*s*s, Hq, Wq, C) even/odd phase slabs.

    xph[n*s*s + py*s + px, r, c, :] == xpad[n, s*r + py, s*c + px, :]
    so a stride-s 3x3 conv becomes 9 contiguous-slice matmuls in the kernel.
    """
    n, hp, wp, c = xpad.shape
    hq = -(-hp // s)
    wq = -(-wp // s)
    xpad = jnp.pad(xpad, ((0, 0), (0, hq * s - hp), (0, wq * s - wp), (0, 0)))
    x = xpad.reshape(n, hq, s, wq, s, c).transpose(0, 2, 4, 1, 3, 5)
    return x.reshape(n * s * s, hq, wq, c)


# ---------------------------------------------------------------- Pallas kernels
def _conv3x3_kernel(*refs, TH, Wo, stride, has_sc):
    """One (batch i, row-tile t) step of a 3x3 'same' conv (+ fused 1x1 shortcut).

    refs (has_sc=True):  x, w, wsc, y, ysc, st, stsc
    refs (has_sc=False): x, w, y, st
      x   : (s*s, Hq, Wq, Cin)  phase-split padded image (bf16)
      w   : (9, Cin, Cpad)      tap-major weights (bf16, Cout zero-padded)
      wsc : (Cin, Cpad)         1x1 shortcut weights (bf16)
      y   : (TH, Wo, Cpad)      bf16 conv output rows for this tile
      st  : (1, 2, Cpad)        per-batch [sum, sum_sq] (f32, accumulated)
    """
    if has_sc:
        x_ref, w_ref, wsc_ref, y_ref, ysc_ref, st_ref, stsc_ref = refs
    else:
        x_ref, w_ref, y_ref, st_ref = refs

    t = pl.program_id(1)
    s = stride
    ho0 = t * TH
    cin = x_ref.shape[-1]
    cpad = y_ref.shape[-1]

    @pl.when(t == 0)
    def _init():
        st_ref[...] = jnp.zeros_like(st_ref)
        if has_sc:
            stsc_ref[...] = jnp.zeros_like(stsc_ref)

    # statically unrolled 9-tap loop; each tap is one MXU matmul, f32 accumulate
    acc = jnp.zeros((TH * Wo, cpad), jnp.float32)
    for dy in range(3):
        qy, py = dy // s, dy % s
        for dx in range(3):
            qx, px = dx // s, dx % s
            lhs = x_ref[py * s + px,
                        pl.ds(ho0 + qy, TH),
                        pl.ds(qx, Wo), :].reshape(TH * Wo, cin)
            acc = acc + jnp.dot(lhs, w_ref[dy * 3 + dx],
                                preferred_element_type=jnp.float32)

    y_ref[...] = acc.reshape(TH, Wo, cpad).astype(y_ref.dtype)
    st_ref[0, 0:1, :] += jnp.sum(acc, axis=0, keepdims=True)
    st_ref[0, 1:2, :] += jnp.sum(acc * acc, axis=0, keepdims=True)

    if has_sc:
        # 1x1 shortcut (stride s) reuses the phase slab: x[s*r, s*c] = xpad[s*r+1, s*c+1]
        ph = (1 % s) * s + (1 % s)
        q0 = 1 // s
        lhs_sc = x_ref[ph, pl.ds(ho0 + q0, TH),
                       pl.ds(q0, Wo), :].reshape(TH * Wo, cin)
        acc_sc = jnp.dot(lhs_sc, wsc_ref[...], preferred_element_type=jnp.float32)
        ysc_ref[...] = acc_sc.reshape(TH, Wo, cpad).astype(ysc_ref.dtype)
        stsc_ref[0, 0:1, :] += jnp.sum(acc_sc, axis=0, keepdims=True)
        stsc_ref[0, 1:2, :] += jnp.sum(acc_sc * acc_sc, axis=0, keepdims=True)


def _bnact_conv3x3_kernel(y1_ref, sc_ref, sh_ref, w_ref, y_ref, st_ref, apad_ref,
                          *, TH, Ho, Wo):
    """conv2 with BN1 + LeakyReLU fused as a per-batch prologue.

    y1_ref  : (Ho, Wo, Cpad) bf16   un-normalized conv1 output of this batch
    sc/sh   : (1, 1, Cpad)   f32    BN1 scale / shift
    w_ref   : (9, Cpad, Cpad) bf16  tap-major conv2 weights
    y_ref   : (TH, Wo, Cpad) bf16   conv2 output rows for this tile
    st_ref  : (1, 2, Cpad)   f32    per-batch [sum, sum_sq] (accumulated)
    apad_ref: (Ho+2, Wo+PADL+1, Cpad) f32 scratch — BN1+act slab, zero padded
    """
    t = pl.program_id(1)
    cpad = y_ref.shape[-1]

    @pl.when(t == 0)
    def _init():
        apad_ref[...] = jnp.zeros_like(apad_ref)
        a = y1_ref[...].astype(jnp.float32) * sc_ref[...] + sh_ref[...]
        a = jnp.where(a >= 0, a, NEG_SLOPE * a)
        # interior store is sublane-aligned (column offset PADL = 8)
        apad_ref[1:1 + Ho, PADL:PADL + Wo, :] = a
        st_ref[...] = jnp.zeros_like(st_ref)

    ho0 = t * TH
    acc = jnp.zeros((TH * Wo, cpad), jnp.float32)
    for dy in range(3):
        for dx in range(3):
            lhs = apad_ref[pl.ds(ho0 + dy, TH),
                           pl.ds(PADL - 1 + dx, Wo), :].reshape(TH * Wo, cpad)
            acc = acc + jnp.dot(lhs.astype(jnp.bfloat16), w_ref[dy * 3 + dx],
                                preferred_element_type=jnp.float32)

    y_ref[...] = acc.reshape(TH, Wo, cpad).astype(y_ref.dtype)
    st_ref[0, 0:1, :] += jnp.sum(acc, axis=0, keepdims=True)
    st_ref[0, 1:2, :] += jnp.sum(acc * acc, axis=0, keepdims=True)


def _bn_res_act_kernel(y_ref, sc_ref, sh_ref, r_ref, rsc_ref, rsh_ref, o_ref):
    """BN2 apply + (BN'd shortcut or identity) residual add + LeakyReLU."""
    out = y_ref[...].astype(jnp.float32) * sc_ref[...] + sh_ref[...]
    out = out + r_ref[...].astype(jnp.float32) * rsc_ref[...] + rsh_ref[...]
    out = jnp.where(out >= 0, out, NEG_SLOPE * out)
    o_ref[...] = out.astype(o_ref.dtype)


# ---------------------------------------------------------------- kernel wrappers
def conv3x3_block(x_nhwc, w9, stride, wsc=None):
    """3x3 conv (padding=1, given stride) + optional fused 1x1 shortcut.

    Returns ((y, [ysc,] st, [stsc]), ho, wo); y/ysc are (N*Ho, Wo, Cpad) bf16,
    st/stsc are (N, 2, Cpad) f32 per-batch [sum, sum_sq] BN partials.
    """
    n, h, w, cin = x_nhwc.shape
    cpad = w9.shape[-1]
    s = stride
    ho = (h - 1) // s + 1
    wo = (w - 1) // s + 1
    xpad = jnp.pad(x_nhwc, ((0, 0), (1, 1), (1, 1), (0, 0)))
    xph = _phase_split(xpad, s)                       # (N*s*s, Hq, Wq, Cin)
    _, hq, wq, _ = xph.shape
    th = _pick_row_tile(ho, wo, cpad)
    hot = ho // th
    has_sc = wsc is not None

    kern = functools.partial(_conv3x3_kernel, TH=th, Wo=wo, stride=s,
                             has_sc=has_sc)

    y_shape = jax.ShapeDtypeStruct((n * ho, wo, cpad), jnp.bfloat16)
    st_shape = jax.ShapeDtypeStruct((n, 2, cpad), jnp.float32)
    y_spec = pl.BlockSpec((th, wo, cpad), lambda i, t: (i * hot + t, 0, 0))
    st_spec = pl.BlockSpec((1, 2, cpad), lambda i, t: (i, 0, 0))

    in_specs = [pl.BlockSpec((s * s, hq, wq, cin), lambda i, t: (i, 0, 0, 0)),
                pl.BlockSpec((9, cin, cpad), lambda i, t: (0, 0, 0))]
    args = [xph, w9]
    if has_sc:
        in_specs.append(pl.BlockSpec((cin, cpad), lambda i, t: (0, 0)))
        args.append(wsc)
        out_shape = (y_shape, y_shape, st_shape, st_shape)
        out_specs = (y_spec, y_spec, st_spec, st_spec)
    else:
        out_shape = (y_shape, st_shape)
        out_specs = (y_spec, st_spec)

    outs = pl.pallas_call(
        kern,
        out_shape=out_shape,
        grid=(n, hot),
        in_specs=in_specs,
        out_specs=out_specs,
        compiler_params=pltpu.CompilerParams(
            dimension_semantics=("parallel", "arbitrary"),
            vmem_limit_bytes=VMEM_LIMIT),
    )(*args)
    return outs, ho, wo


def bnact_conv3x3(y1, sc1, sh1, w9, n, ho, wo):
    """BN1 + LeakyReLU fused into a stride-1 3x3 conv over per-batch slabs."""
    cpad = y1.shape[-1]
    th = _pick_row_tile(ho, wo, cpad)
    hot = ho // th
    kern = functools.partial(_bnact_conv3x3_kernel, TH=th, Ho=ho, Wo=wo)
    y2, st = pl.pallas_call(
        kern,
        out_shape=(jax.ShapeDtypeStruct((n * ho, wo, cpad), jnp.bfloat16),
                   jax.ShapeDtypeStruct((n, 2, cpad), jnp.float32)),
        grid=(n, hot),
        in_specs=[pl.BlockSpec((ho, wo, cpad), lambda i, t: (i, 0, 0)),
                  pl.BlockSpec((1, 1, cpad), lambda i, t: (0, 0, 0)),
                  pl.BlockSpec((1, 1, cpad), lambda i, t: (0, 0, 0)),
                  pl.BlockSpec((9, cpad, cpad), lambda i, t: (0, 0, 0))],
        out_specs=(pl.BlockSpec((th, wo, cpad), lambda i, t: (i * hot + t, 0, 0)),
                   pl.BlockSpec((1, 2, cpad), lambda i, t: (i, 0, 0))),
        scratch_shapes=[pltpu.VMEM((ho + 2, wo + PADL + 1, cpad), jnp.float32)],
        compiler_params=pltpu.CompilerParams(
            dimension_semantics=("parallel", "arbitrary"),
            vmem_limit_bytes=VMEM_LIMIT),
    )(y1, sc1, sh1, w9)
    return y2, st


def bn_residual_act(y2, sc, sh, r, rsc, rsh, out_dtype=jnp.bfloat16):
    """Tiled BN2 apply + residual add (with its own BN scale/shift) + LeakyReLU."""
    nr, wo, cpad = y2.shape
    tr = _pick_rows(nr, wo, cpad)
    return pl.pallas_call(
        _bn_res_act_kernel,
        out_shape=jax.ShapeDtypeStruct((nr, wo, cpad), out_dtype),
        grid=(nr // tr,),
        in_specs=[pl.BlockSpec((tr, wo, cpad), lambda i: (i, 0, 0)),
                  pl.BlockSpec((1, 1, cpad), lambda i: (0, 0, 0)),
                  pl.BlockSpec((1, 1, cpad), lambda i: (0, 0, 0)),
                  pl.BlockSpec((tr, wo, cpad), lambda i: (i, 0, 0)),
                  pl.BlockSpec((1, 1, cpad), lambda i: (0, 0, 0)),
                  pl.BlockSpec((1, 1, cpad), lambda i: (0, 0, 0))],
        out_specs=pl.BlockSpec((tr, wo, cpad), lambda i: (i, 0, 0)),
        compiler_params=pltpu.CompilerParams(
            dimension_semantics=("parallel",),
            vmem_limit_bytes=VMEM_LIMIT),
    )(y2, sc, sh, r, rsc, rsh)


# ---------------------------------------------------------------- JAX glue
def _prep_conv_w(w, cin_slab, cpad):
    """PyTorch (Cout, Cin, kh, kw) -> tap-major (kh*kw, cin_slab, cpad) bf16."""
    cout, cin, kh, kw = w.shape
    wt = w.transpose(2, 3, 1, 0).reshape(kh * kw, cin, cout)
    wt = jnp.pad(wt, ((0, 0), (0, cin_slab - cin), (0, cpad - cout)))
    return wt.astype(jnp.bfloat16)


def _prep_bn(gamma, beta, cpad):
    g = jnp.pad(gamma.astype(jnp.float32), (0, cpad - gamma.shape[0]),
                constant_values=1.0)
    b = jnp.pad(beta.astype(jnp.float32), (0, cpad - beta.shape[0]))
    return g, b


def bn_scale_shift(stats, gamma, beta, count):
    """Reduce per-batch [sum, sum_sq] partials -> per-channel affine (f32)."""
    s = stats.sum(axis=0)                                      # (2, Cpad)
    mean = s[0] / count
    var = jnp.maximum(s[1] / count - mean * mean, 0.0)         # biased variance
    scale = gamma * jax.lax.rsqrt(var + EPS)
    shift = beta - mean * scale
    return scale.reshape(1, 1, -1), shift.reshape(1, 1, -1)


def resnet_basic_block(x_nhwc, params, downsampling, cpad):
    """ResNetBasicBlock.forward on a channels-last (bf16, Cpad-padded) slab."""
    n, h, w, cs = x_nhwc.shape
    w1, g1, b1 = params["conv1"]
    w2, g2, b2 = params["conv2"]
    has_sc = params["shortcut"] is not None
    if not has_sc:
        assert downsampling == 1, "identity residual requires stride 1"

    # conv1 (stride=downsampling) + fused 1x1 shortcut + BN partial stats
    w1p = _prep_conv_w(w1, cs, cpad)
    if has_sc:
        wscp = _prep_conv_w(params["shortcut"][0], cs, cpad)[0]
        (y1, ysc, st1, stsc), ho, wo = conv3x3_block(x_nhwc, w1p, downsampling,
                                                     wsc=wscp)
    else:
        (y1, st1), ho, wo = conv3x3_block(x_nhwc, w1p, downsampling)
    m = n * ho * wo
    sc1, sh1 = bn_scale_shift(st1, *_prep_bn(g1, b1, cpad), m)

    # BN1 + LeakyReLU fused into conv2 (stride 1) + BN2 partial stats
    w2p = _prep_conv_w(w2, cpad, cpad)
    y2, st2 = bnact_conv3x3(y1, sc1, sh1, w2p, n, ho, wo)
    sc2, sh2 = bn_scale_shift(st2, *_prep_bn(g2, b2, cpad), m)

    # residual branch affine (its BN is applied inside the tail kernel)
    if has_sc:
        _, gsc, bsc = params["shortcut"]
        rsc, rsh = bn_scale_shift(stsc, *_prep_bn(gsc, bsc, cpad), m)
        r = ysc
    else:
        r = x_nhwc.reshape(n * h, w, cs)
        if cs < cpad:
            r = jnp.pad(r, ((0, 0), (0, 0), (0, cpad - cs)))
        rsc = jnp.ones((1, 1, cpad), jnp.float32)
        rsh = jnp.zeros((1, 1, cpad), jnp.float32)

    out = bn_residual_act(y2, sc2, sh2, r, rsc, rsh)
    return out.reshape(n, ho, wo, cpad)


def resnet_layer(x_nchw, layer_params, downsampling):
    """ResNetLayer.forward: NCHW f32 in/out; NHWC/bf16/Cpad-padded inside."""
    cout = layer_params[0]["conv1"][0].shape[0]
    cpad = _round_up(cout, LANE)
    h = x_nchw.transpose(0, 2, 3, 1).astype(jnp.bfloat16)      # channels-last
    for i, bp in enumerate(layer_params):
        ds = downsampling if i == 0 else 1
        h = resnet_basic_block(h, bp, ds, cpad)
    return h[..., :cout].astype(jnp.float32).transpose(0, 3, 1, 2)


def init_block_params(key, in_ch, out_ch, has_shortcut):
    k1, k2, k3 = jax.random.split(key, 3)
    params = {
        "conv1": (0.1 * jax.random.normal(k1, (out_ch, in_ch, 3, 3), jnp.float32),
                  jnp.ones((out_ch,), jnp.float32), jnp.zeros((out_ch,), jnp.float32)),
        "conv2": (0.1 * jax.random.normal(k2, (out_ch, out_ch, 3, 3), jnp.float32),
                  jnp.ones((out_ch,), jnp.float32), jnp.zeros((out_ch,), jnp.float32)),
        "shortcut": None,
    }
    if has_shortcut:
        params["shortcut"] = (
            0.1 * jax.random.normal(k3, (out_ch, in_ch, 1, 1), jnp.float32),
            jnp.ones((out_ch,), jnp.float32), jnp.zeros((out_ch,), jnp.float32),
        )
    return params


# ---------------------------------------------------------------- pure-JAX reference
def _ref_bn(y):  # training-mode BN, gamma=1, beta=0 (NCHW)
    mean = jnp.mean(y, axis=(0, 2, 3), keepdims=True)
    var = jnp.mean((y - mean) ** 2, axis=(0, 2, 3), keepdims=True)
    return (y - mean) * jax.lax.rsqrt(var + EPS)


def _ref_conv(x, w, stride, pad):
    return jax.lax.conv_general_dilated(
        x, w, window_strides=(stride, stride), padding=[(pad, pad), (pad, pad)],
        dimension_numbers=("NCHW", "OIHW", "NCHW"))


def _ref_lrelu(x):
    return jnp.where(x >= 0, x, NEG_SLOPE * x)


def ref_block(x, params, ds):
    if params["shortcut"] is not None:
        residual = _ref_bn(_ref_conv(x, params["shortcut"][0], ds, 0))
    else:
        residual = x
    h = _ref_lrelu(_ref_bn(_ref_conv(x, params["conv1"][0], ds, 1)))
    h = _ref_bn(_ref_conv(h, params["conv2"][0], 1, 1))
    return _ref_lrelu(h + residual)


def ref_layer(x, layer_params, downsampling):
    out = x
    for i, bp in enumerate(layer_params):
        out = ref_block(out, bp, downsampling if i == 0 else 1)
    return out


# ---------------------------------------------------------------- main
if __name__ == "__main__":
    key = jax.random.PRNGKey(0)
    kx, kp = jax.random.split(key)

    N, Cin, H, W = 2, 4, 16, 16
    Cout, n_blocks = 8, 2
    downsampling = 2 if Cin != Cout else 1

    x = jax.random.normal(kx, (N, Cin, H, W), jnp.float32)

    block_keys = jax.random.split(kp, n_blocks)
    layer_params = [
        init_block_params(block_keys[0], Cin, Cout, has_shortcut=(Cin != Cout))
    ] + [
        init_block_params(block_keys[i], Cout, Cout, has_shortcut=False)
        for i in range(1, n_blocks)
    ]

    layer_fn = jax.jit(resnet_layer, static_argnums=2)
    out = jax.block_until_ready(layer_fn(x, layer_params, downsampling))

    expected = jax.block_until_ready(ref_layer(x, layer_params, downsampling))
    assert out.shape == (N, Cout, H // downsampling, W // downsampling), out.shape
    # bf16 MXU inputs and bf16 storage of y1/y2/r (deliberate perf choices from
    # the review) vs an exact-f32 reference => relaxed tolerance; any semantic
    # error (stride / variance / slope / residual) would give O(1) differences.
    assert jnp.allclose(out, expected, atol=5e-2, rtol=5e-2), (
        float(jnp.max(jnp.abs(out - expected))))
    print("KERNEL_OK")
</pallas_src>

<mosaic_0001>
module attributes {stable_mosaic.version = 11 : i64} {
  func.func @_conv3x3_kernel(%arg0: i32, %arg1: i32, %arg2: memref<4x9x9x4xbf16, #tpu.memory_space<vmem>>, %arg3: memref<9x4x128xbf16, #tpu.memory_space<vmem>>, %arg4: memref<4x128xbf16, #tpu.memory_space<vmem>>, %arg5: memref<8x8x128xbf16, #tpu.memory_space<vmem>>, %arg6: memref<8x8x128xbf16, #tpu.memory_space<vmem>>, %arg7: memref<1x2x128xf32, #tpu.memory_space<vmem>>, %arg8: memref<1x2x128xf32, #tpu.memory_space<vmem>>) attributes {dimension_semantics = [#tpu.dimension_semantics<parallel>, #tpu.dimension_semantics<arbitrary>], iteration_bounds = array<i64: 2, 1>, scalar_prefetch = 0 : i64, scratch_operands = 0 : i64, tpu.core_type = #tpu.core_type<tc>, window_params = [{transform_indices = @transform_0, window_bounds = array<i64: 4, 9, 9, 4>}, {pipeline_mode = #tpu.pipeline_mode<synchronous>, transform_indices = @transform_1, window_bounds = array<i64: 9, 4, 128>}, {pipeline_mode = #tpu.pipeline_mode<synchronous>, transform_indices = @transform_2, window_bounds = array<i64: 4, 128>}, {transform_indices = @transform_3, window_bounds = array<i64: 8, 8, 128>}, {transform_indices = @transform_4, window_bounds = array<i64: 8, 8, 128>}, {transform_indices = @transform_5, window_bounds = array<i64: 1, 2, 128>}, {transform_indices = @transform_6, window_bounds = array<i64: 1, 2, 128>}]} {
    %c8_i32 = arith.constant 8 : i32
    %0 = arith.muli %arg1, %c8_i32 : i32
    %c0_i32 = arith.constant 0 : i32
    %1 = arith.cmpi eq, %arg1, %c0_i32 : i32
    %2 = arith.extui %1 : i1 to i32
    %c0_i32_0 = arith.constant 0 : i32
    %3 = arith.cmpi ne, %2, %c0_i32_0 : i32
    scf.if %3 {
      %cst_104 = arith.constant 0.000000e+00 : f32
      %133 = vector.broadcast %cst_104 : f32 to vector<1x2x128xf32>
      %c0_105 = arith.constant 0 : index
      %c0_106 = arith.constant 0 : index
      %c0_107 = arith.constant 0 : index
      %134 = vector.load %arg7[%c0_105, %c0_106, %c0_107] : memref<1x2x128xf32, #tpu.memory_space<vmem>>, vector<1x2x128xf32>
      tpu.vector_store %arg7[%c0_105, %c0_106, %c0_107], %133 {strides = array<i32>} : memref<1x2x128xf32, #tpu.memory_space<vmem>>, vector<1x2x128xf32>,
      %cst_108 = arith.constant 0.000000e+00 : f32
      %135 = vector.broadcast %cst_108 : f32 to vector<1x2x128xf32>
      %c0_109 = arith.constant 0 : index
      %c0_110 = arith.constant 0 : index
      %c0_111 = arith.constant 0 : index
      %136 = vector.load %arg8[%c0_109, %c0_110, %c0_111] : memref<1x2x128xf32, #tpu.memory_space<vmem>>, vector<1x2x128xf32>
      tpu.vector_store %arg8[%c0_109, %c0_110, %c0_111], %135 {strides = array<i32>} : memref<1x2x128xf32, #tpu.memory_space<vmem>>, vector<1x2x128xf32>,
    } else {
    }
    %cst = arith.constant 0.000000e+00 : f32
    %4 = vector.broadcast %cst : f32 to vector<64x128xf32>
    %c0_i32_1 = arith.constant 0 : i32
    %5 = arith.addi %0, %c0_i32_1 : i32
    %c0 = arith.constant 0 : index
    %6 = arith.index_cast %5 : i32 to index
    %c0_2 = arith.constant 0 : index
    %c0_3 = arith.constant 0 : index
    %7 = vector.load %arg2[%c0, %6, %c0_2, %c0_3] : memref<4x9x9x4xbf16, #tpu.memory_space<vmem>>, vector<1x8x8x4xbf16>
    %8 = vector.shape_cast %7 : vector<1x8x8x4xbf16> to vector<8x8x4xbf16>
    %9 = vector.shape_cast %8 : vector<8x8x4xbf16> to vector<64x4xbf16>
    %c0_4 = arith.constant 0 : index
    %c0_5 = arith.constant 0 : index
    %c0_6 = arith.constant 0 : index
    %10 = vector.load %arg3[%c0_4, %c0_5, %c0_6] : memref<9x4x128xbf16, #tpu.memory_space<vmem>>, vector<1x4x128xbf16>
    %11 = vector.shape_cast %10 : vector<1x4x128xbf16> to vector<4x128xbf16>
    %cst_7 = arith.constant dense<0.000000e+00> : vector<64x128xf32>
    %12 = tpu.matmul %9, %11, %cst_7 {dimension_numbers = #tpu.dot_dimension_numbers<[1], [0], [0], [1], [0, 0, 1, 1], [], []>} : vector<64x4xbf16>, vector<4x128xbf16>, vector<64x128xf32> -> vector<64x128xf32>
    %13 = arith.addf %4, %12 : vector<64x128xf32>
    %c0_i32_8 = arith.constant 0 : i32
    %14 = arith.addi %0, %c0_i32_8 : i32
    %c1 = arith.constant 1 : index
    %15 = arith.index_cast %14 : i32 to index
    %c0_9 = arith.constant 0 : index
    %c0_10 = arith.constant 0 : index
    %16 = vector.load %arg2[%c1, %15, %c0_9, %c0_10] : memref<4x9x9x4xbf16, #tpu.memory_space<vmem>>, vector<1x8x8x4xbf16>
    %17 = vector.shape_cast %16 : vector<1x8x8x4xbf16> to vector<8x8x4xbf16>
    %18 = vector.shape_cast %17 : vector<8x8x4xbf16> to vector<64x4xbf16>
    %c1_11 = arith.constant 1 : index
    %c0_12 = arith.constant 0 : index
    %c0_13 = arith.constant 0 : index
    %19 = vector.load %arg3[%c1_11, %c0_12, %c0_13] : memref<9x4x128xbf16, #tpu.memory_space<vmem>>, vector<1x4x128xbf16>
    %20 = vector.shape_cast %19 : vector<1x4x128xbf16> to vector<4x128xbf16>
    %cst_14 = arith.constant dense<0.000000e+00> : vector<64x128xf32>
    %21 = tpu.matmul %18, %20, %cst_14 {dimension_numbers = #tpu.dot_dimension_numbers<[1], [0], [0], [1], [0, 0, 1, 1], [], []>} : vector<64x4xbf16>, vector<4x128xbf16>, vector<64x128xf32> -> vector<64x128xf32>
    %22 = arith.addf %13, %21 : vector<64x128xf32>
    %c0_i32_15 = arith.constant 0 : i32
    %23 = arith.addi %0, %c0_i32_15 : i32
    %c0_16 = arith.constant 0 : index
    %24 = arith.index_cast %23 : i32 to index
    %c1_17 = arith.constant 1 : index
    %c0_18 = arith.constant 0 : index
    %25 = vector.load %arg2[%c0_16, %24, %c1_17, %c0_18] : memref<4x9x9x4xbf16, #tpu.memory_space<vmem>>, vector<1x8x8x4xbf16>
    %26 = vector.shape_cast %25 : vector<1x8x8x4xbf16> to vector<8x8x4xbf16>
    %27 = vector.shape_cast %26 : vector<8x8x4xbf16> to vector<64x4xbf16>
    %c2 = arith.constant 2 : index
    %c0_19 = arith.constant 0 : index
    %c0_20 = arith.constant 0 : index
    %28 = vector.load %arg3[%c2, %c0_19, %c0_20] : memref<9x4x128xbf16, #tpu.memory_space<vmem>>, vector<1x4x128xbf16>
    %29 = vector.shape_cast %28 : vector<1x4x128xbf16> to vector<4x128xbf16>
    %cst_21 = arith.constant dense<0.000000e+00> : vector<64x128xf32>
    %30 = tpu.matmul %27, %29, %cst_21 {dimension_numbers = #tpu.dot_dimension_numbers<[1], [0], [0], [1], [0, 0, 1, 1], [], []>} : vector<64x4xbf16>, vector<4x128xbf16>, vector<64x128xf32> -> vector<64x128xf32>
    %31 = arith.addf %22, %30 : vector<64x128xf32>
    %c0_i32_22 = arith.constant 0 : i32
    %32 = arith.addi %0, %c0_i32_22 : i32
    %c2_23 = arith.constant 2 : index
    %33 = arith.index_cast %32 : i32 to index
    %c0_24 = arith.constant 0 : index
    %c0_25 = arith.constant 0 : index
    %34 = vector.load %arg2[%c2_23, %33, %c0_24, %c0_25] : memref<4x9x9x4xbf16, #tpu.memory_space<vmem>>, vector<1x8x8x4xbf16>
    %35 = vector.shape_cast %34 : vector<1x8x8x4xbf16> to vector<8x8x4xbf16>
    %36 = vector.shape_cast %35 : vector<8x8x4xbf16> to vector<64x4xbf16>
    %c3 = arith.constant 3 : index
    %c0_26 = arith.constant 0 : index
    %c0_27 = arith.constant 0 : index
    %37 = vector.load %arg3[%c3, %c0_26, %c0_27] : memref<9x4x128xbf16, #tpu.memory_space<vmem>>, vector<1x4x128xbf16>
    %38 = vector.shape_cast %37 : vector<1x4x128xbf16> to vector<4x128xbf16>
    %cst_28 = arith.constant dense<0.000000e+00> : vector<64x128xf32>
    %39 = tpu.matmul %36, %38, %cst_28 {dimension_numbers = #tpu.dot_dimension_numbers<[1], [0], [0], [1], [0, 0, 1, 1], [], []>} : vector<64x4xbf16>, vector<4x128xbf16>, vector<64x128xf32> -> vector<64x128xf32>
    %40 = arith.addf %31, %39 : vector<64x128xf32>
    %c0_i32_29 = arith.constant 0 : i32
    %41 = arith.addi %0, %c0_i32_29 : i32
    %c3_30 = arith.constant 3 : index
    %42 = arith.index_cast %41 : i32 to index
    %c0_31 = arith.constant 0 : index
    %c0_32 = arith.constant 0 : index
    %43 = vector.load %arg2[%c3_30, %42, %c0_31, %c0_32] : memref<4x9x9x4xbf16, #tpu.memory_space<vmem>>, vector<1x8x8x4xbf16>
    %44 = vector.shape_cast %43 : vector<1x8x8x4xbf16> to vector<8x8x4xbf16>
    %45 = vector.shape_cast %44 : vector<8x8x4xbf16> to vector<64x4xbf16>
    %c4 = arith.constant 4 : index
    %c0_33 = arith.constant 0 : index
    %c0_34 = arith.constant 0 : index
    %46 = vector.load %arg3[%c4, %c0_33, %c0_34] : memref<9x4x128xbf16, #tpu.memory_space<vmem>>, vector<1x4x128xbf16>
    %47 = vector.shape_cast %46 : vector<1x4x128xbf16> to vector<4x128xbf16>
    %cst_35 = arith.constant dense<0.000000e+00> : vector<64x128xf32>
    %48 = tpu.matmul %45, %47, %cst_35 {dimension_numbers = #tpu.dot_dimension_numbers<[1], [0], [0], [1], [0, 0, 1, 1], [], []>} : vector<64x4xbf16>, vector<4x128xbf16>, vector<64x128xf32> -> vector<64x128xf32>
    %49 = arith.addf %40, %48 : vector<64x128xf32>
    %c0_i32_36 = arith.constant 0 : i32
    %50 = arith.addi %0, %c0_i32_36 : i32
    %c2_37 = arith.constant 2 : index
    %51 = arith.index_cast %50 : i32 to index
    %c1_38 = arith.constant 1 : index
    %c0_39 = arith.constant 0 : index
    %52 = vector.load %arg2[%c2_37, %51, %c1_38, %c0_39] : memref<4x9x9x4xbf16, #tpu.memory_space<vmem>>, vector<1x8x8x4xbf16>
    %53 = vector.shape_cast %52 : vector<1x8x8x4xbf16> to vector<8x8x4xbf16>
    %54 = vector.shape_cast %53 : vector<8x8x4xbf16> to vector<64x4xbf16>
    %c5 = arith.constant 5 : index
    %c0_40 = arith.constant 0 : index
    %c0_41 = arith.constant 0 : index
    %55 = vector.load %arg3[%c5, %c0_40, %c0_41] : memref<9x4x128xbf16, #tpu.memory_space<vmem>>, vector<1x4x128xbf16>
    %56 = vector.shape_cast %55 : vector<1x4x128xbf16> to vector<4x128xbf16>
    %cst_42 = arith.constant dense<0.000000e+00> : vector<64x128xf32>
    %57 = tpu.matmul %54, %56, %cst_42 {dimension_numbers = #tpu.dot_dimension_numbers<[1], [0], [0], [1], [0, 0, 1, 1], [], []>} : vector<64x4xbf16>, vector<4x128xbf16>, vector<64x128xf32> -> vector<64x128xf32>
    %58 = arith.addf %49, %57 : vector<64x128xf32>
    %c1_i32 = arith.constant 1 : i32
    %59 = arith.addi %0, %c1_i32 : i32
    %c0_43 = arith.constant 0 : index
    %60 = arith.index_cast %59 : i32 to index
    %c0_44 = arith.constant 0 : index
    %c0_45 = arith.constant 0 : index
    %61 = vector.load %arg2[%c0_43, %60, %c0_44, %c0_45] : memref<4x9x9x4xbf16, #tpu.memory_space<vmem>>, vector<1x8x8x4xbf16>
    %62 = vector.shape_cast %61 : vector<1x8x8x4xbf16> to vector<8x8x4xbf16>
    %63 = vector.shape_cast %62 : vector<8x8x4xbf16> to vector<64x4xbf16>
    %c6 = arith.constant 6 : index
    %c0_46 = arith.constant 0 : index
    %c0_47 = arith.constant 0 : index
    %64 = vector.load %arg3[%c6, %c0_46, %c0_47] : memref<9x4x128xbf16, #tpu.memory_space<vmem>>, vector<1x4x128xbf16>
    %65 = vector.shape_cast %64 : vector<1x4x128xbf16> to vector<4x128xbf16>
    %cst_48 = arith.constant dense<0.000000e+00> : vector<64x128xf32>
    %66 = tpu.matmul %63, %65, %cst_48 {dimension_numbers = #tpu.dot_dimension_numbers<[1], [0], [0], [1], [0, 0, 1, 1], [], []>} : vector<64x4xbf16>, vector<4x128xbf16>, vector<64x128xf32> -> vector<64x128xf32>
    %67 = arith.addf %58, %66 : vector<64x128xf32>
    %c1_i32_49 = arith.constant 1 : i32
    %68 = arith.addi %0, %c1_i32_49 : i32
    %c1_50 = arith.constant 1 : index
    %69 = arith.index_cast %68 : i32 to index
    %c0_51 = arith.constant 0 : index
    %c0_52 = arith.constant 0 : index
    %70 = vector.load %arg2[%c1_50, %69, %c0_51, %c0_52] : memref<4x9x9x4xbf16, #tpu.memory_space<vmem>>, vector<1x8x8x4xbf16>
    %71 = vector.shape_cast %70 : vector<1x8x8x4xbf16> to vector<8x8x4xbf16>
    %72 = vector.shape_cast %71 : vector<8x8x4xbf16> to vector<64x4xbf16>
    %c7 = arith.constant 7 : index
    %c0_53 = arith.constant 0 : index
    %c0_54 = arith.constant 0 : index
    %73 = vector.load %arg3[%c7, %c0_53, %c0_54] : memref<9x4x128xbf16, #tpu.memory_space<vmem>>, vector<1x4x128xbf16>
    %74 = vector.shape_cast %73 : vector<1x4x128xbf16> to vector<4x128xbf16>
    %cst_55 = arith.constant dense<0.000000e+00> : vector<64x128xf32>
    %75 = tpu.matmul %72, %74, %cst_55 {dimension_numbers = #tpu.dot_dimension_numbers<[1], [0], [0], [1], [0, 0, 1, 1], [], []>} : vector<64x4xbf16>, vector<4x128xbf16>, vector<64x128xf32> -> vector<64x128xf32>
    %76 = arith.addf %67, %75 : vector<64x128xf32>
    %c1_i32_56 = arith.constant 1 : i32
    %77 = arith.addi %0, %c1_i32_56 : i32
    %c0_57 = arith.constant 0 : index
    %78 = arith.index_cast %77 : i32 to index
    %c1_58 = arith.constant 1 : index
    %c0_59 = arith.constant 0 : index
    %79 = vector.load %arg2[%c0_57, %78, %c1_58, %c0_59] : memref<4x9x9x4xbf16, #tpu.memory_space<vmem>>, vector<1x8x8x4xbf16>
    %80 = vector.shape_cast %79 : vector<1x8x8x4xbf16> to vector<8x8x4xbf16>
    %81 = vector.shape_cast %80 : vector<8x8x4xbf16> to vector<64x4xbf16>
    %c8 = arith.constant 8 : index
    %c0_60 = arith.constant 0 : index
    %c0_61 = arith.constant 0 : index
    %82 = vector.load %arg3[%c8, %c0_60, %c0_61] : memref<9x4x128xbf16, #tpu.memory_space<vmem>>, vector<1x4x128xbf16>
    %83 = vector.shape_cast %82 : vector<1x4x128xbf16> to vector<4x128xbf16>
    %cst_62 = arith.constant dense<0.000000e+00> : vector<64x128xf32>
    %84 = tpu.matmul %81, %83, %cst_62 {dimension_numbers = #tpu.dot_dimension_numbers<[1], [0], [0], [1], [0, 0, 1, 1], [], []>} : vector<64x4xbf16>, vector<4x128xbf16>, vector<64x128xf32> -> vector<64x128xf32>
    %85 = arith.addf %76, %84 : vector<64x128xf32>
    %86 = vector.shape_cast %85 : vector<64x128xf32> to vector<8x8x128xf32>
    %87 = arith.truncf %86 : vector<8x8x128xf32> to vector<8x8x128xbf16>
    %c0_63 = arith.constant 0 : index
    %c0_64 = arith.constant 0 : index
    %c0_65 = arith.constant 0 : index
    %88 = vector.load %arg5[%c0_63, %c0_64, %c0_65] : memref<8x8x128xbf16, #tpu.memory_space<vmem>>, vector<8x8x128xbf16>
    tpu.vector_store %arg5[%c0_63, %c0_64, %c0_65], %87 {strides = array<i32>} : memref<8x8x128xbf16, #tpu.memory_space<vmem>>, vector<8x8x128xbf16>,
    %c0_66 = arith.constant 0 : index
    %c0_67 = arith.constant 0 : index
    %c0_68 = arith.constant 0 : index
    %89 = vector.load %arg7[%c0_66, %c0_67, %c0_68] : memref<1x2x128xf32, #tpu.memory_space<vmem>>, vector<1x1x128xf32>
    %90 = vector.shape_cast %89 : vector<1x1x128xf32> to vector<1x128xf32>
    %cst_69 = arith.constant dense<0.000000e+00> : vector<128xf32>
    %91 = vector.multi_reduction <add>, %85, %cst_69 [0] : vector<64x128xf32> to vector<128xf32>
    %92 = vector.shape_cast %91 : vector<128xf32> to vector<1x128xf32>
    %93 = arith.addf %90, %92 : vector<1x128xf32>
    %c0_70 = arith.constant 0 : index
    %c0_71 = arith.constant 0 : index
    %c0_72 = arith.constant 0 : index
    %94 = vector.load %arg7[%c0_70, %c0_71, %c0_72] : memref<1x2x128xf32, #tpu.memory_space<vmem>>, vector<1x1x128xf32>
    %95 = vector.shape_cast %94 : vector<1x1x128xf32> to vector<1x128xf32>
    %96 = vector.shape_cast %93 : vector<1x128xf32> to vector<1x1x128xf32>
    tpu.vector_store %arg7[%c0_70, %c0_71, %c0_72], %96 {strides = array<i32>} : memref<1x2x128xf32, #tpu.memory_space<vmem>>, vector<1x1x128xf32>,
    %c0_73 = arith.constant 0 : index
    %c1_74 = arith.constant 1 : index
    %c0_75 = arith.constant 0 : index
    %97 = vector.load %arg7[%c0_73, %c1_74, %c0_75] : memref<1x2x128xf32, #tpu.memory_space<vmem>>, vector<1x1x128xf32>
    %98 = vector.shape_cast %97 : vector<1x1x128xf32> to vector<1x128xf32>
    %99 = arith.mulf %85, %85 : vector<64x128xf32>
    %cst_76 = arith.constant dense<0.000000e+00> : vector<128xf32>
    %100 = vector.multi_reduction <add>, %99, %cst_76 [0] : vector<64x128xf32> to vector<128xf32>
    %101 = vector.shape_cast %100 : vector<128xf32> to vector<1x128xf32>
    %102 = arith.addf %98, %101 : vector<1x128xf32>
    %c0_77 = arith.constant 0 : index
    %c1_78 = arith.constant 1 : index
    %c0_79 = arith.constant 0 : index
    %103 = vector.load %arg7[%c0_77, %c1_78, %c0_79] : memref<1x2x128xf32, #tpu.memory_space<vmem>>, vector<1x1x128xf32>
    %104 = vector.shape_cast %103 : vector<1x1x128xf32> to vector<1x128xf32>
    %105 = vector.shape_cast %102 : vector<1x128xf32> to vector<1x1x128xf32>
    tpu.vector_store %arg7[%c0_77, %c1_78, %c0_79], %105 {strides = array<i32>} : memref<1x2x128xf32, #tpu.memory_space<vmem>>, vector<1x1x128xf32>,
    %c0_i32_80 = arith.constant 0 : i32
    %106 = arith.addi %0, %c0_i32_80 : i32
    %c3_81 = arith.constant 3 : index
    %107 = arith.index_cast %106 : i32 to index
    %c0_82 = arith.constant 0 : index
    %c0_83 = arith.constant 0 : index
    %108 = vector.load %arg2[%c3_81, %107, %c0_82, %c0_83] : memref<4x9x9x4xbf16, #tpu.memory_space<vmem>>, vector<1x8x8x4xbf16>
    %109 = vector.shape_cast %108 : vector<1x8x8x4xbf16> to vector<8x8x4xbf16>
    %110 = vector.shape_cast %109 : vector<8x8x4xbf16> to vector<64x4xbf16>
    %c0_84 = arith.constant 0 : index
    %c0_85 = arith.constant 0 : index
    %111 = vector.load %arg4[%c0_84, %c0_85] : memref<4x128xbf16, #tpu.memory_space<vmem>>, vector<4x128xbf16>
    %cst_86 = arith.constant dense<0.000000e+00> : vector<64x128xf32>
    %112 = tpu.matmul %110, %111, %cst_86 {dimension_numbers = #tpu.dot_dimension_numbers<[1], [0], [0], [1], [0, 0, 1, 1], [], []>} : vector<64x4xbf16>, vector<4x128xbf16>, vector<64x128xf32> -> vector<64x128xf32>
    %113 = vector.shape_cast %112 : vector<64x128xf32> to vector<8x8x128xf32>
    %114 = arith.truncf %113 : vector<8x8x128xf32> to vector<8x8x128xbf16>
    %c0_87 = arith.constant 0 : index
    %c0_88 = arith.constant 0 : index
    %c0_89 = arith.constant 0 : index
    %115 = vector.load %arg6[%c0_87, %c0_88, %c0_89] : memref<8x8x128xbf16, #tpu.memory_space<vmem>>, vector<8x8x128xbf16>
    tpu.vector_store %arg6[%c0_87, %c0_88, %c0_89], %114 {strides = array<i32>} : memref<8x8x128xbf16, #tpu.memory_space<vmem>>, vector<8x8x128xbf16>,
    %c0_90 = arith.constant 0 : index
    %c0_91 = arith.constant 0 : index
    %c0_92 = arith.constant 0 : index
    %116 = vector.load %arg8[%c0_90, %c0_91, %c0_92] : memref<1x2x128xf32, #tpu.memory_space<vmem>>, vector<1x1x128xf32>
    %117 = vector.shape_cast %116 : vector<1x1x128xf32> to vector<1x128xf32>
    %cst_93 = arith.constant dense<0.000000e+00> : vector<128xf32>
    %118 = vector.multi_reduction <add>, %112, %cst_93 [0] : vector<64x128xf32> to vector<128xf32>
    %119 = vector.shape_cast %118 : vector<128xf32> to vector<1x128xf32>
    %120 = arith.addf %117, %119 : vector<1x128xf32>
    %c0_94 = arith.constant 0 : index
    %c0_95 = arith.constant 0 : index
    %c0_96 = arith.constant 0 : index
    %121 = vector.load %arg8[%c0_94, %c0_95, %c0_96] : memref<1x2x128xf32, #tpu.memory_space<vmem>>, vector<1x1x128xf32>
    %122 = vector.shape_cast %121 : vector<1x1x128xf32> to vector<1x128xf32>
    %123 = vector.shape_cast %120 : vector<1x128xf32> to vector<1x1x128xf32>
    tpu.vector_store %arg8[%c0_94, %c0_95, %c0_96], %123 {strides = array<i32>} : memref<1x2x128xf32, #tpu.memory_space<vmem>>, vector<1x1x128xf32>,
    %c0_97 = arith.constant 0 : index
    %c1_98 = arith.constant 1 : index
    %c0_99 = arith.constant 0 : index
    %124 = vector.load %arg8[%c0_97, %c1_98, %c0_99] : memref<1x2x128xf32, #tpu.memory_space<vmem>>, vector<1x1x128xf32>
    %125 = vector.shape_cast %124 : vector<1x1x128xf32> to vector<1x128xf32>
    %126 = arith.mulf %112, %112 : vector<64x128xf32>
    %cst_100 = arith.constant dense<0.000000e+00> : vector<128xf32>
    %127 = vector.multi_reduction <add>, %126, %cst_100 [0] : vector<64x128xf32> to vector<128xf32>
    %128 = vector.shape_cast %127 : vector<128xf32> to vector<1x128xf32>
    %129 = arith.addf %125, %128 : vector<1x128xf32>
    %c0_101 = arith.constant 0 : index
    %c1_102 = arith.constant 1 : index
    %c0_103 = arith.constant 0 : index
    %130 = vector.load %arg8[%c0_101, %c1_102, %c0_103] : memref<1x2x128xf32, #tpu.memory_space<vmem>>, vector<1x1x128xf32>
    %131 = vector.shape_cast %130 : vector<1x1x128xf32> to vector<1x128xf32>
    %132 = vector.shape_cast %129 : vector<1x128xf32> to vector<1x1x128xf32>
    tpu.vector_store %arg8[%c0_101, %c1_102, %c0_103], %132 {strides = array<i32>} : memref<1x2x128xf32, #tpu.memory_space<vmem>>, vector<1x1x128xf32>,
    return
  }
  func.func @transform_0(%arg0: i32, %arg1: i32) -> (i32, i32, i32, i32) {
    %c0_i32 = arith.constant 0 : i32
    %c0_i32_0 = arith.constant 0 : i32
    %c0_i32_1 = arith.constant 0 : i32
    %c0_i32_2 = arith.constant 0 : i32
    return %arg0, %c0_i32, %c0_i32_0, %c0_i32_1 : i32, i32, i32, i32
  }
  func.func @transform_1(%arg0: i32, %arg1: i32) -> (i32, i32, i32) {
    %c0_i32 = arith.constant 0 : i32
    %c0_i32_0 = arith.constant 0 : i32
    %c0_i32_1 = arith.constant 0 : i32
    %c0_i32_2 = arith.constant 0 : i32
    return %c0_i32, %c0_i32_0, %c0_i32_1 : i32, i32, i32
  }
  func.func @transform_2(%arg0: i32, %arg1: i32) -> (i32, i32) {
    %c0_i32 = arith.constant 0 : i32
    %c0_i32_0 = arith.constant 0 : i32
    %c0_i32_1 = arith.constant 0 : i32
    return %c0_i32, %c0_i32_0 : i32, i32
  }
  func.func @transform_3(%arg0: i32, %arg1: i32) -> (i32, i32, i32) {
    %c1_i32 = arith.constant 1 : i32
    %0 = arith.muli %arg0, %c1_i32 : i32
    %1 = arith.addi %0, %arg1 : i32
    %c0_i32 = arith.constant 0 : i32
    %c0_i32_0 = arith.constant 0 : i32
    %c0_i32_1 = arith.constant 0 : i32
    return %1, %c0_i32, %c0_i32_0 : i32, i32, i32
  }
  func.func @transform_4(%arg0: i32, %arg1: i32) -> (i32, i32, i32) {
    %c1_i32 = arith.constant 1 : i32
    %0 = arith.muli %arg0, %c1_i32 : i32
    %1 = arith.addi %0, %arg1 : i32
    %c0_i32 = arith.constant 0 : i32
    %c0_i32_0 = arith.constant 0 : i32
    %c0_i32_1 = arith.constant 0 : i32
    return %1, %c0_i32, %c0_i32_0 : i32, i32, i32
  }
  func.func @transform_5(%arg0: i32, %arg1: i32) -> (i32, i32, i32) {
    %c0_i32 = arith.constant 0 : i32
    %c0_i32_0 = arith.constant 0 : i32
    %c0_i32_1 = arith.constant 0 : i32
    return %arg0, %c0_i32, %c0_i32_0 : i32, i32, i32
  }
  func.func @transform_6(%arg0: i32, %arg1: i32) -> (i32, i32, i32) {
    %c0_i32 = arith.constant 0 : i32
    %c0_i32_0 = arith.constant 0 : i32
    %c0_i32_1 = arith.constant 0 : i32
    return %arg0, %c0_i32, %c0_i32_0 : i32, i32, i32
  }
}

module attributes {stable_mosaic.version = 11 : i64} {
  func.func @_bnact_conv3x3_kernel(%arg0: i32, %arg1: i32, %arg2: memref<8x8x128xbf16, #tpu.memory_space<vmem>>, %arg3: memref<1x1x128xf32, #tpu.memory_space<vmem>>, %arg4: memref<1x1x128xf32, #tpu.memory_space<vmem>>, %arg5: memref<9x128x128xbf16, #tpu.memory_space<vmem>>, %arg6: memref<8x8x128xbf16, #tpu.memory_space<vmem>>, %arg7: memref<1x2x128xf32, #tpu.memory_space<vmem>>, %arg8: memref<10x17x128xf32, #tpu.memory_space<vmem>>) attributes {dimension_semantics = [#tpu.dimension_semantics<parallel>, #tpu.dimension_semantics<arbitrary>], iteration_bounds = array<i64: 2, 1>, scalar_prefetch = 0 : i64, scratch_operands = 1 : i64, tpu.core_type = #tpu.core_type<tc>, window_params = [{transform_indices = @transform_0, window_bounds = array<i64: 8, 8, 128>}, {pipeline_mode = #tpu.pipeline_mode<synchronous>, transform_indices = @transform_1, window_bounds = array<i64: 1, 1, 128>}, {pipeline_mode = #tpu.pipeline_mode<synchronous>, transform_indices = @transform_2, window_bounds = array<i64: 1, 1, 128>}, {pipeline_mode = #tpu.pipeline_mode<synchronous>, transform_indices = @transform_3, window_bounds = array<i64: 9, 128, 128>}, {transform_indices = @transform_4, window_bounds = array<i64: 8, 8, 128>}, {transform_indices = @transform_5, window_bounds = array<i64: 1, 2, 128>}]} {
    %c0_i32 = arith.constant 0 : i32
    %0 = arith.cmpi eq, %arg1, %c0_i32 : i32
    %1 = arith.extui %0 : i1 to i32
    %c0_i32_0 = arith.constant 0 : i32
    %2 = arith.cmpi ne, %1, %c0_i32_0 : i32
    scf.if %2 {
      %cst_69 = arith.constant 0.000000e+00 : f32
      %106 = vector.broadcast %cst_69 : f32 to vector<10x17x128xf32>
      %c0_70 = arith.constant 0 : index
      %c0_71 = arith.constant 0 : index
      %c0_72 = arith.constant 0 : index
      %107 = vector.load %arg8[%c0_70, %c0_71, %c0_72] : memref<10x17x128xf32, #tpu.memory_space<vmem>>, vector<10x17x128xf32>
      tpu.vector_store %arg8[%c0_70, %c0_71, %c0_72], %106 {strides = array<i32>} : memref<10x17x128xf32, #tpu.memory_space<vmem>>, vector<10x17x128xf32>,
      %c0_73 = arith.constant 0 : index
      %c0_74 = arith.constant 0 : index
      %c0_75 = arith.constant 0 : index
      %108 = vector.load %arg2[%c0_73, %c0_74, %c0_75] : memref<8x8x128xbf16, #tpu.memory_space<vmem>>, vector<8x8x128xbf16>
      %109 = arith.extf %108 : vector<8x8x128xbf16> to vector<8x8x128xf32>
      %c0_76 = arith.constant 0 : index
      %c0_77 = arith.constant 0 : index
      %c0_78 = arith.constant 0 : index
      %110 = vector.load %arg3[%c0_76, %c0_77, %c0_78] : memref<1x1x128xf32, #tpu.memory_space<vmem>>, vector<1x1x128xf32>
      %111 = vector.broadcast %110 : vector<1x1x128xf32> to vector<8x8x128xf32>
      %112 = arith.mulf %109, %111 : vector<8x8x128xf32>
      %c0_79 = arith.constant 0 : index
      %c0_80 = arith.constant 0 : index
      %c0_81 = arith.constant 0 : index
      %113 = vector.load %arg4[%c0_79, %c0_80, %c0_81] : memref<1x1x128xf32, #tpu.memory_space<vmem>>, vector<1x1x128xf32>
      %114 = vector.broadcast %113 : vector<1x1x128xf32> to vector<8x8x128xf32>
      %115 = arith.addf %112, %114 : vector<8x8x128xf32>
      %cst_82 = arith.constant 0.000000e+00 : f32
      %116 = vector.broadcast %cst_82 : f32 to vector<8x8x128xf32>
      %117 = arith.cmpf oge, %115, %116 : vector<8x8x128xf32>
      %cst_83 = arith.constant 0.00999999977 : f32
      %118 = vector.broadcast %cst_83 : f32 to vector<8x8x128xf32>
      %119 = arith.mulf %118, %115 : vector<8x8x128xf32>
      %120 = arith.select %117, %115, %119 : vector<8x8x128xi1>, vector<8x8x128xf32>
      %c1_84 = arith.constant 1 : index
      %c8_85 = arith.constant 8 : index
      %c0_86 = arith.constant 0 : index
      %121 = vector.load %arg8[%c1_84, %c8_85, %c0_86] : memref<10x17x128xf32, #tpu.memory_space<vmem>>, vector<8x8x128xf32>
      tpu.vector_store %arg8[%c1_84, %c8_85, %c0_86], %120 {strides = array<i32>} : memref<10x17x128xf32, #tpu.memory_space<vmem>>, vector<8x8x128xf32>,
      %cst_87 = arith.constant 0.000000e+00 : f32
      %122 = vector.broadcast %cst_87 : f32 to vector<1x2x128xf32>
      %c0_88 = arith.constant 0 : index
      %c0_89 = arith.constant 0 : index
      %c0_90 = arith.constant 0 : index
      %123 = vector.load %arg7[%c0_88, %c0_89, %c0_90] : memref<1x2x128xf32, #tpu.memory_space<vmem>>, vector<1x2x128xf32>
      tpu.vector_store %arg7[%c0_88, %c0_89, %c0_90], %122 {strides = array<i32>} : memref<1x2x128xf32, #tpu.memory_space<vmem>>, vector<1x2x128xf32>,
    } else {
    }
    %c8_i32 = arith.constant 8 : i32
    %3 = arith.muli %arg1, %c8_i32 : i32
    %cst = arith.constant 0.000000e+00 : f32
    %4 = vector.broadcast %cst : f32 to vector<64x128xf32>
    %c0_i32_1 = arith.constant 0 : i32
    %5 = arith.addi %3, %c0_i32_1 : i32
    %6 = arith.index_cast %5 : i32 to index
    %c7 = arith.constant 7 : index
    %c0 = arith.constant 0 : index
    %7 = vector.load %arg8[%6, %c7, %c0] : memref<10x17x128xf32, #tpu.memory_space<vmem>>, vector<8x8x128xf32>
    %8 = vector.shape_cast %7 : vector<8x8x128xf32> to vector<64x128xf32>
    %9 = arith.truncf %8 : vector<64x128xf32> to vector<64x128xbf16>
    %c0_2 = arith.constant 0 : index
    %c0_3 = arith.constant 0 : index
    %c0_4 = arith.constant 0 : index
    %10 = vector.load %arg5[%c0_2, %c0_3, %c0_4] : memref<9x128x128xbf16, #tpu.memory_space<vmem>>, vector<1x128x128xbf16>
    %11 = vector.shape_cast %10 : vector<1x128x128xbf16> to vector<128x128xbf16>
    %cst_5 = arith.constant dense<0.000000e+00> : vector<64x128xf32>
    %12 = tpu.matmul %9, %11, %cst_5 {dimension_numbers = #tpu.dot_dimension_numbers<[1], [0], [0], [1], [0, 0, 1, 1], [], []>} : vector<64x128xbf16>, vector<128x128xbf16>, vector<64x128xf32> -> vector<64x128xf32>
    %13 = arith.addf %4, %12 : vector<64x128xf32>
    %c0_i32_6 = arith.constant 0 : i32
    %14 = arith.addi %3, %c0_i32_6 : i32
    %15 = arith.index_cast %14 : i32 to index
    %c8 = arith.constant 8 : index
    %c0_7 = arith.constant 0 : index
    %16 = vector.load %arg8[%15, %c8, %c0_7] : memref<10x17x128xf32, #tpu.memory_space<vmem>>, vector<8x8x128xf32>
    %17 = vector.shape_cast %16 : vector<8x8x128xf32> to vector<64x128xf32>
    %18 = arith.truncf %17 : vector<64x128xf32> to vector<64x128xbf16>
    %c1 = arith.constant 1 : index
    %c0_8 = arith.constant 0 : index
    %c0_9 = arith.constant 0 : index
    %19 = vector.load %arg5[%c1, %c0_8, %c0_9] : memref<9x128x128xbf16, #tpu.memory_space<vmem>>, vector<1x128x128xbf16>
    %20 = vector.shape_cast %19 : vector<1x128x128xbf16> to vector<128x128xbf16>
    %cst_10 = arith.constant dense<0.000000e+00> : vector<64x128xf32>
    %21 = tpu.matmul %18, %20, %cst_10 {dimension_numbers = #tpu.dot_dimension_numbers<[1], [0], [0], [1], [0, 0, 1, 1], [], []>} : vector<64x128xbf16>, vector<128x128xbf16>, vector<64x128xf32> -> vector<64x128xf32>
    %22 = arith.addf %13, %21 : vector<64x128xf32>
    %c0_i32_11 = arith.constant 0 : i32
    %23 = arith.addi %3, %c0_i32_11 : i32
    %24 = arith.index_cast %23 : i32 to index
    %c9 = arith.constant 9 : index
    %c0_12 = arith.constant 0 : index
    %25 = vector.load %arg8[%24, %c9, %c0_12] : memref<10x17x128xf32, #tpu.memory_space<vmem>>, vector<8x8x128xf32>
    %26 = vector.shape_cast %25 : vector<8x8x128xf32> to vector<64x128xf32>
    %27 = arith.truncf %26 : vector<64x128xf32> to vector<64x128xbf16>
    %c2 = arith.constant 2 : index
    %c0_13 = arith.constant 0 : index
    %c0_14 = arith.constant 0 : index
    %28 = vector.load %arg5[%c2, %c0_13, %c0_14] : memref<9x128x128xbf16, #tpu.memory_space<vmem>>, vector<1x128x128xbf16>
    %29 = vector.shape_cast %28 : vector<1x128x128xbf16> to vector<128x128xbf16>
    %cst_15 = arith.constant dense<0.000000e+00> : vector<64x128xf32>
    %30 = tpu.matmul %27, %29, %cst_15 {dimension_numbers = #tpu.dot_dimension_numbers<[1], [0], [0], [1], [0, 0, 1, 1], [], []>} : vector<64x128xbf16>, vector<128x128xbf16>, vector<64x128xf32> -> vector<64x128xf32>
    %31 = arith.addf %22, %30 : vector<64x128xf32>
    %c1_i32 = arith.constant 1 : i32
    %32 = arith.addi %3, %c1_i32 : i32
    %33 = arith.index_cast %32 : i32 to index
    %c7_16 = arith.constant 7 : index
    %c0_17 = arith.constant 0 : index
    %34 = vector.load %arg8[%33, %c7_16, %c0_17] : memref<10x17x128xf32, #tpu.memory_space<vmem>>, vector<8x8x128xf32>
    %35 = vector.shape_cast %34 : vector<8x8x128xf32> to vector<64x128xf32>
    %36 = arith.truncf %35 : vector<64x128xf32> to vector<64x128xbf16>
    %c3 = arith.constant 3 : index
    %c0_18 = arith.constant 0 : index
    %c0_19 = arith.constant 0 : index
    %37 = vector.load %arg5[%c3, %c0_18, %c0_19] : memref<9x128x128xbf16, #tpu.memory_space<vmem>>, vector<1x128x128xbf16>
    %38 = vector.shape_cast %37 : vector<1x128x128xbf16> to vector<128x128xbf16>
    %cst_20 = arith.constant dense<0.000000e+00> : vector<64x128xf32>
    %39 = tpu.matmul %36, %38, %cst_20 {dimension_numbers = #tpu.dot_dimension_numbers<[1], [0], [0], [1], [0, 0, 1, 1], [], []>} : vector<64x128xbf16>, vector<128x128xbf16>, vector<64x128xf32> -> vector<64x128xf32>
    %40 = arith.addf %31, %39 : vector<64x128xf32>
    %c1_i32_21 = arith.constant 1 : i32
    %41 = arith.addi %3, %c1_i32_21 : i32
    %42 = arith.index_cast %41 : i32 to index
    %c8_22 = arith.constant 8 : index
    %c0_23 = arith.constant 0 : index
    %43 = vector.load %arg8[%42, %c8_22, %c0_23] : memref<10x17x128xf32, #tpu.memory_space<vmem>>, vector<8x8x128xf32>
    %44 = vector.shape_cast %43 : vector<8x8x128xf32> to vector<64x128xf32>
    %45 = arith.truncf %44 : vector<64x128xf32> to vector<64x128xbf16>
    %c4 = arith.constant 4 : index
    %c0_24 = arith.constant 0 : index
    %c0_25 = arith.constant 0 : index
    %46 = vector.load %arg5[%c4, %c0_24, %c0_25] : memref<9x128x128xbf16, #tpu.memory_space<vmem>>, vector<1x128x128xbf16>
    %47 = vector.shape_cast %46 : vector<1x128x128xbf16> to vector<128x128xbf16>
    %cst_26 = arith.constant dense<0.000000e+00> : vector<64x128xf32>
    %48 = tpu.matmul %45, %47, %cst_26 {dimension_numbers = #tpu.dot_dimension_numbers<[1], [0], [0], [1], [0, 0, 1, 1], [], []>} : vector<64x128xbf16>, vector<128x128xbf16>, vector<64x128xf32> -> vector<64x128xf32>
    %49 = arith.addf %40, %48 : vector<64x128xf32>
    %c1_i32_27 = arith.constant 1 : i32
    %50 = arith.addi %3, %c1_i32_27 : i32
    %51 = arith.index_cast %50 : i32 to index
    %c9_28 = arith.constant 9 : index
    %c0_29 = arith.constant 0 : index
    %52 = vector.load %arg8[%51, %c9_28, %c0_29] : memref<10x17x128xf32, #tpu.memory_space<vmem>>, vector<8x8x128xf32>
    %53 = vector.shape_cast %52 : vector<8x8x128xf32> to vector<64x128xf32>
    %54 = arith.truncf %53 : vector<64x128xf32> to vector<64x128xbf16>
    %c5 = arith.constant 5 : index
    %c0_30 = arith.constant 0 : index
    %c0_31 = arith.constant 0 : index
    %55 = vector.load %arg5[%c5, %c0_30, %c0_31] : memref<9x128x128xbf16, #tpu.memory_space<vmem>>, vector<1x128x128xbf16>
    %56 = vector.shape_cast %55 : vector<1x128x128xbf16> to vector<128x128xbf16>
    %cst_32 = arith.constant dense<0.000000e+00> : vector<64x128xf32>
    %57 = tpu.matmul %54, %56, %cst_32 {dimension_numbers = #tpu.dot_dimension_numbers<[1], [0], [0], [1], [0, 0, 1, 1], [], []>} : vector<64x128xbf16>, vector<128x128xbf16>, vector<64x128xf32> -> vector<64x128xf32>
    %58 = arith.addf %49, %57 : vector<64x128xf32>
    %c2_i32 = arith.constant 2 : i32
    %59 = arith.addi %3, %c2_i32 : i32
    %60 = arith.index_cast %59 : i32 to index
    %c7_33 = arith.constant 7 : index
    %c0_34 = arith.constant 0 : index
    %61 = vector.load %arg8[%60, %c7_33, %c0_34] : memref<10x17x128xf32, #tpu.memory_space<vmem>>, vector<8x8x128xf32>
    %62 = vector.shape_cast %61 : vector<8x8x128xf32> to vector<64x128xf32>
    %63 = arith.truncf %62 : vector<64x128xf32> to vector<64x128xbf16>
    %c6 = arith.constant 6 : index
    %c0_35 = arith.constant 0 : index
    %c0_36 = arith.constant 0 : index
    %64 = vector.load %arg5[%c6, %c0_35, %c0_36] : memref<9x128x128xbf16, #tpu.memory_space<vmem>>, vector<1x128x128xbf16>
    %65 = vector.shape_cast %64 : vector<1x128x128xbf16> to vector<128x128xbf16>
    %cst_37 = arith.constant dense<0.000000e+00> : vector<64x128xf32>
    %66 = tpu.matmul %63, %65, %cst_37 {dimension_numbers = #tpu.dot_dimension_numbers<[1], [0], [0], [1], [0, 0, 1, 1], [], []>} : vector<64x128xbf16>, vector<128x128xbf16>, vector<64x128xf32> -> vector<64x128xf32>
    %67 = arith.addf %58, %66 : vector<64x128xf32>
    %c2_i32_38 = arith.constant 2 : i32
    %68 = arith.addi %3, %c2_i32_38 : i32
    %69 = arith.index_cast %68 : i32 to index
    %c8_39 = arith.constant 8 : index
    %c0_40 = arith.constant 0 : index
    %70 = vector.load %arg8[%69, %c8_39, %c0_40] : memref<10x17x128xf32, #tpu.memory_space<vmem>>, vector<8x8x128xf32>
    %71 = vector.shape_cast %70 : vector<8x8x128xf32> to vector<64x128xf32>
    %72 = arith.truncf %71 : vector<64x128xf32> to vector<64x128xbf16>
    %c7_41 = arith.constant 7 : index
    %c0_42 = arith.constant 0 : index
    %c0_43 = arith.constant 0 : index
    %73 = vector.load %arg5[%c7_41, %c0_42, %c0_43] : memref<9x128x128xbf16, #tpu.memory_space<vmem>>, vector<1x128x128xbf16>
    %74 = vector.shape_cast %73 : vector<1x128x128xbf16> to vector<128x128xbf16>
    %cst_44 = arith.constant dense<0.000000e+00> : vector<64x128xf32>
    %75 = tpu.matmul %72, %74, %cst_44 {dimension_numbers = #tpu.dot_dimension_numbers<[1], [0], [0], [1], [0, 0, 1, 1], [], []>} : vector<64x128xbf16>, vector<128x128xbf16>, vector<64x128xf32> -> vector<64x128xf32>
    %76 = arith.addf %67, %75 : vector<64x128xf32>
    %c2_i32_45 = arith.constant 2 : i32
    %77 = arith.addi %3, %c2_i32_45 : i32
    %78 = arith.index_cast %77 : i32 to index
    %c9_46 = arith.constant 9 : index
    %c0_47 = arith.constant 0 : index
    %79 = vector.load %arg8[%78, %c9_46, %c0_47] : memref<10x17x128xf32, #tpu.memory_space<vmem>>, vector<8x8x128xf32>
    %80 = vector.shape_cast %79 : vector<8x8x128xf32> to vector<64x128xf32>
    %81 = arith.truncf %80 : vector<64x128xf32> to vector<64x128xbf16>
    %c8_48 = arith.constant 8 : index
    %c0_49 = arith.constant 0 : index
    %c0_50 = arith.constant 0 : index
    %82 = vector.load %arg5[%c8_48, %c0_49, %c0_50] : memref<9x128x128xbf16, #tpu.memory_space<vmem>>, vector<1x128x128xbf16>
    %83 = vector.shape_cast %82 : vector<1x128x128xbf16> to vector<128x128xbf16>
    %cst_51 = arith.constant dense<0.000000e+00> : vector<64x128xf32>
    %84 = tpu.matmul %81, %83, %cst_51 {dimension_numbers = #tpu.dot_dimension_numbers<[1], [0], [0], [1], [0, 0, 1, 1], [], []>} : vector<64x128xbf16>, vector<128x128xbf16>, vector<64x128xf32> -> vector<64x128xf32>
    %85 = arith.addf %76, %84 : vector<64x128xf32>
    %86 = vector.shape_cast %85 : vector<64x128xf32> to vector<8x8x128xf32>
    %87 = arith.truncf %86 : vector<8x8x128xf32> to vector<8x8x128xbf16>
    %c0_52 = arith.constant 0 : index
    %c0_53 = arith.constant 0 : index
    %c0_54 = arith.constant 0 : index
    %88 = vector.load %arg6[%c0_52, %c0_53, %c0_54] : memref<8x8x128xbf16, #tpu.memory_space<vmem>>, vector<8x8x128xbf16>
    tpu.vector_store %arg6[%c0_52, %c0_53, %c0_54], %87 {strides = array<i32>} : memref<8x8x128xbf16, #tpu.memory_space<vmem>>, vector<8x8x128xbf16>,
    %c0_55 = arith.constant 0 : index
    %c0_56 = arith.constant 0 : index
    %c0_57 = arith.constant 0 : index
    %89 = vector.load %arg7[%c0_55, %c0_56, %c0_57] : memref<1x2x128xf32, #tpu.memory_space<vmem>>, vector<1x1x128xf32>
    %90 = vector.shape_cast %89 : vector<1x1x128xf32> to vector<1x128xf32>
    %cst_58 = arith.constant dense<0.000000e+00> : vector<128xf32>
    %91 = vector.multi_reduction <add>, %85, %cst_58 [0] : vector<64x128xf32> to vector<128xf32>
    %92 = vector.shape_cast %91 : vector<128xf32> to vector<1x128xf32>
    %93 = arith.addf %90, %92 : vector<1x128xf32>
    %c0_59 = arith.constant 0 : index
    %c0_60 = arith.constant 0 : index
    %c0_61 = arith.constant 0 : index
    %94 = vector.load %arg7[%c0_59, %c0_60, %c0_61] : memref<1x2x128xf32, #tpu.memory_space<vmem>>, vector<1x1x128xf32>
    %95 = vector.shape_cast %94 : vector<1x1x128xf32> to vector<1x128xf32>
    %96 = vector.shape_cast %93 : vector<1x128xf32> to vector<1x1x128xf32>
    tpu.vector_store %arg7[%c0_59, %c0_60, %c0_61], %96 {strides = array<i32>} : memref<1x2x128xf32, #tpu.memory_space<vmem>>, vector<1x1x128xf32>,
    %c0_62 = arith.constant 0 : index
    %c1_63 = arith.constant 1 : index
    %c0_64 = arith.constant 0 : index
    %97 = vector.load %arg7[%c0_62, %c1_63, %c0_64] : memref<1x2x128xf32, #tpu.memory_space<vmem>>, vector<1x1x128xf32>
    %98 = vector.shape_cast %97 : vector<1x1x128xf32> to vector<1x128xf32>
    %99 = arith.mulf %85, %85 : vector<64x128xf32>
    %cst_65 = arith.constant dense<0.000000e+00> : vector<128xf32>
    %100 = vector.multi_reduction <add>, %99, %cst_65 [0] : vector<64x128xf32> to vector<128xf32>
    %101 = vector.shape_cast %100 : vector<128xf32> to vector<1x128xf32>
    %102 = arith.addf %98, %101 : vector<1x128xf32>
    %c0_66 = arith.constant 0 : index
    %c1_67 = arith.constant 1 : index
    %c0_68 = arith.constant 0 : index
    %103 = vector.load %arg7[%c0_66, %c1_67, %c0_68] : memref<1x2x128xf32, #tpu.memory_space<vmem>>, vector<1x1x128xf32>
    %104 = vector.shape_cast %103 : vector<1x1x128xf32> to vector<1x128xf32>
    %105 = vector.shape_cast %102 : vector<1x128xf32> to vector<1x1x128xf32>
    tpu.vector_store %arg7[%c0_66, %c1_67, %c0_68], %105 {strides = array<i32>} : memref<1x2x128xf32, #tpu.memory_space<vmem>>, vector<1x1x128xf32>,
    return
  }
  func.func @transform_0(%arg0: i32, %arg1: i32) -> (i32, i32, i32) {
    %c0_i32 = arith.constant 0 : i32
    %c0_i32_0 = arith.constant 0 : i32
    %c0_i32_1 = arith.constant 0 : i32
    return %arg0, %c0_i32, %c0_i32_0 : i32, i32, i32
  }
  func.func @transform_1(%arg0: i32, %arg1: i32) -> (i32, i32, i32) {
    %c0_i32 = arith.constant 0 : i32
    %c0_i32_0 = arith.constant 0 : i32
    %c0_i32_1 = arith.constant 0 : i32
    %c0_i32_2 = arith.constant 0 : i32
    return %c0_i32, %c0_i32_0, %c0_i32_1 : i32, i32, i32
  }
  func.func @transform_2(%arg0: i32, %arg1: i32) -> (i32, i32, i32) {
    %c0_i32 = arith.constant 0 : i32
    %c0_i32_0 = arith.constant 0 : i32
    %c0_i32_1 = arith.constant 0 : i32
    %c0_i32_2 = arith.constant 0 : i32
    return %c0_i32, %c0_i32_0, %c0_i32_1 : i32, i32, i32
  }
  func.func @transform_3(%arg0: i32, %arg1: i32) -> (i32, i32, i32) {
    %c0_i32 = arith.constant 0 : i32
    %c0_i32_0 = arith.constant 0 : i32
    %c0_i32_1 = arith.constant 0 : i32
    %c0_i32_2 = arith.constant 0 : i32
    return %c0_i32, %c0_i32_0, %c0_i32_1 : i32, i32, i32
  }
  func.func @transform_4(%arg0: i32, %arg1: i32) -> (i32, i32, i32) {
    %c1_i32 = arith.constant 1 : i32
    %0 = arith.muli %arg0, %c1_i32 : i32
    %1 = arith.addi %0, %arg1 : i32
    %c0_i32 = arith.constant 0 : i32
    %c0_i32_0 = arith.constant 0 : i32
    %c0_i32_1 = arith.constant 0 : i32
    return %1, %c0_i32, %c0_i32_0 : i32, i32, i32
  }
  func.func @transform_5(%arg0: i32, %arg1: i32) -> (i32, i32, i32) {
    %c0_i32 = arith.constant 0 : i32
    %c0_i32_0 = arith.constant 0 : i32
    %c0_i32_1 = arith.constant 0 : i32
    return %arg0, %c0_i32, %c0_i32_0 : i32, i32, i32
  }
}

module attributes {stable_mosaic.version = 11 : i64} {
  func.func @_bn_res_act_kernel(%arg0: i32, %arg1: memref<16x8x128xbf16, #tpu.memory_space<vmem>>, %arg2: memref<1x1x128xf32, #tpu.memory_space<vmem>>, %arg3: memref<1x1x128xf32, #tpu.memory_space<vmem>>, %arg4: memref<16x8x128xbf16, #tpu.memory_space<vmem>>, %arg5: memref<1x1x128xf32, #tpu.memory_space<vmem>>, %arg6: memref<1x1x128xf32, #tpu.memory_space<vmem>>, %arg7: memref<16x8x128xbf16, #tpu.memory_space<vmem>>) attributes {dimension_semantics = [#tpu.dimension_semantics<parallel>], iteration_bounds = array<i64: 1>, scalar_prefetch = 0 : i64, scratch_operands = 0 : i64, tpu.core_type = #tpu.core_type<tc>, window_params = [{transform_indices = @transform_0, window_bounds = array<i64: 16, 8, 128>}, {pipeline_mode = #tpu.pipeline_mode<synchronous>, transform_indices = @transform_1, window_bounds = array<i64: 1, 1, 128>}, {pipeline_mode = #tpu.pipeline_mode<synchronous>, transform_indices = @transform_2, window_bounds = array<i64: 1, 1, 128>}, {transform_indices = @transform_3, window_bounds = array<i64: 16, 8, 128>}, {pipeline_mode = #tpu.pipeline_mode<synchronous>, transform_indices = @transform_4, window_bounds = array<i64: 1, 1, 128>}, {pipeline_mode = #tpu.pipeline_mode<synchronous>, transform_indices = @transform_5, window_bounds = array<i64: 1, 1, 128>}, {transform_indices = @transform_6, window_bounds = array<i64: 16, 8, 128>}]} {
    %c0 = arith.constant 0 : index
    %c0_0 = arith.constant 0 : index
    %c0_1 = arith.constant 0 : index
    %0 = vector.load %arg1[%c0, %c0_0, %c0_1] : memref<16x8x128xbf16, #tpu.memory_space<vmem>>, vector<16x8x128xbf16>
    %1 = arith.extf %0 : vector<16x8x128xbf16> to vector<16x8x128xf32>
    %c0_2 = arith.constant 0 : index
    %c0_3 = arith.constant 0 : index
    %c0_4 = arith.constant 0 : index
    %2 = vector.load %arg2[%c0_2, %c0_3, %c0_4] : memref<1x1x128xf32, #tpu.memory_space<vmem>>, vector<1x1x128xf32>
    %3 = vector.broadcast %2 : vector<1x1x128xf32> to vector<16x8x128xf32>
    %4 = arith.mulf %1, %3 : vector<16x8x128xf32>
    %c0_5 = arith.constant 0 : index
    %c0_6 = arith.constant 0 : index
    %c0_7 = arith.constant 0 : index
    %5 = vector.load %arg3[%c0_5, %c0_6, %c0_7] : memref<1x1x128xf32, #tpu.memory_space<vmem>>, vector<1x1x128xf32>
    %6 = vector.broadcast %5 : vector<1x1x128xf32> to vector<16x8x128xf32>
    %7 = arith.addf %4, %6 : vector<16x8x128xf32>
    %c0_8 = arith.constant 0 : index
    %c0_9 = arith.constant 0 : index
    %c0_10 = arith.constant 0 : index
    %8 = vector.load %arg4[%c0_8, %c0_9, %c0_10] : memref<16x8x128xbf16, #tpu.memory_space<vmem>>, vector<16x8x128xbf16>
    %9 = arith.extf %8 : vector<16x8x128xbf16> to vector<16x8x128xf32>
    %c0_11 = arith.constant 0 : index
    %c0_12 = arith.constant 0 : index
    %c0_13 = arith.constant 0 : index
    %10 = vector.load %arg5[%c0_11, %c0_12, %c0_13] : memref<1x1x128xf32, #tpu.memory_space<vmem>>, vector<1x1x128xf32>
    %11 = vector.broadcast %10 : vector<1x1x128xf32> to vector<16x8x128xf32>
    %12 = arith.mulf %9, %11 : vector<16x8x128xf32>
    %13 = arith.addf %7, %12 : vector<16x8x128xf32>
    %c0_14 = arith.constant 0 : index
    %c0_15 = arith.constant 0 : index
    %c0_16 = arith.constant 0 : index
    %14 = vector.load %arg6[%c0_14, %c0_15, %c0_16] : memref<1x1x128xf32, #tpu.memory_space<vmem>>, vector<1x1x128xf32>
    %15 = vector.broadcast %14 : vector<1x1x128xf32> to vector<16x8x128xf32>
    %16 = arith.addf %13, %15 : vector<16x8x128xf32>
    %cst = arith.constant 0.000000e+00 : f32
    %17 = vector.broadcast %cst : f32 to vector<16x8x128xf32>
    %18 = arith.cmpf oge, %16, %17 : vector<16x8x128xf32>
    %cst_17 = arith.constant 0.00999999977 : f32
    %19 = vector.broadcast %cst_17 : f32 to vector<16x8x128xf32>
    %20 = arith.mulf %19, %16 : vector<16x8x128xf32>
    %21 = arith.select %18, %16, %20 : vector<16x8x128xi1>, vector<16x8x128xf32>
    %22 = arith.truncf %21 : vector<16x8x128xf32> to vector<16x8x128xbf16>
    %c0_18 = arith.constant 0 : index
    %c0_19 = arith.constant 0 : index
    %c0_20 = arith.constant 0 : index
    %23 = vector.load %arg7[%c0_18, %c0_19, %c0_20] : memref<16x8x128xbf16, #tpu.memory_space<vmem>>, vector<16x8x128xbf16>
    tpu.vector_store %arg7[%c0_18, %c0_19, %c0_20], %22 {strides = array<i32>} : memref<16x8x128xbf16, #tpu.memory_space<vmem>>, vector<16x8x128xbf16>,
    return
  }
  func.func @transform_0(%arg0: i32) -> (i32, i32, i32) {
    %c0_i32 = arith.constant 0 : i32
    %c0_i32_0 = arith.constant 0 : i32
    %c0_i32_1 = arith.constant 0 : i32
    return %arg0, %c0_i32, %c0_i32_0 : i32, i32, i32
  }
  func.func @transform_1(%arg0: i32) -> (i32, i32, i32) {
    %c0_i32 = arith.constant 0 : i32
    %c0_i32_0 = arith.constant 0 : i32
    %c0_i32_1 = arith.constant 0 : i32
    %c0_i32_2 = arith.constant 0 : i32
    return %c0_i32, %c0_i32_0, %c0_i32_1 : i32, i32, i32
  }
  func.func @transform_2(%arg0: i32) -> (i32, i32, i32) {
    %c0_i32 = arith.constant 0 : i32
    %c0_i32_0 = arith.constant 0 : i32
    %c0_i32_1 = arith.constant 0 : i32
    %c0_i32_2 = arith.constant 0 : i32
    return %c0_i32, %c0_i32_0, %c0_i32_1 : i32, i32, i32
  }
  func.func @transform_3(%arg0: i32) -> (i32, i32, i32) {
    %c0_i32 = arith.constant 0 : i32
    %c0_i32_0 = arith.constant 0 : i32
    %c0_i32_1 = arith.constant 0 : i32
    return %arg0, %c0_i32, %c0_i32_0 : i32, i32, i32
  }
  func.func @transform_4(%arg0: i32) -> (i32, i32, i32) {
    %c0_i32 = arith.constant 0 : i32
    %c0_i32_0 = arith.constant 0 : i32
    %c0_i32_1 = arith.constant 0 : i32
    %c0_i32_2 = arith.constant 0 : i32
    return %c0_i32, %c0_i32_0, %c0_i32_1 : i32, i32, i32
  }
  func.func @transform_5(%arg0: i32) -> (i32, i32, i32) {
    %c0_i32 = arith.constant 0 : i32
    %c0_i32_0 = arith.constant 0 : i32
    %c0_i32_1 = arith.constant 0 : i32
    %c0_i32_2 = arith.constant 0 : i32
    return %c0_i32, %c0_i32_0, %c0_i32_1 : i32, i32, i32
  }
  func.func @transform_6(%arg0: i32) -> (i32, i32, i32) {
    %c0_i32 = arith.constant 0 : i32
    %c0_i32_0 = arith.constant 0 : i32
    %c0_i32_1 = arith.constant 0 : i32
    return %arg0, %c0_i32, %c0_i32_0 : i32, i32, i32
  }
}

module attributes {stable_mosaic.version = 11 : i64} {
  func.func @_conv3x3_kernel(%arg0: i32, %arg1: i32, %arg2: memref<1x10x10x128xbf16, #tpu.memory_space<vmem>>, %arg3: memref<9x128x128xbf16, #tpu.memory_space<vmem>>, %arg4: memref<8x8x128xbf16, #tpu.memory_space<vmem>>, %arg5: memref<1x2x128xf32, #tpu.memory_space<vmem>>) attributes {dimension_semantics = [#tpu.dimension_semantics<parallel>, #tpu.dimension_semantics<arbitrary>], iteration_bounds = array<i64: 2, 1>, scalar_prefetch = 0 : i64, scratch_operands = 0 : i64, tpu.core_type = #tpu.core_type<tc>, window_params = [{transform_indices = @transform_0, window_bounds = array<i64: 1, 10, 10, 128>}, {pipeline_mode = #tpu.pipeline_mode<synchronous>, transform_indices = @transform_1, window_bounds = array<i64: 9, 128, 128>}, {transform_indices = @transform_2, window_bounds = array<i64: 8, 8, 128>}, {transform_indices = @transform_3, window_bounds = array<i64: 1, 2, 128>}]} {
    %c8_i32 = arith.constant 8 : i32
    %0 = arith.muli %arg1, %c8_i32 : i32
    %c0_i32 = arith.constant 0 : i32
    %1 = arith.cmpi eq, %arg1, %c0_i32 : i32
    %2 = arith.extui %1 : i1 to i32
    %c0_i32_0 = arith.constant 0 : i32
    %3 = arith.cmpi ne, %2, %c0_i32_0 : i32
    scf.if %3 {
      %cst_79 = arith.constant 0.000000e+00 : f32
      %106 = vector.broadcast %cst_79 : f32 to vector<1x2x128xf32>
      %c0_80 = arith.constant 0 : index
      %c0_81 = arith.constant 0 : index
      %c0_82 = arith.constant 0 : index
      %107 = vector.load %arg5[%c0_80, %c0_81, %c0_82] : memref<1x2x128xf32, #tpu.memory_space<vmem>>, vector<1x2x128xf32>
      tpu.vector_store %arg5[%c0_80, %c0_81, %c0_82], %106 {strides = array<i32>} : memref<1x2x128xf32, #tpu.memory_space<vmem>>, vector<1x2x128xf32>,
    } else {
    }
    %cst = arith.constant 0.000000e+00 : f32
    %4 = vector.broadcast %cst : f32 to vector<64x128xf32>
    %c0_i32_1 = arith.constant 0 : i32
    %5 = arith.addi %0, %c0_i32_1 : i32
    %c0 = arith.constant 0 : index
    %6 = arith.index_cast %5 : i32 to index
    %c0_2 = arith.constant 0 : index
    %c0_3 = arith.constant 0 : index
    %7 = vector.load %arg2[%c0, %6, %c0_2, %c0_3] : memref<1x10x10x128xbf16, #tpu.memory_space<vmem>>, vector<1x8x8x128xbf16>
    %8 = vector.shape_cast %7 : vector<1x8x8x128xbf16> to vector<8x8x128xbf16>
    %9 = vector.shape_cast %8 : vector<8x8x128xbf16> to vector<64x128xbf16>
    %c0_4 = arith.constant 0 : index
    %c0_5 = arith.constant 0 : index
    %c0_6 = arith.constant 0 : index
    %10 = vector.load %arg3[%c0_4, %c0_5, %c0_6] : memref<9x128x128xbf16, #tpu.memory_space<vmem>>, vector<1x128x128xbf16>
    %11 = vector.shape_cast %10 : vector<1x128x128xbf16> to vector<128x128xbf16>
    %cst_7 = arith.constant dense<0.000000e+00> : vector<64x128xf32>
    %12 = tpu.matmul %9, %11, %cst_7 {dimension_numbers = #tpu.dot_dimension_numbers<[1], [0], [0], [1], [0, 0, 1, 1], [], []>} : vector<64x128xbf16>, vector<128x128xbf16>, vector<64x128xf32> -> vector<64x128xf32>
    %13 = arith.addf %4, %12 : vector<64x128xf32>
    %c0_i32_8 = arith.constant 0 : i32
    %14 = arith.addi %0, %c0_i32_8 : i32
    %c0_9 = arith.constant 0 : index
    %15 = arith.index_cast %14 : i32 to index
    %c1 = arith.constant 1 : index
    %c0_10 = arith.constant 0 : index
    %16 = vector.load %arg2[%c0_9, %15, %c1, %c0_10] : memref<1x10x10x128xbf16, #tpu.memory_space<vmem>>, vector<1x8x8x128xbf16>
    %17 = vector.shape_cast %16 : vector<1x8x8x128xbf16> to vector<8x8x128xbf16>
    %18 = vector.shape_cast %17 : vector<8x8x128xbf16> to vector<64x128xbf16>
    %c1_11 = arith.constant 1 : index
    %c0_12 = arith.constant 0 : index
    %c0_13 = arith.constant 0 : index
    %19 = vector.load %arg3[%c1_11, %c0_12, %c0_13] : memref<9x128x128xbf16, #tpu.memory_space<vmem>>, vector<1x128x128xbf16>
    %20 = vector.shape_cast %19 : vector<1x128x128xbf16> to vector<128x128xbf16>
    %cst_14 = arith.constant dense<0.000000e+00> : vector<64x128xf32>
    %21 = tpu.matmul %18, %20, %cst_14 {dimension_numbers = #tpu.dot_dimension_numbers<[1], [0], [0], [1], [0, 0, 1, 1], [], []>} : vector<64x128xbf16>, vector<128x128xbf16>, vector<64x128xf32> -> vector<64x128xf32>
    %22 = arith.addf %13, %21 : vector<64x128xf32>
    %c0_i32_15 = arith.constant 0 : i32
    %23 = arith.addi %0, %c0_i32_15 : i32
    %c0_16 = arith.constant 0 : index
    %24 = arith.index_cast %23 : i32 to index
    %c2 = arith.constant 2 : index
    %c0_17 = arith.constant 0 : index
    %25 = vector.load %arg2[%c0_16, %24, %c2, %c0_17] : memref<1x10x10x128xbf16, #tpu.memory_space<vmem>>, vector<1x8x8x128xbf16>
    %26 = vector.shape_cast %25 : vector<1x8x8x128xbf16> to vector<8x8x128xbf16>
    %27 = vector.shape_cast %26 : vector<8x8x128xbf16> to vector<64x128xbf16>
    %c2_18 = arith.constant 2 : index
    %c0_19 = arith.constant 0 : index
    %c0_20 = arith.constant 0 : index
    %28 = vector.load %arg3[%c2_18, %c0_19, %c0_20] : memref<9x128x128xbf16, #tpu.memory_space<vmem>>, vector<1x128x128xbf16>
    %29 = vector.shape_cast %28 : vector<1x128x128xbf16> to vector<128x128xbf16>
    %cst_21 = arith.constant dense<0.000000e+00> : vector<64x128xf32>
    %30 = tpu.matmul %27, %29, %cst_21 {dimension_numbers = #tpu.dot_dimension_numbers<[1], [0], [0], [1], [0, 0, 1, 1], [], []>} : vector<64x128xbf16>, vector<128x128xbf16>, vector<64x128xf32> -> vector<64x128xf32>
    %31 = arith.addf %22, %30 : vector<64x128xf32>
    %c1_i32 = arith.constant 1 : i32
    %32 = arith.addi %0, %c1_i32 : i32
    %c0_22 = arith.constant 0 : index
    %33 = arith.index_cast %32 : i32 to index
    %c0_23 = arith.constant 0 : index
    %c0_24 = arith.constant 0 : index
    %34 = vector.load %arg2[%c0_22, %33, %c0_23, %c0_24] : memref<1x10x10x128xbf16, #tpu.memory_space<vmem>>, vector<1x8x8x128xbf16>
    %35 = vector.shape_cast %34 : vector<1x8x8x128xbf16> to vector<8x8x128xbf16>
    %36 = vector.shape_cast %35 : vector<8x8x128xbf16> to vector<64x128xbf16>
    %c3 = arith.constant 3 : index
    %c0_25 = arith.constant 0 : index
    %c0_26 = arith.constant 0 : index
    %37 = vector.load %arg3[%c3, %c0_25, %c0_26] : memref<9x128x128xbf16, #tpu.memory_space<vmem>>, vector<1x128x128xbf16>
    %38 = vector.shape_cast %37 : vector<1x128x128xbf16> to vector<128x128xbf16>
    %cst_27 = arith.constant dense<0.000000e+00> : vector<64x128xf32>
    %39 = tpu.matmul %36, %38, %cst_27 {dimension_numbers = #tpu.dot_dimension_numbers<[1], [0], [0], [1], [0, 0, 1, 1], [], []>} : vector<64x128xbf16>, vector<128x128xbf16>, vector<64x128xf32> -> vector<64x128xf32>
    %40 = arith.addf %31, %39 : vector<64x128xf32>
    %c1_i32_28 = arith.constant 1 : i32
    %41 = arith.addi %0, %c1_i32_28 : i32
    %c0_29 = arith.constant 0 : index
    %42 = arith.index_cast %41 : i32 to index
    %c1_30 = arith.constant 1 : index
    %c0_31 = arith.constant 0 : index
    %43 = vector.load %arg2[%c0_29, %42, %c1_30, %c0_31] : memref<1x10x10x128xbf16, #tpu.memory_space<vmem>>, vector<1x8x8x128xbf16>
    %44 = vector.shape_cast %43 : vector<1x8x8x128xbf16> to vector<8x8x128xbf16>
    %45 = vector.shape_cast %44 : vector<8x8x128xbf16> to vector<64x128xbf16>
    %c4 = arith.constant 4 : index
    %c0_32 = arith.constant 0 : index
    %c0_33 = arith.constant 0 : index
    %46 = vector.load %arg3[%c4, %c0_32, %c0_33] : memref<9x128x128xbf16, #tpu.memory_space<vmem>>, vector<1x128x128xbf16>
    %47 = vector.shape_cast %46 : vector<1x128x128xbf16> to vector<128x128xbf16>
    %cst_34 = arith.constant dense<0.000000e+00> : vector<64x128xf32>
    %48 = tpu.matmul %45, %47, %cst_34 {dimension_numbers = #tpu.dot_dimension_numbers<[1], [0], [0], [1], [0, 0, 1, 1], [], []>} : vector<64x128xbf16>, vector<128x128xbf16>, vector<64x128xf32> -> vector<64x128xf32>
    %49 = arith.addf %40, %48 : vector<64x128xf32>
    %c1_i32_35 = arith.constant 1 : i32
    %50 = arith.addi %0, %c1_i32_35 : i32
    %c0_36 = arith.constant 0 : index
    %51 = arith.index_cast %50 : i32 to index
    %c2_37 = arith.constant 2 : index
    %c0_38 = arith.constant 0 : index
    %52 = vector.load %arg2[%c0_36, %51, %c2_37, %c0_38] : memref<1x10x10x128xbf16, #tpu.memory_space<vmem>>, vector<1x8x8x128xbf16>
    %53 = vector.shape_cast %52 : vector<1x8x8x128xbf16> to vector<8x8x128xbf16>
    %54 = vector.shape_cast %53 : vector<8x8x128xbf16> to vector<64x128xbf16>
    %c5 = arith.constant 5 : index
    %c0_39 = arith.constant 0 : index
    %c0_40 = arith.constant 0 : index
    %55 = vector.load %arg3[%c5, %c0_39, %c0_40] : memref<9x128x128xbf16, #tpu.memory_space<vmem>>, vector<1x128x128xbf16>
    %56 = vector.shape_cast %55 : vector<1x128x128xbf16> to vector<128x128xbf16>
    %cst_41 = arith.constant dense<0.000000e+00> : vector<64x128xf32>
    %57 = tpu.matmul %54, %56, %cst_41 {dimension_numbers = #tpu.dot_dimension_numbers<[1], [0], [0], [1], [0, 0, 1, 1], [], []>} : vector<64x128xbf16>, vector<128x128xbf16>, vector<64x128xf32> -> vector<64x128xf32>
    %58 = arith.addf %49, %57 : vector<64x128xf32>
    %c2_i32 = arith.constant 2 : i32
    %59 = arith.addi %0, %c2_i32 : i32
    %c0_42 = arith.constant 0 : index
    %60 = arith.index_cast %59 : i32 to index
    %c0_43 = arith.constant 0 : index
    %c0_44 = arith.constant 0 : index
    %61 = vector.load %arg2[%c0_42, %60, %c0_43, %c0_44] : memref<1x10x10x128xbf16, #tpu.memory_space<vmem>>, vector<1x8x8x128xbf16>
    %62 = vector.shape_cast %61 : vector<1x8x8x128xbf16> to vector<8x8x128xbf16>
    %63 = vector.shape_cast %62 : vector<8x8x128xbf16> to vector<64x128xbf16>
    %c6 = arith.constant 6 : index
    %c0_45 = arith.constant 0 : index
    %c0_46 = arith.constant 0 : index
    %64 = vector.load %arg3[%c6, %c0_45, %c0_46] : memref<9x128x128xbf16, #tpu.memory_space<vmem>>, vector<1x128x128xbf16>
    %65 = vector.shape_cast %64 : vector<1x128x128xbf16> to vector<128x128xbf16>
    %cst_47 = arith.constant dense<0.000000e+00> : vector<64x128xf32>
    %66 = tpu.matmul %63, %65, %cst_47 {dimension_numbers = #tpu.dot_dimension_numbers<[1], [0], [0], [1], [0, 0, 1, 1], [], []>} : vector<64x128xbf16>, vector<128x128xbf16>, vector<64x128xf32> -> vector<64x128xf32>
    %67 = arith.addf %58, %66 : vector<64x128xf32>
    %c2_i32_48 = arith.constant 2 : i32
    %68 = arith.addi %0, %c2_i32_48 : i32
    %c0_49 = arith.constant 0 : index
    %69 = arith.index_cast %68 : i32 to index
    %c1_50 = arith.constant 1 : index
    %c0_51 = arith.constant 0 : index
    %70 = vector.load %arg2[%c0_49, %69, %c1_50, %c0_51] : memref<1x10x10x128xbf16, #tpu.memory_space<vmem>>, vector<1x8x8x128xbf16>
    %71 = vector.shape_cast %70 : vector<1x8x8x128xbf16> to vector<8x8x128xbf16>
    %72 = vector.shape_cast %71 : vector<8x8x128xbf16> to vector<64x128xbf16>
    %c7 = arith.constant 7 : index
    %c0_52 = arith.constant 0 : index
    %c0_53 = arith.constant 0 : index
    %73 = vector.load %arg3[%c7, %c0_52, %c0_53] : memref<9x128x128xbf16, #tpu.memory_space<vmem>>, vector<1x128x128xbf16>
    %74 = vector.shape_cast %73 : vector<1x128x128xbf16> to vector<128x128xbf16>
    %cst_54 = arith.constant dense<0.000000e+00> : vector<64x128xf32>
    %75 = tpu.matmul %72, %74, %cst_54 {dimension_numbers = #tpu.dot_dimension_numbers<[1], [0], [0], [1], [0, 0, 1, 1], [], []>} : vector<64x128xbf16>, vector<128x128xbf16>, vector<64x128xf32> -> vector<64x128xf32>
    %76 = arith.addf %67, %75 : vector<64x128xf32>
    %c2_i32_55 = arith.constant 2 : i32
    %77 = arith.addi %0, %c2_i32_55 : i32
    %c0_56 = arith.constant 0 : index
    %78 = arith.index_cast %77 : i32 to index
    %c2_57 = arith.constant 2 : index
    %c0_58 = arith.constant 0 : index
    %79 = vector.load %arg2[%c0_56, %78, %c2_57, %c0_58] : memref<1x10x10x128xbf16, #tpu.memory_space<vmem>>, vector<1x8x8x128xbf16>
    %80 = vector.shape_cast %79 : vector<1x8x8x128xbf16> to vector<8x8x128xbf16>
    %81 = vector.shape_cast %80 : vector<8x8x128xbf16> to vector<64x128xbf16>
    %c8 = arith.constant 8 : index
    %c0_59 = arith.constant 0 : index
    %c0_60 = arith.constant 0 : index
    %82 = vector.load %arg3[%c8, %c0_59, %c0_60] : memref<9x128x128xbf16, #tpu.memory_space<vmem>>, vector<1x128x128xbf16>
    %83 = vector.shape_cast %82 : vector<1x128x128xbf16> to vector<128x128xbf16>
    %cst_61 = arith.constant dense<0.000000e+00> : vector<64x128xf32>
    %84 = tpu.matmul %81, %83, %cst_61 {dimension_numbers = #tpu.dot_dimension_numbers<[1], [0], [0], [1], [0, 0, 1, 1], [], []>} : vector<64x128xbf16>, vector<128x128xbf16>, vector<64x128xf32> -> vector<64x128xf32>
    %85 = arith.addf %76, %84 : vector<64x128xf32>
    %86 = vector.shape_cast %85 : vector<64x128xf32> to vector<8x8x128xf32>
    %87 = arith.truncf %86 : vector<8x8x128xf32> to vector<8x8x128xbf16>
    %c0_62 = arith.constant 0 : index
    %c0_63 = arith.constant 0 : index
    %c0_64 = arith.constant 0 : index
    %88 = vector.load %arg4[%c0_62, %c0_63, %c0_64] : memref<8x8x128xbf16, #tpu.memory_space<vmem>>, vector<8x8x128xbf16>
    tpu.vector_store %arg4[%c0_62, %c0_63, %c0_64], %87 {strides = array<i32>} : memref<8x8x128xbf16, #tpu.memory_space<vmem>>, vector<8x8x128xbf16>,
    %c0_65 = arith.constant 0 : index
    %c0_66 = arith.constant 0 : index
    %c0_67 = arith.constant 0 : index
    %89 = vector.load %arg5[%c0_65, %c0_66, %c0_67] : memref<1x2x128xf32, #tpu.memory_space<vmem>>, vector<1x1x128xf32>
    %90 = vector.shape_cast %89 : vector<1x1x128xf32> to vector<1x128xf32>
    %cst_68 = arith.constant dense<0.000000e+00> : vector<128xf32>
    %91 = vector.multi_reduction <add>, %85, %cst_68 [0] : vector<64x128xf32> to vector<128xf32>
    %92 = vector.shape_cast %91 : vector<128xf32> to vector<1x128xf32>
    %93 = arith.addf %90, %92 : vector<1x128xf32>
    %c0_69 = arith.constant 0 : index
    %c0_70 = arith.constant 0 : index
    %c0_71 = arith.constant 0 : index
    %94 = vector.load %arg5[%c0_69, %c0_70, %c0_71] : memref<1x2x128xf32, #tpu.memory_space<vmem>>, vector<1x1x128xf32>
    %95 = vector.shape_cast %94 : vector<1x1x128xf32> to vector<1x128xf32>
    %96 = vector.shape_cast %93 : vector<1x128xf32> to vector<1x1x128xf32>
    tpu.vector_store %arg5[%c0_69, %c0_70, %c0_71], %96 {strides = array<i32>} : memref<1x2x128xf32, #tpu.memory_space<vmem>>, vector<1x1x128xf32>,
    %c0_72 = arith.constant 0 : index
    %c1_73 = arith.constant 1 : index
    %c0_74 = arith.constant 0 : index
    %97 = vector.load %arg5[%c0_72, %c1_73, %c0_74] : memref<1x2x128xf32, #tpu.memory_space<vmem>>, vector<1x1x128xf32>
    %98 = vector.shape_cast %97 : vector<1x1x128xf32> to vector<1x128xf32>
    %99 = arith.mulf %85, %85 : vector<64x128xf32>
    %cst_75 = arith.constant dense<0.000000e+00> : vector<128xf32>
    %100 = vector.multi_reduction <add>, %99, %cst_75 [0] : vector<64x128xf32> to vector<128xf32>
    %101 = vector.shape_cast %100 : vector<128xf32> to vector<1x128xf32>
    %102 = arith.addf %98, %101 : vector<1x128xf32>
    %c0_76 = arith.constant 0 : index
    %c1_77 = arith.constant 1 : index
    %c0_78 = arith.constant 0 : index
    %103 = vector.load %arg5[%c0_76, %c1_77, %c0_78] : memref<1x2x128xf32, #tpu.memory_space<vmem>>, vector<1x1x128xf32>
    %104 = vector.shape_cast %103 : vector<1x1x128xf32> to vector<1x128xf32>
    %105 = vector.shape_cast %102 : vector<1x128xf32> to vector<1x1x128xf32>
    tpu.vector_store %arg5[%c0_76, %c1_77, %c0_78], %105 {strides = array<i32>} : memref<1x2x128xf32, #tpu.memory_space<vmem>>, vector<1x1x128xf32>,
    return
  }
  func.func @transform_0(%arg0: i32, %arg1: i32) -> (i32, i32, i32, i32) {
    %c0_i32 = arith.constant 0 : i32
    %c0_i32_0 = arith.constant 0 : i32
    %c0_i32_1 = arith.constant 0 : i32
    %c0_i32_2 = arith.constant 0 : i32
    return %arg0, %c0_i32, %c0_i32_0, %c0_i32_1 : i32, i32, i32, i32
  }
  func.func @transform_1(%arg0: i32, %arg1: i32) -> (i32, i32, i32) {
    %c0_i32 = arith.constant 0 : i32
    %c0_i32_0 = arith.constant 0 : i32
    %c0_i32_1 = arith.constant 0 : i32
    %c0_i32_2 = arith.constant 0 : i32
    return %c0_i32, %c0_i32_0, %c0_i32_1 : i32, i32, i32
  }
  func.func @transform_2(%arg0: i32, %arg1: i32) -> (i32, i32, i32) {
    %c1_i32 = arith.constant 1 : i32
    %0 = arith.muli %arg0, %c1_i32 : i32
    %1 = arith.addi %0, %arg1 : i32
    %c0_i32 = arith.constant 0 : i32
    %c0_i32_0 = arith.constant 0 : i32
    %c0_i32_1 = arith.constant 0 : i32
    return %1, %c0_i32, %c0_i32_0 : i32, i32, i32
  }
  func.func @transform_3(%arg0: i32, %arg1: i32) -> (i32, i32, i32) {
    %c0_i32 = arith.constant 0 : i32
    %c0_i32_0 = arith.constant 0 : i32
    %c0_i32_1 = arith.constant 0 : i32
    return %arg0, %c0_i32, %c0_i32_0 : i32, i32, i32
  }
}

</mosaic_0001>

<llo_original>
// kernel: resnet_layer.8
$region0: #{resnet_layer.8}
  #allocation0 [shape = 'u32[]', space=smem, size = 0x4, offset = 0x4, fixed_abs, tag = 'smem constant byte address 0x4 - core index']
  #allocation1 [shape = 'u32[72,128]{1,0:T(1,128)}', space=vmem, size = 0x9000, scoped, tag = 'internal scratch']
  %s0 = inlined_call_operand.vmem [shape: bf16[16,8,128], index: 0, kind: input, shape index: {}]
  %s1 = inlined_call_operand.vmem [shape: f32[1,1,128], index: 1, kind: input, shape index: {}]
  %s2 = inlined_call_operand.vmem [shape: f32[1,1,128], index: 2, kind: input, shape index: {}]
  %s3 = inlined_call_operand.vmem [shape: bf16[16,8,128], index: 3, kind: input, shape index: {}]
  %s4 = inlined_call_operand.vmem [shape: f32[1,1,128], index: 4, kind: input, shape index: {}]
  %s5 = inlined_call_operand.vmem [shape: f32[1,1,128], index: 5, kind: input, shape index: {}]
  %s6 = inlined_call_operand.vmem [shape: bf16[16,8,128], index: 6, kind: output, shape index: {}]
  %s7 = sld [smem:[#allocation0]]
  $region34: #{resnet_layer.8} parent=0
    _
  %s9 = ssub.s32 1, %s7
  %s10 = scalar_select 0, %s9, %s7
  // Predicated region
  $region2: #{resnet_layer.8} parent=0 // pred_check
    _
  $region3: #{resnet_layer.8} parent=0 // pred_check_branch
    %12 = sbr.rel (0) target = $region5
  $region4: #{resnet_layer.8} parent=0 // pred_region
    _
  $region5: #{resnet_layer.8} parent=0 // pred_fallthru
    _
  // Predicated region
  $region6: #{resnet_layer.8} parent=0 // pred_check
    _
  $region7: #{resnet_layer.8} parent=0 // pred_check_branch
    %14 = sbr.rel (0) target = $region9
  $region8: #{resnet_layer.8} parent=0 // pred_region
    _
  $region9: #{resnet_layer.8} parent=0 // pred_fallthru
    _
  // Predicated region
  $region10: #{resnet_layer.8} parent=0 // pred_check
    _
  $region11: #{resnet_layer.8} parent=0 // pred_check_branch
    %16 = sbr.rel (0) target = $region13
  $region12: #{resnet_layer.8} parent=0 // pred_region
    _
  $region13: #{resnet_layer.8} parent=0 // pred_fallthru
    _
  // Predicated region
  $region14: #{resnet_layer.8} parent=0 // pred_check
    _
  $region15: #{resnet_layer.8} parent=0 // pred_check_branch
    %18 = sbr.rel (0) target = $region17
  $region16: #{resnet_layer.8} parent=0 // pred_region
    _
  $region17: #{resnet_layer.8} parent=0 // pred_fallthru
    _
  // Predicated region
  $region18: #{resnet_layer.8} parent=0 // pred_check
    _
  $region19: #{resnet_layer.8} parent=0 // pred_check_branch
    %20 = sbr.rel (0) target = $region21
  $region20: #{resnet_layer.8} parent=0 // pred_region
    _
  $region21: #{resnet_layer.8} parent=0 // pred_fallthru
    _
  // Predicated region
  $region22: #{resnet_layer.8} parent=0 // pred_check
    _
  $region23: #{resnet_layer.8} parent=0 // pred_check_branch
    %22 = sbr.rel (0) target = $region25
  $region24: #{resnet_layer.8} parent=0 // pred_region
    _
  $region25: #{resnet_layer.8} parent=0 // pred_fallthru
    _
  %v23 = vld [vmem:[%s0] sm:$0xf]
  %v24 = vld [vmem:[%s0 + $0x4] sm:$0xf]
  %v25 = vld [vmem:[%s0 + $0x8] sm:$0xf]
  %v26 = vld [vmem:[%s0 + $0xc] sm:$0xf]
  %v27 = vld [vmem:[%s0 + $0x10] sm:$0xf]
  %v28 = vld [vmem:[%s0 + $0x14] sm:$0xf]
  %v29 = vld [vmem:[%s0 + $0x18] sm:$0xf]
  %v30 = vld [vmem:[%s0 + $0x1c] sm:$0xf]
  %v31 = vld [vmem:[%s0 + $0x20] sm:$0xf]
  %v32 = vld [vmem:[%s0 + $0x24] sm:$0xf]
  %v33 = vld [vmem:[%s0 + $0x28] sm:$0xf]
  %v34 = vld [vmem:[%s0 + $0x2c] sm:$0xf]
  %v35 = vld [vmem:[%s0 + $0x30] sm:$0xf]
  %v36 = vld [vmem:[%s0 + $0x34] sm:$0xf]
  %v37 = vld [vmem:[%s0 + $0x38] sm:$0xf]
  %v38 = vld [vmem:[%s0 + $0x3c] sm:$0xf]
  %v39 = vunpack.c.l.bf16 %v23
  %v40 = vunpack.c.l.bf16 %v24
  %v41 = vunpack.c.l.bf16 %v25
  %v42 = vunpack.c.l.bf16 %v26
  %v43 = vunpack.c.l.bf16 %v27
  %v44 = vunpack.c.l.bf16 %v28
  %v45 = vunpack.c.l.bf16 %v29
  %v46 = vunpack.c.l.bf16 %v30
  %v47 = vunpack.c.l.bf16 %v31
  %v48 = vunpack.c.l.bf16 %v32
  %v49 = vunpack.c.l.bf16 %v33
  %v50 = vunpack.c.l.bf16 %v34
  %v51 = vunpack.c.l.bf16 %v35
  %v52 = vunpack.c.l.bf16 %v36
  %v53 = vunpack.c.l.bf16 %v37
  %v54 = vunpack.c.l.bf16 %v38
  %v55 = vld [vmem:[%s1] sm:$0x1]
  %v57 = vperm.slane %v55, 0
  %v59 = vmul.f32 %v39, %v57
  %v60 = vmul.f32 %v40, %v57
  %v61 = vmul.f32 %v41, %v57
  %v62 = vmul.f32 %v42, %v57
  %v63 = vmul.f32 %v43, %v57
  %v64 = vmul.f32 %v44, %v57
  %v65 = vmul.f32 %v45, %v57
  %v66 = vmul.f32 %v46, %v57
  %v67 = vmul.f32 %v47, %v57
  %v68 = vmul.f32 %v48, %v57
  %v69 = vmul.f32 %v49, %v57
  %v70 = vmul.f32 %v50, %v57
  %v71 = vmul.f32 %v51, %v57
  %v72 = vmul.f32 %v52, %v57
  %v73 = vmul.f32 %v53, %v57
  %v74 = vmul.f32 %v54, %v57
  %v75 = vld [vmem:[%s2] sm:$0x1]
  %v77 = vperm.slane %v75, 0
  %v79 = vadd.f32 %v59, %v77
  %v80 = vadd.f32 %v60, %v77
  %v81 = vadd.f32 %v61, %v77
  %v82 = vadd.f32 %v62, %v77
  %v83 = vadd.f32 %v63, %v77
  %v84 = vadd.f32 %v64, %v77
  %v85 = vadd.f32 %v65, %v77
  %v86 = vadd.f32 %v66, %v77
  %v87 = vadd.f32 %v67, %v77
  %v88 = vadd.f32 %v68, %v77
  %v89 = vadd.f32 %v69, %v77
  %v90 = vadd.f32 %v70, %v77
  %v91 = vadd.f32 %v71, %v77
  %v92 = vadd.f32 %v72, %v77
  %v93 = vadd.f32 %v73, %v77
  %v94 = vadd.f32 %v74, %v77
  %v95 = vld [vmem:[%s3] sm:$0xf]
  %v96 = vld [vmem:[%s3 + $0x4] sm:$0xf]
  %v97 = vld [vmem:[%s3 + $0x8] sm:$0xf]
  %v98 = vld [vmem:[%s3 + $0xc] sm:$0xf]
  %v99 = vld [vmem:[%s3 + $0x10] sm:$0xf]
  %v100 = vld [vmem:[%s3 + $0x14] sm:$0xf]
  %v101 = vld [vmem:[%s3 + $0x18] sm:$0xf]
  %v102 = vld [vmem:[%s3 + $0x1c] sm:$0xf]
  %v103 = vld [vmem:[%s3 + $0x20] sm:$0xf]
  %v104 = vld [vmem:[%s3 + $0x24] sm:$0xf]
  %v105 = vld [vmem:[%s3 + $0x28] sm:$0xf]
  %v106 = vld [vmem:[%s3 + $0x2c] sm:$0xf]
  %v107 = vld [vmem:[%s3 + $0x30] sm:$0xf]
  %v108 = vld [vmem:[%s3 + $0x34] sm:$0xf]
  %v109 = vld [vmem:[%s3 + $0x38] sm:$0xf]
  %v110 = vld [vmem:[%s3 + $0x3c] sm:$0xf]
  %v111 = vunpack.c.l.bf16 %v95
  %v112 = vunpack.c.l.bf16 %v96
  %v113 = vunpack.c.l.bf16 %v97
  %v114 = vunpack.c.l.bf16 %v98
  %v115 = vunpack.c.l.bf16 %v99
  %v116 = vunpack.c.l.bf16 %v100
  %v117 = vunpack.c.l.bf16 %v101
  %v118 = vunpack.c.l.bf16 %v102
  %v119 = vunpack.c.l.bf16 %v103
  %v120 = vunpack.c.l.bf16 %v104
  %v121 = vunpack.c.l.bf16 %v105
  %v122 = vunpack.c.l.bf16 %v106
  %v123 = vunpack.c.l.bf16 %v107
  %v124 = vunpack.c.l.bf16 %v108
  %v125 = vunpack.c.l.bf16 %v109
  %v126 = vunpack.c.l.bf16 %v110
  %v127 = vld [vmem:[%s4] sm:$0x1]
  %v129 = vperm.slane %v127, 0
  %v131 = vmul.f32 %v111, %v129
  %v132 = vmul.f32 %v112, %v129
  %v133 = vmul.f32 %v113, %v129
  %v134 = vmul.f32 %v114, %v129
  %v135 = vmul.f32 %v115, %v129
  %v136 = vmul.f32 %v116, %v129
  %v137 = vmul.f32 %v117, %v129
  %v138 = vmul.f32 %v118, %v129
  %v139 = vmul.f32 %v119, %v129
  %v140 = vmul.f32 %v120, %v129
  %v141 = vmul.f32 %v121, %v129
  %v142 = vmul.f32 %v122, %v129
  %v143 = vmul.f32 %v123, %v129
  %v144 = vmul.f32 %v124, %v129
  %v145 = vmul.f32 %v125, %v129
  %v146 = vmul.f32 %v126, %v129
  %v147 = vadd.f32 %v79, %v131
  %v148 = vadd.f32 %v80, %v132
  %v149 = vadd.f32 %v81, %v133
  %v150 = vadd.f32 %v82, %v134
  %v151 = vadd.f32 %v83, %v135
  %v152 = vadd.f32 %v84, %v136
  %v153 = vadd.f32 %v85, %v137
  %v154 = vadd.f32 %v86, %v138
  %v155 = vadd.f32 %v87, %v139
  %v156 = vadd.f32 %v88, %v140
  %v157 = vadd.f32 %v89, %v141
  %v158 = vadd.f32 %v90, %v142
  %v159 = vadd.f32 %v91, %v143
  %v160 = vadd.f32 %v92, %v144
  %v161 = vadd.f32 %v93, %v145
  %v162 = vadd.f32 %v94, %v146
  %v163 = vld [vmem:[%s5] sm:$0x1]
  %v165 = vperm.slane %v163, 0
  %v167 = vadd.f32 %v147, %v165
  %v168 = vadd.f32 %v148, %v165
  %v169 = vadd.f32 %v149, %v165
  %v170 = vadd.f32 %v150, %v165
  %v171 = vadd.f32 %v151, %v165
  %v172 = vadd.f32 %v152, %v165
  %v173 = vadd.f32 %v153, %v165
  %v174 = vadd.f32 %v154, %v165
  %v175 = vadd.f32 %v155, %v165
  %v176 = vadd.f32 %v156, %v165
  %v177 = vadd.f32 %v157, %v165
  %v178 = vadd.f32 %v158, %v165
  %v179 = vadd.f32 %v159, %v165
  %v180 = vadd.f32 %v160, %v165
  %v181 = vadd.f32 %v161, %v165
  %v182 = vadd.f32 %v162, %v165
  %vm183 = vcmp.ge.f32.partialorder %v167, 0.0
  %vm184 = vcmp.ge.f32.partialorder %v168, 0.0
  %vm185 = vcmp.ge.f32.partialorder %v169, 0.0
  %vm186 = vcmp.ge.f32.partialorder %v170, 0.0
  %vm187 = vcmp.ge.f32.partialorder %v171, 0.0
  %vm188 = vcmp.ge.f32.partialorder %v172, 0.0
  %vm189 = vcmp.ge.f32.partialorder %v173, 0.0
  %vm190 = vcmp.ge.f32.partialorder %v174, 0.0
  %vm191 = vcmp.ge.f32.partialorder %v175, 0.0
  %vm192 = vcmp.ge.f32.partialorder %v176, 0.0
  %vm193 = vcmp.ge.f32.partialorder %v177, 0.0
  %vm194 = vcmp.ge.f32.partialorder %v178, 0.0
  %vm195 = vcmp.ge.f32.partialorder %v179, 0.0
  %vm196 = vcmp.ge.f32.partialorder %v180, 0.0
  %vm197 = vcmp.ge.f32.partialorder %v181, 0.0
  %vm198 = vcmp.ge.f32.partialorder %v182, 0.0
  %v199 = vmul.f32 %v167, 0.01
  %v200 = vmul.f32 %v168, 0.01
  %v201 = vmul.f32 %v169, 0.01
  %v202 = vmul.f32 %v170, 0.01
  %v203 = vmul.f32 %v171, 0.01
  %v204 = vmul.f32 %v172, 0.01
  %v205 = vmul.f32 %v173, 0.01
  %v206 = vmul.f32 %v174, 0.01
  %v207 = vmul.f32 %v175, 0.01
  %v208 = vmul.f32 %v176, 0.01
  %v209 = vmul.f32 %v177, 0.01
  %v210 = vmul.f32 %v178, 0.01
  %v211 = vmul.f32 %v179, 0.01
  %v212 = vmul.f32 %v180, 0.01
  %v213 = vmul.f32 %v181, 0.01
  %v214 = vmul.f32 %v182, 0.01
  %v215 = vsel %vm183, %v167, %v199
  %v216 = vsel %vm184, %v168, %v200
  %v217 = vsel %vm185, %v169, %v201
  %v218 = vsel %vm186, %v170, %v202
  %v219 = vsel %vm187, %v171, %v203
  %v220 = vsel %vm188, %v172, %v204
  %v221 = vsel %vm189, %v173, %v205
  %v222 = vsel %vm190, %v174, %v206
  %v223 = vsel %vm191, %v175, %v207
  %v224 = vsel %vm192, %v176, %v208
  %v225 = vsel %vm193, %v177, %v209
  %v226 = vsel %vm194, %v178, %v210
  %v227 = vsel %vm195, %v179, %v211
  %v228 = vsel %vm196, %v180, %v212
  %v229 = vsel %vm197, %v181, %v213
  %v230 = vsel %vm198, %v182, %v214
  %v231 = vpack.c.bf16 %v215, %v215
  %v232 = vpack.c.bf16 %v216, %v216
  %v233 = vpack.c.bf16 %v217, %v217
  %v234 = vpack.c.bf16 %v218, %v218
  %v235 = vpack.c.bf16 %v219, %v219
  %v236 = vpack.c.bf16 %v220, %v220
  %v237 = vpack.c.bf16 %v221, %v221
  %v238 = vpack.c.bf16 %v222, %v222
  %v239 = vpack.c.bf16 %v223, %v223
  %v240 = vpack.c.bf16 %v224, %v224
  %v241 = vpack.c.bf16 %v225, %v225
  %v242 = vpack.c.bf16 %v226, %v226
  %v243 = vpack.c.bf16 %v227, %v227
  %v244 = vpack.c.bf16 %v228, %v228
  %v245 = vpack.c.bf16 %v229, %v229
  %v246 = vpack.c.bf16 %v230, %v230
  %247 = vst [vmem:[%s6] sm:$0xf] %v231
  %248 = vst [vmem:[%s6 + $0x4] sm:$0xf] %v232
  %249 = vst [vmem:[%s6 + $0x8] sm:$0xf] %v233
  %250 = vst [vmem:[%s6 + $0xc] sm:$0xf] %v234
  %251 = vst [vmem:[%s6 + $0x10] sm:$0xf] %v235
  %252 = vst [vmem:[%s6 + $0x14] sm:$0xf] %v236
  %253 = vst [vmem:[%s6 + $0x18] sm:$0xf] %v237
  %254 = vst [vmem:[%s6 + $0x1c] sm:$0xf] %v238
  %255 = vst [vmem:[%s6 + $0x20] sm:$0xf] %v239
  %256 = vst [vmem:[%s6 + $0x24] sm:$0xf] %v240
  %257 = vst [vmem:[%s6 + $0x28] sm:$0xf] %v241
  %258 = vst [vmem:[%s6 + $0x2c] sm:$0xf] %v242
  %259 = vst [vmem:[%s6 + $0x30] sm:$0xf] %v243
  %260 = vst [vmem:[%s6 + $0x34] sm:$0xf] %v244
  %261 = vst [vmem:[%s6 + $0x38] sm:$0xf] %v245
  %262 = vst [vmem:[%s6 + $0x3c] sm:$0xf] %v246
  // Predicated region
  $region26: #{resnet_layer.8} parent=0 // pred_check
    _
  $region27: #{resnet_layer.8} parent=0 // pred_check_branch
    %264 = sbr.rel (0) target = $region29
  $region28: #{resnet_layer.8} parent=0 // pred_region
    _
  $region29: #{resnet_layer.8} parent=0 // pred_fallthru
    _
  // Predicated region
  $region30: #{resnet_layer.8} parent=0 // pred_check
    _
  $region31: #{resnet_layer.8} parent=0 // pred_check_branch
    %266 = sbr.rel (0) target = $region33
  $region32: #{resnet_layer.8} parent=0 // pred_region
    _
  $region33: #{resnet_layer.8} parent=0 // pred_fallthru
    _

// kernel: resnet_layer.6
$region0: #{resnet_layer.6}
  #allocation0 [shape = 'u32[]', space=smem, size = 0x4, offset = 0x4, fixed_abs, tag = 'smem constant byte address 0x4 - core index']
  #allocation1 [shape = 'u32[72,128]{1,0:T(1,128)}', space=vmem, size = 0x9000, scoped, tag = 'internal scratch']
  %s0 = inlined_call_operand.vmem [shape: bf16[8,9,9,4], index: 0, kind: input, shape index: {}]
  %s1 = inlined_call_operand.vmem [shape: bf16[9,4,128], index: 1, kind: input, shape index: {}]
  %s2 = inlined_call_operand.vmem [shape: bf16[4,128], index: 2, kind: input, shape index: {}]
  %s3 = inlined_call_operand.vmem [shape: bf16[16,8,128], index: 3, kind: output, shape index: {0}]
  %s4 = inlined_call_operand.vmem [shape: bf16[16,8,128], index: 4, kind: output, shape index: {1}]
  %s5 = inlined_call_operand.vmem [shape: f32[2,2,128], index: 5, kind: output, shape index: {2}]
  %s6 = inlined_call_operand.vmem [shape: f32[2,2,128], index: 6, kind: output, shape index: {3}]
  %7 = xla_tuple %s3, %s4, %s5, %s6
  %s8 = sld [smem:[#allocation0]]
  $region73: #{resnet_layer.6} parent=0
    _
  %s10 = ssub.s32 1, %s8
  %s11 = scalar_select 0, %s10, %s8
  loop: start=0, step=1, limit=4
  $region2: #{resnet_layer.6} parent=0 // loop_pre_header
    _
  $region3: #{resnet_layer.6} parent=0 // loop_header
    %s13 = sphi 0, %s17
    %p14 = scmp.ge.s32.totalorder %s13, 4
    %s20 = sphi 0, %s32
    %s21 = sphi 0, %s28
    %s22 = sphi 0, %s20
    %s23 = sphi 0, %s21
    %s24 = sphi 0, %s22
    %s25 = sphi 0, %s23
    %s35 = sphi 0, %s37
    %s38 = sphi 0, %s35
    %s39 = sphi 0, %s38
    %s55 = sphi 0, %s39
    %s59 = sphi 0, %s59
    %s61 = sphi 0, %s59
    %s62 = sphi 0, %s61
    %s76 = sphi 0, %s62
    %s80 = sphi 0, %s80
    %s82 = sphi 0, %s80
    %s83 = sphi 0, %s82
    %s97 = sphi 0, %s83
    %s105 = sphi 0, %s107
    %s108 = sphi 0, %s105
    %s109 = sphi 0, %s108
    %s125 = sphi 0, %s109
    %s133 = sphi 0, %s135
    %s136 = sphi 0, %s133
    %s137 = sphi 0, %s136
    %s153 = sphi 0, %s137
    %s159 = sphi 0, %s161
    %s162 = sphi 0, %s159
    %s163 = sphi 0, %s162
    %s179 = sphi 0, %s163
    %s185 = sphi 0, %s187
    %s188 = sphi 0, %s185
    %s189 = sphi 0, %s188
    %s205 = sphi 0, %s189
  $region4: #{resnet_layer.6} parent=0 // loop_header_branch
    %16 = sbr.rel (%p14) target = $region8
  $region5: #{resnet_layer.6} parent=0 // loop_body
    %s18 = ssub.s32 %s13, 1
    %s19 = ssub.s32 %s13, 2
    %s26 = sadd.s32 1, %s21
    %p27 = scmp.ge.s32.totalorder %s26, 1
    %s28 = scalar_select %p27, 0, %s26
    %s29 = sadd.s32 1, %s20
    %s30 = scalar_select %p27, %s29, %s20
    %p31 = scmp.ge.s32.totalorder %s30, 2
    %s32 = scalar_select %p31, 0, %s30
    %s33 = ssub.s32 %s20, %s32
    %p34 = scmp.eq.s32.totalorder %s33, 0
    %s36 = sadd.s32 %s35, 1
    %s37 = scalar_select %p34, %s35, %s36
    %p40 = pneg %p34
    %p41 = scmp.eq.s32.totalorder %s13, 1
    %p42 = por %p40, %p41
    %p43 = scmp.ne.s32.totalorder %s35, %s38
    %p44 = scmp.eq.s32.totalorder %s13, 0
    %p45 = por %p43, %p44
    %p46 = scmp.ne.s32.totalorder %s35, %s38
    %p47 = scmp.eq.s32.totalorder %s18, 1
    %p48 = por %p46, %p47
    %p49 = scmp.ne.s32.totalorder %s38, %s39
    %p50 = scmp.eq.s32.totalorder %s18, 0
    %p51 = por %p49, %p50
    %p52 = scmp.ne.s32.totalorder %s38, %s39
    %p53 = scmp.eq.s32.totalorder %s19, 1
    %p54 = por %p52, %p53
    %p56 = scmp.ne.s32.totalorder %s39, %s55
    %p57 = scmp.eq.s32.totalorder %s19, 0
    %p58 = por %p56, %p57
    %s60 = sadd.s32 %s59, 1
    %p63 = scmp.eq.s32.totalorder %s13, 1
    %p64 = scmp.ne.s32.totalorder %s59, %s61
    %p65 = scmp.eq.s32.totalorder %s13, 0
    %p66 = por %p64, %p65
    %p67 = scmp.ne.s32.totalorder %s59, %s61
    %p68 = scmp.eq.s32.totalorder %s18, 1
    %p69 = por %p67, %p68
    %p70 = scmp.ne.s32.totalorder %s61, %s62
    %p71 = scmp.eq.s32.totalorder %s18, 0
    %p72 = por %p70, %p71
    %p73 = scmp.ne.s32.totalorder %s61, %s62
    %p74 = scmp.eq.s32.totalorder %s19, 1
    %p75 = por %p73, %p74
    %p77 = scmp.ne.s32.totalorder %s62, %s76
    %p78 = scmp.eq.s32.totalorder %s19, 0
    %p79 = por %p77, %p78
    %s81 = sadd.s32 %s80, 1
    %p84 = scmp.eq.s32.totalorder %s13, 1
    %p85 = scmp.ne.s32.totalorder %s80, %s82
    %p86 = scmp.eq.s32.totalorder %s13, 0
    %p87 = por %p85, %p86
    %p88 = scmp.ne.s32.totalorder %s80, %s82
    %p89 = scmp.eq.s32.totalorder %s18, 1
    %p90 = por %p88, %p89
    %p91 = scmp.ne.s32.totalorder %s82, %s83
    %p92 = scmp.eq.s32.totalorder %s18, 0
    %p93 = por %p91, %p92
    %p94 = scmp.ne.s32.totalorder %s82, %s83
    %p95 = scmp.eq.s32.totalorder %s19, 1
    %p96 = por %p94, %p95
    %p98 = scmp.ne.s32.totalorder %s83, %s97
    %p99 = scmp.eq.s32.totalorder %s19, 0
    %p100 = por %p98, %p99
    %s101 = sadd.s32 %s20, %s21
    %s102 = sadd.s32 %s32, %s28
    %s103 = ssub.s32 %s101, %s102
    %p104 = scmp.eq.s32.totalorder %s103, 0
    %s106 = sadd.s32 %s105, 1
    %s107 = scalar_select %p104, %s105, %s106
    %p110 = pneg %p104
    %p111 = scmp.eq.s32.totalorder %s13, 1
    %p112 = por %p110, %p111
    %p113 = scmp.ne.s32.totalorder %s105, %s108
    %p114 = scmp.eq.s32.totalorder %s13, 0
    %p115 = por %p113, %p114
    %p116 = scmp.ne.s32.totalorder %s105, %s108
    %p117 = scmp.eq.s32.totalorder %s18, 1
    %p118 = por %p116, %p117
    %p119 = scmp.ne.s32.totalorder %s108, %s109
    %p120 = scmp.eq.s32.totalorder %s18, 0
    %p121 = por %p119, %p120
    %p122 = scmp.ne.s32.totalorder %s108, %s109
    %p123 = scmp.eq.s32.totalorder %s19, 1
    %p124 = por %p122, %p123
    %p126 = scmp.ne.s32.totalorder %s109, %s125
    %p127 = scmp.eq.s32.totalorder %s19, 0
    %p128 = por %p126, %p127
    %s129 = sadd.s32 %s20, %s21
    %s130 = sadd.s32 %s32, %s28
    %s131 = ssub.s32 %s129, %s130
    %p132 = scmp.eq.s32.totalorder %s131, 0
    %s134 = sadd.s32 %s133, 1
    %s135 = scalar_select %p132, %s133, %s134
    %p138 = pneg %p132
    %p139 = scmp.eq.s32.totalorder %s13, 1
    %p140 = por %p138, %p139
    %p141 = scmp.ne.s32.totalorder %s133, %s136
    %p142 = scmp.eq.s32.totalorder %s13, 0
    %p143 = por %p141, %p142
    %p144 = scmp.ne.s32.totalorder %s133, %s136
    %p145 = scmp.eq.s32.totalorder %s18, 1
    %p146 = por %p144, %p145
    %p147 = scmp.ne.s32.totalorder %s136, %s137
    %p148 = scmp.eq.s32.totalorder %s18, 0
    %p149 = por %p147, %p148
    %p150 = scmp.ne.s32.totalorder %s136, %s137
    %p151 = scmp.eq.s32.totalorder %s19, 1
    %p152 = por %p150, %p151
    %p154 = scmp.ne.s32.totalorder %s137, %s153
    %p155 = scmp.eq.s32.totalorder %s19, 0
    %p156 = por %p154, %p155
    %s157 = ssub.s32 %s20, %s32
    %p158 = scmp.eq.s32.totalorder %s157, 0
    %s160 = sadd.s32 %s159, 1
    %s161 = scalar_select %p158, %s159, %s160
    %p164 = pneg %p158
    %p165 = scmp.eq.s32.totalorder %s13, 1
    %p166 = por %p164, %p165
    %p167 = scmp.ne.s32.totalorder %s159, %s162
    %p168 = scmp.eq.s32.totalorder %s13, 0
    %p169 = por %p167, %p168
    %p170 = scmp.ne.s32.totalorder %s159, %s162
    %p171 = scmp.eq.s32.totalorder %s18, 1
    %p172 = por %p170, %p171
    %p173 = scmp.ne.s32.totalorder %s162, %s163
    %p174 = scmp.eq.s32.totalorder %s18, 0
    %p175 = por %p173, %p174
    %p176 = scmp.ne.s32.totalorder %s162, %s163
    %p177 = scmp.eq.s32.totalorder %s19, 1
    %p178 = por %p176, %p177
    %p180 = scmp.ne.s32.totalorder %s163, %s179
    %p181 = scmp.eq.s32.totalorder %s19, 0
    %p182 = por %p180, %p181
    %s183 = ssub.s32 %s20, %s32
    %p184 = scmp.eq.s32.totalorder %s183, 0
    %s186 = sadd.s32 %s185, 1
    %s187 = scalar_select %p184, %s185, %s186
    %p190 = pneg %p184
    %p191 = scmp.eq.s32.totalorder %s13, 1
    %p192 = por %p190, %p191
    %p193 = scmp.ne.s32.totalorder %s185, %s188
    %p194 = scmp.eq.s32.totalorder %s13, 0
    %p195 = por %p193, %p194
    %p196 = scmp.ne.s32.totalorder %s185, %s188
    %p197 = scmp.eq.s32.totalorder %s18, 1
    %p198 = por %p196, %p197
    %p199 = scmp.ne.s32.totalorder %s188, %s189
    %p200 = scmp.eq.s32.totalorder %s18, 0
    %p201 = por %p199, %p200
    %p202 = scmp.ne.s32.totalorder %s188, %s189
    %p203 = scmp.eq.s32.totalorder %s19, 1
    %p204 = por %p202, %p203
    %p206 = scmp.ne.s32.totalorder %s189, %s205
    %p207 = scmp.eq.s32.totalorder %s19, 0
    %p208 = por %p206, %p207
    %p209 = scmp.le.s32.totalorder 1, %s13
    %p210 = scmp.lt.s32.totalorder %s13, 3
    %p211 = pnand %p209, %p210
    %p212 = pneg %p211
    // Predicated region
    $region9: #{resnet_layer.6} parent=5 // pred_check
      _
    $region10: #{resnet_layer.6} parent=5 // pred_check_branch
      %214 = sbr.rel (%p211) target = $region12
    $region11: #{resnet_layer.6} parent=5 // pred_region
      %s215 = ssub.s32 %s13, 1
      // Predicated region
      $region13: #{resnet_layer.6} parent=11 // pred_check
        %p216 = pneg %p72
      $region14: #{resnet_layer.6} parent=11 // pred_check_branch
        %218 = sbr.rel (%p216) target = $region16
      $region15: #{resnet_layer.6} parent=11 // pred_region
        _
      $region16: #{resnet_layer.6} parent=11 // pred_fallthru
        _
      // Predicated region
      $region17: #{resnet_layer.6} parent=11 // pred_check
        %p219 = pneg %p93
      $region18: #{resnet_layer.6} parent=11 // pred_check_branch
        %221 = sbr.rel (%p219) target = $region20
      $region19: #{resnet_layer.6} parent=11 // pred_region
        _
      $region20: #{resnet_layer.6} parent=11 // pred_fallthru
        _
    $region12: #{resnet_layer.6} parent=5 // pred_fallthru
      _
    %p222 = scmp.lt.s32.totalorder %s13, 2
    // Predicated region
    $region21: #{resnet_layer.6} parent=5 // pred_check
      %p223 = pneg %p222
    $region22: #{resnet_layer.6} parent=5 // pred_check_branch
      %225 = sbr.rel (%p223) target = $region24
    $region23: #{resnet_layer.6} parent=5 // pred_region
      // Predicated region
      $region25: #{resnet_layer.6} parent=23 // pred_check
        %p226 = pneg %p45
      $region26: #{resnet_layer.6} parent=23 // pred_check_branch
        %228 = sbr.rel (%p226) target = $region28
      $region27: #{resnet_layer.6} parent=23 // pred_region
        %s229 = smul.u32 4, %s20
        %p230 = scmp.lt.s32.totalorder %s229, 7
        %s231 = scalar_select %p230, %s229, 7
        %s232 = smul.addr %s231, 18
        %s233 = smul.addr %s232, 4
        %s234 = scalar_lea.vmem %s0, %s233
        %s235 = smul.u32 4, %s20
      $region28: #{resnet_layer.6} parent=23 // pred_fallthru
        _
    $region24: #{resnet_layer.6} parent=5 // pred_fallthru
      _
    %p236 = scmp.le.s32.totalorder 1, %s13
    %p237 = scmp.lt.s32.totalorder %s13, 3
    %p238 = pnand %p236, %p237
    %p239 = pneg %p238
    // Predicated region
    $region29: #{resnet_layer.6} parent=5 // pred_check
      _
    $region30: #{resnet_layer.6} parent=5 // pred_check_branch
      %241 = sbr.rel (%p238) target = $region32
    $region31: #{resnet_layer.6} parent=5 // pred_region
      %s242 = ssub.s32 %s13, 1
      %s243 = smul.u32 4, %s22
      %p244 = scmp.lt.s32.totalorder %s243, 7
      %s245 = scalar_select %p244, %s243, 7
      %s246 = smul.addr %s245, 18
      %s247 = smul.addr %s246, 4
      %s248 = scalar_lea.vmem %s0, %s247
      %p249 = pneg %p51
      %p250 = pneg %p48
      %p251 = pneg %p72
      %p252 = pneg %p69
      %p253 = pneg %p93
      %p254 = pneg %p90
      %p255 = pneg %p121
      %p256 = pneg %p118
      %s257 = sadd.s32 %s22, %s23
      %s258 = smul.u32 8, %s257
      %p259 = scmp.lt.s32.totalorder %s258, 15
      %s260 = scalar_select %p259, %s258, 15
      %s261 = smul.addr %s260, 4
      %s262 = scalar_lea.vmem %s3, %s261
      %p263 = pneg %p149
      %p264 = pneg %p146
      %s265 = sadd.s32 %s22, %s23
      %s266 = smul.u32 8, %s265
      %p267 = scmp.lt.s32.totalorder %s266, 15
      %s268 = scalar_select %p267, %s266, 15
      %s269 = smul.addr %s268, 4
      %s270 = scalar_lea.vmem %s4, %s269
      %p271 = pneg %p175
      %p272 = pneg %p172
      %p273 = scmp.lt.s32.totalorder %s22, 1
      %s274 = scalar_select %p273, %s22, 1
      %s275 = smul.addr %s274, 2
      %s276 = scalar_lea.vmem %s5, %s275
      %p277 = pneg %p201
      %p278 = pneg %p198
      %p279 = scmp.lt.s32.totalorder %s22, 1
      %s280 = scalar_select %p279, %s22, 1
      %s281 = smul.addr %s280, 2
      %s282 = scalar_lea.vmem %s6, %s281
      %s283 = smul.u32 4, %s22
      %p284 = scmp.lt.s32.totalorder %s283, 7
      %s285 = scalar_select %p284, %s283, 7
      %s286 = smul.addr %s285, 18
      %s287 = smul.addr %s286, 4
      %s288 = scalar_lea.vmem %s0, %s287
      %s289 = smul.u32 4, %s22
      %s290 = sadd.s32 %s22, %s23
      %s291 = smul.u32 8, %s290
      %p292 = scmp.lt.s32.totalorder %s291, 15
      %s293 = scalar_select %p292, %s291, 15
      %s294 = smul.addr %s293, 4
      %s295 = scalar_lea.vmem %s3, %s294
      %s296 = sadd.s32 %s22, %s23
      %s297 = smul.u32 8, %s296
      %s298 = sadd.s32 %s22, %s23
      %s299 = smul.u32 8, %s298
      %p300 = scmp.lt.s32.totalorder %s299, 15
      %s301 = scalar_select %p300, %s299, 15
      %s302 = smul.addr %s301, 4
      %s303 = scalar_lea.vmem %s4, %s302
      %s304 = sadd.s32 %s22, %s23
      %s305 = smul.u32 8, %s304
      %p306 = scmp.lt.s32.totalorder %s22, 1
      %s307 = scalar_select %p306, %s22, 1
      %s308 = smul.addr %s307, 2
      %s309 = scalar_lea.vmem %s5, %s308
      %p310 = scmp.lt.s32.totalorder %s22, 1
      %s311 = scalar_select %p310, %s22, 1
      %s312 = smul.addr %s311, 2
      %s313 = scalar_lea.vmem %s6, %s312
      %s315 = smul.u32 %s23, 8
      %p316 = scmp.eq.s32.totalorder %s23, 0
      // Predicated region
      $region33: #{resnet_layer.6} parent=31 // pred_check
        %p317 = pneg %p316
      $region34: #{resnet_layer.6} parent=31 // pred_check_branch
        %319 = sbr.rel (%p317) target = $region36
      $region35: #{resnet_layer.6} parent=31 // pred_region
        %320 = vst [vmem:[%s309] sm:$0x3] 0.0
        %321 = vst [vmem:[%s313] sm:$0x3] 0.0
      $region36: #{resnet_layer.6} parent=31 // pred_fallthru
        _
      %s322 = smul.u32 %s315, 2
      %s323 = smul.addr %s322, 4
      %s324 = scalar_lea.vmem %s288, %s323
      %v325 = vld [vmem:[%s324] sm:$0xf]
      %v326 = vld [vmem:[%s324 + $0x8] sm:$0xf]
      %v327 = vld [vmem:[%s324 + $0x10] sm:$0xf]
      %v328 = vld [vmem:[%s324 + $0x18] sm:$0xf]
      %v329 = vld [vmem:[%s324 + $0x20] sm:$0xf]
      %v330 = vld [vmem:[%s324 + $0x28] sm:$0xf]
      %v331 = vld [vmem:[%s324 + $0x30] sm:$0xf]
      %v332 = vld [vmem:[%s324 + $0x38] sm:$0xf]
      %v333 = vld [vmem:[%s1] sm:$0x3]
      %s334 = sadd.s32 %s322, 18
      %s335 = smul.addr %s334, 4
      %s336 = scalar_lea.vmem %s288, %s335
      %v337 = vld [vmem:[%s336] sm:$0xf]
      %v338 = vld [vmem:[%s336 + $0x8] sm:$0xf]
      %v339 = vld [vmem:[%s336 + $0x10] sm:$0xf]
      %v340 = vld [vmem:[%s336 + $0x18] sm:$0xf]
      %v341 = vld [vmem:[%s336 + $0x20] sm:$0xf]
      %v342 = vld [vmem:[%s336 + $0x28] sm:$0xf]
      %v343 = vld [vmem:[%s336 + $0x30] sm:$0xf]
      %v344 = vld [vmem:[%s336 + $0x38] sm:$0xf]
      %s345 = scalar_lea.vmem %s1, 2
      %v346 = vld [vmem:[%s345] sm:$0x3]
      %v355 = vunpack.c.l.b16 %v337
      %v356 = vunpack.c.l.b16 %v338
      %v357 = vunpack.c.l.b16 %v339
      %v358 = vunpack.c.l.b16 %v340
      %v359 = vunpack.c.l.b16 %v341
      %v360 = vunpack.c.l.b16 %v342
      %v361 = vunpack.c.l.b16 %v343
      %v362 = vunpack.c.l.b16 %v344
      %v363 = vpack.c.b16 %v356, %v355
      %v364 = vpack.c.b16 %v358, %v357
      %v365 = vpack.c.b16 %v360, %v359
      %v366 = vpack.c.b16 %v362, %v361
      %vm367 = vcmask 31744
      %v369 = vsel %vm367, %v363, 0
      %v372 = vsel %vm367, %v364, 0
      %v375 = vsel %vm367, %v365, 0
      %v378 = vsel %vm367, %v366, 0
      %vm380 = vcmask 1041408
      %v382 = vsel %vm380, %v346, 0
      %384 = vmatpush.bf16.msra.mxu0 0
      %385 = vmatpush.bf16.msra.mxu0 0
      %386 = vmatpush.bf16.msra.mxu0 0
      %387 = vmatpush.bf16.msra.mxu0 0
      %388 = vmatpush.bf16.msra.mxu0 0
      %389 = vmatpush.bf16.msra.mxu0 0
      %390 = vmatpush.bf16.msra.mxu0 0
      %391 = vmatpush.bf16.msra.mxu0 %v382
      %392 = vmatmul.bf16.gmra.mxu0 %v369
      %v393 = vpop.f32.mrf.mxu0
      %v394 = vadd.f32 0.0, %v393
      %v395 = vpop.f32.mrf.mxu0
      %v396 = vadd.f32 0.0, %v395
      %397 = vmatmul.bf16.gmra.mxu0 %v372
      %v398 = vpop.f32.mrf.mxu0
      %v399 = vadd.f32 0.0, %v398
      %v400 = vpop.f32.mrf.mxu0
      %v401 = vadd.f32 0.0, %v400
      %402 = vmatmul.bf16.gmra.mxu0 %v375
      %v403 = vpop.f32.mrf.mxu0
      %v404 = vadd.f32 0.0, %v403
      %v405 = vpop.f32.mrf.mxu0
      %v406 = vadd.f32 0.0, %v405
      %407 = vmatmul.bf16.gmra.mxu0 %v378
      %v408 = vpop.f32.mrf.mxu0
      %v409 = vadd.f32 0.0, %v408
      %v410 = vpop.f32.mrf.mxu0
      %v411 = vadd.f32 0.0, %v410
      %412 = vdwg.mxu0
      %v421 = vunpack.c.l.b16 %v325
      %v422 = vunpack.c.l.b16 %v326
      %v423 = vunpack.c.l.b16 %v327
      %v424 = vunpack.c.l.b16 %v328
      %v425 = vunpack.c.l.b16 %v329
      %v426 = vunpack.c.l.b16 %v330
      %v427 = vunpack.c.l.b16 %v331
      %v428 = vunpack.c.l.b16 %v332
      %v429 = vpack.c.b16 %v422, %v421
      %v430 = vpack.c.b16 %v424, %v423
      %v431 = vpack.c.b16 %v426, %v425
      %v432 = vpack.c.b16 %v428, %v427
      %v434 = vsel %vm367, %v429, 0
      %v437 = vsel %vm367, %v430, 0
      %v440 = vsel %vm367, %v431, 0
      %v443 = vsel %vm367, %v432, 0
      %v446 = vsel %vm380, %v333, 0
      %448 = vmatpush.bf16.msra.mxu0 0
      %449 = vmatpush.bf16.msra.mxu0 0
      %450 = vmatpush.bf16.msra.mxu0 0
      %451 = vmatpush.bf16.msra.mxu0 0
      %452 = vmatpush.bf16.msra.mxu0 0
      %453 = vmatpush.bf16.msra.mxu0 0
      %454 = vmatpush.bf16.msra.mxu0 0
      %455 = vmatpush.bf16.msra.mxu0 %v446
      %456 = vmatmul.bf16.gmra.mxu0 %v434
      %v457 = vpop.f32.mrf.mxu0
      %v458 = vadd.f32 %v394, %v457
      %v459 = vpop.f32.mrf.mxu0
      %v460 = vadd.f32 %v396, %v459
      %461 = vmatmul.bf16.gmra.mxu0 %v437
      %v462 = vpop.f32.mrf.mxu0
      %v463 = vadd.f32 %v399, %v462
      %v464 = vpop.f32.mrf.mxu0
      %v465 = vadd.f32 %v401, %v464
      %466 = vmatmul.bf16.gmra.mxu0 %v440
      %v467 = vpop.f32.mrf.mxu0
      %v468 = vadd.f32 %v404, %v467
      %v469 = vpop.f32.mrf.mxu0
      %v470 = vadd.f32 %v406, %v469
      %471 = vmatmul.bf16.gmra.mxu0 %v443
      %v472 = vpop.f32.mrf.mxu0
      %v473 = vadd.f32 %v409, %v472
      %v474 = vpop.f32.mrf.mxu0
      %v475 = vadd.f32 %v411, %v474
      %476 = vdwg.mxu0
      %v477 = vld [vmem:[%s324] sm:$0xf]
      %v478 = vld [vmem:[%s324 + $0x4] sm:$0x1]
      %v479 = vld [vmem:[%s324 + $0x8] sm:$0xf]
      %v480 = vld [vmem:[%s324 + $0xc] sm:$0x1]
      %v481 = vld [vmem:[%s324 + $0x10] sm:$0xf]
      %v482 = vld [vmem:[%s324 + $0x14] sm:$0x1]
      %v483 = vld [vmem:[%s324 + $0x18] sm:$0xf]
      %v484 = vld [vmem:[%s324 + $0x1c] sm:$0x1]
      %v485 = vld [vmem:[%s324 + $0x20] sm:$0xf]
      %v486 = vld [vmem:[%s324 + $0x24] sm:$0x1]
      %v487 = vld [vmem:[%s324 + $0x28] sm:$0xf]
      %v488 = vld [vmem:[%s324 + $0x2c] sm:$0x1]
      %v489 = vld [vmem:[%s324 + $0x30] sm:$0xf]
      %v490 = vld [vmem:[%s324 + $0x34] sm:$0x1]
      %v491 = vld [vmem:[%s324 + $0x38] sm:$0xf]
      %v492 = vld [vmem:[%s324 + $0x3c] sm:$0x1]
      %vm493 = vsmask.f32 3328
      %vm494 = vsmask.f32 7440
      %vm495 = vmor %vm493, %vm494
      %v497 = vshrl.u32 %v477, 16
      %v499 = vrot.slane %v497, 4
      %v500 = vshll.u32 %v477, 16
      %v502 = vrot.slane %v500, 5
      %v503 = vor.u32 %v499, %v502
      %v504 = vrot.slane %v503, 4
      %v506 = vshll.u32 %v478, 16
      %v508 = vrot.slane %v506, 5
      %v509 = vsel %vm495, %v504, %v508
      %v511 = vshrl.u32 %v479, 16
      %v513 = vrot.slane %v511, 4
      %v514 = vshll.u32 %v479, 16
      %v516 = vrot.slane %v514, 5
      %v517 = vor.u32 %v513, %v516
      %v518 = vrot.slane %v517, 4
      %v520 = vshll.u32 %v480, 16
      %v522 = vrot.slane %v520, 5
      %v523 = vsel %vm495, %v518, %v522
      %v525 = vshrl.u32 %v481, 16
      %v527 = vrot.slane %v525, 4
      %v528 = vshll.u32 %v481, 16
      %v530 = vrot.slane %v528, 5
      %v531 = vor.u32 %v527, %v530
      %v532 = vrot.slane %v531, 4
      %v534 = vshll.u32 %v482, 16
      %v536 = vrot.slane %v534, 5
      %v537 = vsel %vm495, %v532, %v536
      %v539 = vshrl.u32 %v483, 16
      %v541 = vrot.slane %v539, 4
      %v542 = vshll.u32 %v483, 16
      %v544 = vrot.slane %v542, 5
      %v545 = vor.u32 %v541, %v544
      %v546 = vrot.slane %v545, 4
      %v548 = vshll.u32 %v484, 16
      %v550 = vrot.slane %v548, 5
      %v551 = vsel %vm495, %v546, %v550
      %v553 = vshrl.u32 %v485, 16
      %v555 = vrot.slane %v553, 4
      %v556 = vshll.u32 %v485, 16
      %v558 = vrot.slane %v556, 5
      %v559 = vor.u32 %v555, %v558
      %v560 = vrot.slane %v559, 4
      %v562 = vshll.u32 %v486, 16
      %v564 = vrot.slane %v562, 5
      %v565 = vsel %vm495, %v560, %v564
      %v567 = vshrl.u32 %v487, 16
      %v569 = vrot.slane %v567, 4
      %v570 = vshll.u32 %v487, 16
      %v572 = vrot.slane %v570, 5
      %v573 = vor.u32 %v569, %v572
      %v574 = vrot.slane %v573, 4
      %v576 = vshll.u32 %v488, 16
      %v578 = vrot.slane %v576, 5
      %v579 = vsel %vm495, %v574, %v578
      %v581 = vshrl.u32 %v489, 16
      %v583 = vrot.slane %v581, 4
      %v584 = vshll.u32 %v489, 16
      %v586 = vrot.slane %v584, 5
      %v587 = vor.u32 %v583, %v586
      %v588 = vrot.slane %v587, 4
      %v590 = vshll.u32 %v490, 16
      %v592 = vrot.slane %v590, 5
      %v593 = vsel %vm495, %v588, %v592
      %v595 = vshrl.u32 %v491, 16
      %v597 = vrot.slane %v595, 4
      %v598 = vshll.u32 %v491, 16
      %v600 = vrot.slane %v598, 5
      %v601 = vor.u32 %v597, %v600
      %v602 = vrot.slane %v601, 4
      %v604 = vshll.u32 %v492, 16
      %v606 = vrot.slane %v604, 5
      %v607 = vsel %vm495, %v602, %v606
      %s608 = scalar_lea.vmem %s1, 4
      %v609 = vld [vmem:[%s608] sm:$0x3]
      %v610 = vunpack.c.l.b16 %v509
      %v611 = vunpack.c.l.b16 %v523
      %v612 = vunpack.c.l.b16 %v537
      %v613 = vunpack.c.l.b16 %v551
      %v614 = vunpack.c.l.b16 %v565
      %v615 = vunpack.c.l.b16 %v579
      %v616 = vunpack.c.l.b16 %v593
      %v617 = vunpack.c.l.b16 %v607
      %v618 = vpack.c.b16 %v611, %v610
      %v619 = vpack.c.b16 %v613, %v612
      %v620 = vpack.c.b16 %v615, %v614
      %v621 = vpack.c.b16 %v617, %v616
      %v623 = vsel %vm367, %v618, 0
      %v626 = vsel %vm367, %v619, 0
      %v629 = vsel %vm367, %v620, 0
      %v632 = vsel %vm367, %v621, 0
      %v635 = vsel %vm380, %v609, 0
      %637 = vmatpush.bf16.msra.mxu0 0
      %638 = vmatpush.bf16.msra.mxu0 0
      %639 = vmatpush.bf16.msra.mxu0 0
      %640 = vmatpush.bf16.msra.mxu0 0
      %641 = vmatpush.bf16.msra.mxu0 0
      %642 = vmatpush.bf16.msra.mxu0 0
      %643 = vmatpush.bf16.msra.mxu0 0
      %644 = vmatpush.bf16.msra.mxu0 %v635
      %645 = vmatmul.bf16.gmra.mxu0 %v623
      %v646 = vpop.f32.mrf.mxu0
      %v647 = vadd.f32 0.0, %v646
      %v648 = vpop.f32.mrf.mxu0
      %v649 = vadd.f32 0.0, %v648
      %650 = vmatmul.bf16.gmra.mxu0 %v626
      %v651 = vpop.f32.mrf.mxu0
      %v652 = vadd.f32 0.0, %v651
      %v653 = vpop.f32.mrf.mxu0
      %v654 = vadd.f32 0.0, %v653
      %655 = vmatmul.bf16.gmra.mxu0 %v629
      %v656 = vpop.f32.mrf.mxu0
      %v657 = vadd.f32 0.0, %v656
      %v658 = vpop.f32.mrf.mxu0
      %v659 = vadd.f32 0.0, %v658
      %660 = vmatmul.bf16.gmra.mxu0 %v632
      %v661 = vpop.f32.mrf.mxu0
      %v662 = vadd.f32 0.0, %v661
      %v663 = vpop.f32.mrf.mxu0
      %v664 = vadd.f32 0.0, %v663
      %665 = vdwg.mxu0
      %v666 = vadd.f32 %v458, %v647
      %v667 = vadd.f32 %v460, %v649
      %v668 = vadd.f32 %v463, %v652
      %v669 = vadd.f32 %v465, %v654
      %v670 = vadd.f32 %v468, %v657
      %v671 = vadd.f32 %v470, %v659
      %v672 = vadd.f32 %v473, %v662
      %v673 = vadd.f32 %v475, %v664
      %s674 = sadd.s32 %s322, 36
      %s675 = smul.addr %s674, 4
      %s676 = scalar_lea.vmem %s288, %s675
      %v677 = vld [vmem:[%s676] sm:$0xf]
      %v678 = vld [vmem:[%s676 + $0x8] sm:$0xf]
      %v679 = vld [vmem:[%s676 + $0x10] sm:$0xf]
      %v680 = vld [vmem:[%s676 + $0x18] sm:$0xf]
      %v681 = vld [vmem:[%s676 + $0x20] sm:$0xf]
      %v682 = vld [vmem:[%s676 + $0x28] sm:$0xf]
      %v683 = vld [vmem:[%s676 + $0x30] sm:$0xf]
      %v684 = vld [vmem:[%s676 + $0x38] sm:$0xf]
      %s685 = scalar_lea.vmem %s1, 6
      %v686 = vld [vmem:[%s685] sm:$0x3]
      %v695 = vunpack.c.l.b16 %v677
      %v696 = vunpack.c.l.b16 %v678
      %v697 = vunpack.c.l.b16 %v679
      %v698 = vunpack.c.l.b16 %v680
      %v699 = vunpack.c.l.b16 %v681
      %v700 = vunpack.c.l.b16 %v682
      %v701 = vunpack.c.l.b16 %v683
      %v702 = vunpack.c.l.b16 %v684
      %v703 = vpack.c.b16 %v696, %v695
      %v704 = vpack.c.b16 %v698, %v697
      %v705 = vpack.c.b16 %v700, %v699
      %v706 = vpack.c.b16 %v702, %v701
      %v708 = vsel %vm367, %v703, 0
      %v711 = vsel %vm367, %v704, 0
      %v714 = vsel %vm367, %v705, 0
      %v717 = vsel %vm367, %v706, 0
      %v720 = vsel %vm380, %v686, 0
      %722 = vmatpush.bf16.msra.mxu0 0
      %723 = vmatpush.bf16.msra.mxu0 0
      %724 = vmatpush.bf16.msra.mxu0 0
      %725 = vmatpush.bf16.msra.mxu0 0
      %726 = vmatpush.bf16.msra.mxu0 0
      %727 = vmatpush.bf16.msra.mxu0 0
      %728 = vmatpush.bf16.msra.mxu0 0
      %729 = vmatpush.bf16.msra.mxu0 %v720
      %730 = vmatmul.bf16.gmra.mxu0 %v708
      %v731 = vpop.f32.mrf.mxu0
      %v732 = vadd.f32 0.0, %v731
      %v733 = vpop.f32.mrf.mxu0
      %v734 = vadd.f32 0.0, %v733
      %735 = vmatmul.bf16.gmra.mxu0 %v711
      %v736 = vpop.f32.mrf.mxu0
      %v737 = vadd.f32 0.0, %v736
      %v738 = vpop.f32.mrf.mxu0
      %v739 = vadd.f32 0.0, %v738
      %740 = vmatmul.bf16.gmra.mxu0 %v714
      %v741 = vpop.f32.mrf.mxu0
      %v742 = vadd.f32 0.0, %v741
      %v743 = vpop.f32.mrf.mxu0
      %v744 = vadd.f32 0.0, %v743
      %745 = vmatmul.bf16.gmra.mxu0 %v717
      %v746 = vpop.f32.mrf.mxu0
      %v747 = vadd.f32 0.0, %v746
      %v748 = vpop.f32.mrf.mxu0
      %v749 = vadd.f32 0.0, %v748
      %750 = vdwg.mxu0
      %v751 = vadd.f32 %v666, %v732
      %v752 = vadd.f32 %v667, %v734
      %v753 = vadd.f32 %v668, %v737
      %v754 = vadd.f32 %v669, %v739
      %v755 = vadd.f32 %v670, %v742
      %v756 = vadd.f32 %v671, %v744
      %v757 = vadd.f32 %v672, %v747
      %v758 = vadd.f32 %v673, %v749
      %s759 = sadd.s32 %s322, 54
      %s760 = smul.addr %s759, 4
      %s761 = scalar_lea.vmem %s288, %s760
      %v762 = vld [vmem:[%s761] sm:$0xf]
      %v763 = vld [vmem:[%s761 + $0x8] sm:$0xf]
      %v764 = vld [vmem:[%s761 + $0x10] sm:$0xf]
      %v765 = vld [vmem:[%s761 + $0x18] sm:$0xf]
      %v766 = vld [vmem:[%s761 + $0x20] sm:$0xf]
      %v767 = vld [vmem:[%s761 + $0x28] sm:$0xf]
      %v768 = vld [vmem:[%s761 + $0x30] sm:$0xf]
      %v769 = vld [vmem:[%s761 + $0x38] sm:$0xf]
      %s770 = scalar_lea.vmem %s1, 8
      %v771 = vld [vmem:[%s770] sm:$0x3]
      %v780 = vunpack.c.l.b16 %v762
      %v781 = vunpack.c.l.b16 %v763
      %v782 = vunpack.c.l.b16 %v764
      %v783 = vunpack.c.l.b16 %v765
      %v784 = vunpack.c.l.b16 %v766
      %v785 = vunpack.c.l.b16 %v767
      %v786 = vunpack.c.l.b16 %v768
      %v787 = vunpack.c.l.b16 %v769
      %v788 = vpack.c.b16 %v781, %v780
      %v789 = vpack.c.b16 %v783, %v782
      %v790 = vpack.c.b16 %v785, %v784
      %v791 = vpack.c.b16 %v787, %v786
      %v793 = vsel %vm367, %v788, 0
      %v796 = vsel %vm367, %v789, 0
      %v799 = vsel %vm367, %v790, 0
      %v802 = vsel %vm367, %v791, 0
      %v805 = vsel %vm380, %v771, 0
      %807 = vmatpush.bf16.msra.mxu0 0
      %808 = vmatpush.bf16.msra.mxu0 0
      %809 = vmatpush.bf16.msra.mxu0 0
      %810 = vmatpush.bf16.msra.mxu0 0
      %811 = vmatpush.bf16.msra.mxu0 0
      %812 = vmatpush.bf16.msra.mxu0 0
      %813 = vmatpush.bf16.msra.mxu0 0
      %814 = vmatpush.bf16.msra.mxu0 %v805
      %815 = vmatmul.bf16.gmra.mxu0 %v793
      %v816 = vpop.f32.mrf.mxu0
      %v817 = vadd.f32 0.0, %v816
      %v818 = vpop.f32.mrf.mxu0
      %v819 = vadd.f32 0.0, %v818
      %820 = vmatmul.bf16.gmra.mxu0 %v796
      %v821 = vpop.f32.mrf.mxu0
      %v822 = vadd.f32 0.0, %v821
      %v823 = vpop.f32.mrf.mxu0
      %v824 = vadd.f32 0.0, %v823
      %825 = vmatmul.bf16.gmra.mxu0 %v799
      %v826 = vpop.f32.mrf.mxu0
      %v827 = vadd.f32 0.0, %v826
      %v828 = vpop.f32.mrf.mxu0
      %v829 = vadd.f32 0.0, %v828
      %830 = vmatmul.bf16.gmra.mxu0 %v802
      %v831 = vpop.f32.mrf.mxu0
      %v832 = vadd.f32 0.0, %v831
      %v833 = vpop.f32.mrf.mxu0
      %v834 = vadd.f32 0.0, %v833
      %835 = vdwg.mxu0
      %v836 = vadd.f32 %v751, %v817
      %v837 = vadd.f32 %v752, %v819
      %v838 = vadd.f32 %v753, %v822
      %v839 = vadd.f32 %v754, %v824
      %v840 = vadd.f32 %v755, %v827
      %v841 = vadd.f32 %v756, %v829
      %v842 = vadd.f32 %v757, %v832
      %v843 = vadd.f32 %v758, %v834
      %v844 = vld [vmem:[%s676] sm:$0xf]
      %v845 = vld [vmem:[%s676 + $0x4] sm:$0x1]
      %v846 = vld [vmem:[%s676 + $0x8] sm:$0xf]
      %v847 = vld [vmem:[%s676 + $0xc] sm:$0x1]
      %v848 = vld [vmem:[%s676 + $0x10] sm:$0xf]
      %v849 = vld [vmem:[%s676 + $0x14] sm:$0x1]
      %v850 = vld [vmem:[%s676 + $0x18] sm:$0xf]
      %v851 = vld [vmem:[%s676 + $0x1c] sm:$0x1]
      %v852 = vld [vmem:[%s676 + $0x20] sm:$0xf]
      %v853 = vld [vmem:[%s676 + $0x24] sm:$0x1]
      %v854 = vld [vmem:[%s676 + $0x28] sm:$0xf]
      %v855 = vld [vmem:[%s676 + $0x2c] sm:$0x1]
      %v856 = vld [vmem:[%s676 + $0x30] sm:$0xf]
      %v857 = vld [vmem:[%s676 + $0x34] sm:$0x1]
      %v858 = vld [vmem:[%s676 + $0x38] sm:$0xf]
      %v859 = vld [vmem:[%s676 + $0x3c] sm:$0x1]
      %v861 = vshrl.u32 %v844, 16
      %v863 = vrot.slane %v861, 4
      %v864 = vshll.u32 %v844, 16
      %v866 = vrot.slane %v864, 5
      %v867 = vor.u32 %v863, %v866
      %v868 = vrot.slane %v867, 4
      %v870 = vshll.u32 %v845, 16
      %v872 = vrot.slane %v870, 5
      %v873 = vsel %vm495, %v868, %v872
      %v875 = vshrl.u32 %v846, 16
      %v877 = vrot.slane %v875, 4
      %v878 = vshll.u32 %v846, 16
      %v880 = vrot.slane %v878, 5
      %v881 = vor.u32 %v877, %v880
      %v882 = vrot.slane %v881, 4
      %v884 = vshll.u32 %v847, 16
      %v886 = vrot.slane %v884, 5
      %v887 = vsel %vm495, %v882, %v886
      %v889 = vshrl.u32 %v848, 16
      %v891 = vrot.slane %v889, 4
      %v892 = vshll.u32 %v848, 16
      %v894 = vrot.slane %v892, 5
      %v895 = vor.u32 %v891, %v894
      %v896 = vrot.slane %v895, 4
      %v898 = vshll.u32 %v849, 16
      %v900 = vrot.slane %v898, 5
      %v901 = vsel %vm495, %v896, %v900
      %v903 = vshrl.u32 %v850, 16
      %v905 = vrot.slane %v903, 4
      %v906 = vshll.u32 %v850, 16
      %v908 = vrot.slane %v906, 5
      %v909 = vor.u32 %v905, %v908
      %v910 = vrot.slane %v909, 4
      %v912 = vshll.u32 %v851, 16
      %v914 = vrot.slane %v912, 5
      %v915 = vsel %vm495, %v910, %v914
      %v917 = vshrl.u32 %v852, 16
      %v919 = vrot.slane %v917, 4
      %v920 = vshll.u32 %v852, 16
      %v922 = vrot.slane %v920, 5
      %v923 = vor.u32 %v919, %v922
      %v924 = vrot.slane %v923, 4
      %v926 = vshll.u32 %v853, 16
      %v928 = vrot.slane %v926, 5
      %v929 = vsel %vm495, %v924, %v928
      %v931 = vshrl.u32 %v854, 16
      %v933 = vrot.slane %v931, 4
      %v934 = vshll.u32 %v854, 16
      %v936 = vrot.slane %v934, 5
      %v937 = vor.u32 %v933, %v936
      %v938 = vrot.slane %v937, 4
      %v940 = vshll.u32 %v855, 16
      %v942 = vrot.slane %v940, 5
      %v943 = vsel %vm495, %v938, %v942
      %v945 = vshrl.u32 %v856, 16
      %v947 = vrot.slane %v945, 4
      %v948 = vshll.u32 %v856, 16
      %v950 = vrot.slane %v948, 5
      %v951 = vor.u32 %v947, %v950
      %v952 = vrot.slane %v951, 4
      %v954 = vshll.u32 %v857, 16
      %v956 = vrot.slane %v954, 5
      %v957 = vsel %vm495, %v952, %v956
      %v959 = vshrl.u32 %v858, 16
      %v961 = vrot.slane %v959, 4
      %v962 = vshll.u32 %v858, 16
      %v964 = vrot.slane %v962, 5
      %v965 = vor.u32 %v961, %v964
      %v966 = vrot.slane %v965, 4
      %v968 = vshll.u32 %v859, 16
      %v970 = vrot.slane %v968, 5
      %v971 = vsel %vm495, %v966, %v970
      %s972 = scalar_lea.vmem %s1, 10
      %v973 = vld [vmem:[%s972] sm:$0x3]
      %v974 = vunpack.c.l.b16 %v873
      %v975 = vunpack.c.l.b16 %v887
      %v976 = vunpack.c.l.b16 %v901
      %v977 = vunpack.c.l.b16 %v915
      %v978 = vunpack.c.l.b16 %v929
      %v979 = vunpack.c.l.b16 %v943
      %v980 = vunpack.c.l.b16 %v957
      %v981 = vunpack.c.l.b16 %v971
      %v982 = vpack.c.b16 %v975, %v974
      %v983 = vpack.c.b16 %v977, %v976
      %v984 = vpack.c.b16 %v979, %v978
      %v985 = vpack.c.b16 %v981, %v980
      %v987 = vsel %vm367, %v982, 0
      %v990 = vsel %vm367, %v983, 0
      %v993 = vsel %vm367, %v984, 0
      %v996 = vsel %vm367, %v985, 0
      %v999 = vsel %vm380, %v973, 0
      %1001 = vmatpush.bf16.msra.mxu0 0
      %1002 = vmatpush.bf16.msra.mxu0 0
      %1003 = vmatpush.bf16.msra.mxu0 0
      %1004 = vmatpush.bf16.msra.mxu0 0
      %1005 = vmatpush.bf16.msra.mxu0 0
      %1006 = vmatpush.bf16.msra.mxu0 0
      %1007 = vmatpush.bf16.msra.mxu0 0
      %1008 = vmatpush.bf16.msra.mxu0 %v999
      %1009 = vmatmul.bf16.gmra.mxu0 %v987
      %v1010 = vpop.f32.mrf.mxu0
      %v1011 = vadd.f32 0.0, %v1010
      %v1012 = vpop.f32.mrf.mxu0
      %v1013 = vadd.f32 0.0, %v1012
      %1014 = vmatmul.bf16.gmra.mxu0 %v990
      %v1015 = vpop.f32.mrf.mxu0
      %v1016 = vadd.f32 0.0, %v1015
      %v1017 = vpop.f32.mrf.mxu0
      %v1018 = vadd.f32 0.0, %v1017
      %1019 = vmatmul.bf16.gmra.mxu0 %v993
      %v1020 = vpop.f32.mrf.mxu0
      %v1021 = vadd.f32 0.0, %v1020
      %v1022 = vpop.f32.mrf.mxu0
      %v1023 = vadd.f32 0.0, %v1022
      %1024 = vmatmul.bf16.gmra.mxu0 %v996
      %v1025 = vpop.f32.mrf.mxu0
      %v1026 = vadd.f32 0.0, %v1025
      %v1027 = vpop.f32.mrf.mxu0
      %v1028 = vadd.f32 0.0, %v1027
      %1029 = vdwg.mxu0
      %v1030 = vadd.f32 %v836, %v1011
      %v1031 = vadd.f32 %v837, %v1013
      %v1032 = vadd.f32 %v838, %v1016
      %v1033 = vadd.f32 %v839, %v1018
      %v1034 = vadd.f32 %v840, %v1021
      %v1035 = vadd.f32 %v841, %v1023
      %v1036 = vadd.f32 %v842, %v1026
      %v1037 = vadd.f32 %v843, %v1028
      %s1038 = sadd.s32 %s315, 1
      %s1039 = smul.u32 %s1038, 2
      %s1040 = smul.addr %s1039, 4
      %s1041 = scalar_lea.vmem %s288, %s1040
      %v1042 = vld [vmem:[%s1041] sm:$0xf]
      %v1043 = vld [vmem:[%s1041 + $0x8] sm:$0xf]
      %v1044 = vld [vmem:[%s1041 + $0x10] sm:$0xf]
      %v1045 = vld [vmem:[%s1041 + $0x18] sm:$0xf]
      %v1046 = vld [vmem:[%s1041 + $0x20] sm:$0xf]
      %v1047 = vld [vmem:[%s1041 + $0x28] sm:$0xf]
      %v1048 = vld [vmem:[%s1041 + $0x30] sm:$0xf]
      %v1049 = vld [vmem:[%s1041 + $0x38] sm:$0xf]
      %s1050 = scalar_lea.vmem %s1, 12
      %v1051 = vld [vmem:[%s1050] sm:$0x3]
      %v1060 = vunpack.c.l.b16 %v1042
      %v1061 = vunpack.c.l.b16 %v1043
      %v1062 = vunpack.c.l.b16 %v1044
      %v1063 = vunpack.c.l.b16 %v1045
      %v1064 = vunpack.c.l.b16 %v1046
      %v1065 = vunpack.c.l.b16 %v1047
      %v1066 = vunpack.c.l.b16 %v1048
      %v1067 = vunpack.c.l.b16 %v1049
      %v1068 = vpack.c.b16 %v1061, %v1060
      %v1069 = vpack.c.b16 %v1063, %v1062
      %v1070 = vpack.c.b16 %v1065, %v1064
      %v1071 = vpack.c.b16 %v1067, %v1066
      %v1073 = vsel %vm367, %v1068, 0
      %v1076 = vsel %vm367, %v1069, 0
      %v1079 = vsel %vm367, %v1070, 0
      %v1082 = vsel %vm367, %v1071, 0
      %v1085 = vsel %vm380, %v1051, 0
      %1087 = vmatpush.bf16.msra.mxu0 0
      %1088 = vmatpush.bf16.msra.mxu0 0
      %1089 = vmatpush.bf16.msra.mxu0 0
      %1090 = vmatpush.bf16.msra.mxu0 0
      %1091 = vmatpush.bf16.msra.mxu0 0
      %1092 = vmatpush.bf16.msra.mxu0 0
      %1093 = vmatpush.bf16.msra.mxu0 0
      %1094 = vmatpush.bf16.msra.mxu0 %v1085
      %1095 = vmatmul.bf16.gmra.mxu0 %v1073
      %v1096 = vpop.f32.mrf.mxu0
      %v1097 = vadd.f32 0.0, %v1096
      %v1098 = vpop.f32.mrf.mxu0
      %v1099 = vadd.f32 0.0, %v1098
      %1100 = vmatmul.bf16.gmra.mxu0 %v1076
      %v1101 = vpop.f32.mrf.mxu0
      %v1102 = vadd.f32 0.0, %v1101
      %v1103 = vpop.f32.mrf.mxu0
      %v1104 = vadd.f32 0.0, %v1103
      %1105 = vmatmul.bf16.gmra.mxu0 %v1079
      %v1106 = vpop.f32.mrf.mxu0
      %v1107 = vadd.f32 0.0, %v1106
      %v1108 = vpop.f32.mrf.mxu0
      %v1109 = vadd.f32 0.0, %v1108
      %1110 = vmatmul.bf16.gmra.mxu0 %v1082
      %v1111 = vpop.f32.mrf.mxu0
      %v1112 = vadd.f32 0.0, %v1111
      %v1113 = vpop.f32.mrf.mxu0
      %v1114 = vadd.f32 0.0, %v1113
      %1115 = vdwg.mxu0
      %v1116 = vadd.f32 %v1030, %v1097
      %v1117 = vadd.f32 %v1031, %v1099
      %v1118 = vadd.f32 %v1032, %v1102
      %v1119 = vadd.f32 %v1033, %v1104
      %v1120 = vadd.f32 %v1034, %v1107
      %v1121 = vadd.f32 %v1035, %v1109
      %v1122 = vadd.f32 %v1036, %v1112
      %v1123 = vadd.f32 %v1037, %v1114
      %s1124 = sadd.s32 %s1039, 18
      %s1125 = smul.addr %s1124, 4
      %s1126 = scalar_lea.vmem %s288, %s1125
      %v1127 = vld [vmem:[%s1126] sm:$0xf]
      %v1128 = vld [vmem:[%s1126 + $0x8] sm:$0xf]
      %v1129 = vld [vmem:[%s1126 + $0x10] sm:$0xf]
      %v1130 = vld [vmem:[%s1126 + $0x18] sm:$0xf]
      %v1131 = vld [vmem:[%s1126 + $0x20] sm:$0xf]
      %v1132 = vld [vmem:[%s1126 + $0x28] sm:$0xf]
      %v1133 = vld [vmem:[%s1126 + $0x30] sm:$0xf]
      %v1134 = vld [vmem:[%s1126 + $0x38] sm:$0xf]
      %s1135 = scalar_lea.vmem %s1, 14
      %v1136 = vld [vmem:[%s1135] sm:$0x3]
      %v1145 = vunpack.c.l.b16 %v1127
      %v1146 = vunpack.c.l.b16 %v1128
      %v1147 = vunpack.c.l.b16 %v1129
      %v1148 = vunpack.c.l.b16 %v1130
      %v1149 = vunpack.c.l.b16 %v1131
      %v1150 = vunpack.c.l.b16 %v1132
      %v1151 = vunpack.c.l.b16 %v1133
      %v1152 = vunpack.c.l.b16 %v1134
      %v1153 = vpack.c.b16 %v1146, %v1145
      %v1154 = vpack.c.b16 %v1148, %v1147
      %v1155 = vpack.c.b16 %v1150, %v1149
      %v1156 = vpack.c.b16 %v1152, %v1151
      %v1158 = vsel %vm367, %v1153, 0
      %v1161 = vsel %vm367, %v1154, 0
      %v1164 = vsel %vm367, %v1155, 0
      %v1167 = vsel %vm367, %v1156, 0
      %v1170 = vsel %vm380, %v1136, 0
      %1172 = vmatpush.bf16.msra.mxu0 0
      %1173 = vmatpush.bf16.msra.mxu0 0
      %1174 = vmatpush.bf16.msra.mxu0 0
      %1175 = vmatpush.bf16.msra.mxu0 0
      %1176 = vmatpush.bf16.msra.mxu0 0
      %1177 = vmatpush.bf16.msra.mxu0 0
      %1178 = vmatpush.bf16.msra.mxu0 0
      %1179 = vmatpush.bf16.msra.mxu0 %v1170
      %1180 = vmatmul.bf16.gmra.mxu0 %v1158
      %v1181 = vpop.f32.mrf.mxu0
      %v1182 = vadd.f32 0.0, %v1181
      %v1183 = vpop.f32.mrf.mxu0
      %v1184 = vadd.f32 0.0, %v1183
      %1185 = vmatmul.bf16.gmra.mxu0 %v1161
      %v1186 = vpop.f32.mrf.mxu0
      %v1187 = vadd.f32 0.0, %v1186
      %v1188 = vpop.f32.mrf.mxu0
      %v1189 = vadd.f32 0.0, %v1188
      %1190 = vmatmul.bf16.gmra.mxu0 %v1164
      %v1191 = vpop.f32.mrf.mxu0
      %v1192 = vadd.f32 0.0, %v1191
      %v1193 = vpop.f32.mrf.mxu0
      %v1194 = vadd.f32 0.0, %v1193
      %1195 = vmatmul.bf16.gmra.mxu0 %v1167
      %v1196 = vpop.f32.mrf.mxu0
      %v1197 = vadd.f32 0.0, %v1196
      %v1198 = vpop.f32.mrf.mxu0
      %v1199 = vadd.f32 0.0, %v1198
      %1200 = vdwg.mxu0
      %v1201 = vadd.f32 %v1116, %v1182
      %v1202 = vadd.f32 %v1117, %v1184
      %v1203 = vadd.f32 %v1118, %v1187
      %v1204 = vadd.f32 %v1119, %v1189
      %v1205 = vadd.f32 %v1120, %v1192
      %v1206 = vadd.f32 %v1121, %v1194
      %v1207 = vadd.f32 %v1122, %v1197
      %v1208 = vadd.f32 %v1123, %v1199
      %v1209 = vld [vmem:[%s1041] sm:$0xf]
      %v1210 = vld [vmem:[%s1041 + $0x4] sm:$0x1]
      %v1211 = vld [vmem:[%s1041 + $0x8] sm:$0xf]
      %v1212 = vld [vmem:[%s1041 + $0xc] sm:$0x1]
      %v1213 = vld [vmem:[%s1041 + $0x10] sm:$0xf]
      %v1214 = vld [vmem:[%s1041 + $0x14] sm:$0x1]
      %v1215 = vld [vmem:[%s1041 + $0x18] sm:$0xf]
      %v1216 = vld [vmem:[%s1041 + $0x1c] sm:$0x1]
      %v1217 = vld [vmem:[%s1041 + $0x20] sm:$0xf]
      %v1218 = vld [vmem:[%s1041 + $0x24] sm:$0x1]
      %v1219 = vld [vmem:[%s1041 + $0x28] sm:$0xf]
      %v1220 = vld [vmem:[%s1041 + $0x2c] sm:$0x1]
      %v1221 = vld [vmem:[%s1041 + $0x30] sm:$0xf]
      %v1222 = vld [vmem:[%s1041 + $0x34] sm:$0x1]
      %v1223 = vld [vmem:[%s1041 + $0x38] sm:$0xf]
      %v1224 = vld [vmem:[%s1041 + $0x3c] sm:$0x1]
      %v1226 = vshrl.u32 %v1209, 16
      %v1228 = vrot.slane %v1226, 4
      %v1229 = vshll.u32 %v1209, 16
      %v1231 = vrot.slane %v1229, 5
      %v1232 = vor.u32 %v1228, %v1231
      %v1233 = vrot.slane %v1232, 4
      %v1235 = vshll.u32 %v1210, 16
      %v1237 = vrot.slane %v1235, 5
      %v1238 = vsel %vm495, %v1233, %v1237
      %v1240 = vshrl.u32 %v1211, 16
      %v1242 = vrot.slane %v1240, 4
      %v1243 = vshll.u32 %v1211, 16
      %v1245 = vrot.slane %v1243, 5
      %v1246 = vor.u32 %v1242, %v1245
      %v1247 = vrot.slane %v1246, 4
      %v1249 = vshll.u32 %v1212, 16
      %v1251 = vrot.slane %v1249, 5
      %v1252 = vsel %vm495, %v1247, %v1251
      %v1254 = vshrl.u32 %v1213, 16
      %v1256 = vrot.slane %v1254, 4
      %v1257 = vshll.u32 %v1213, 16
      %v1259 = vrot.slane %v1257, 5
      %v1260 = vor.u32 %v1256, %v1259
      %v1261 = vrot.slane %v1260, 4
      %v1263 = vshll.u32 %v1214, 16
      %v1265 = vrot.slane %v1263, 5
      %v1266 = vsel %vm495, %v1261, %v1265
      %v1268 = vshrl.u32 %v1215, 16
      %v1270 = vrot.slane %v1268, 4
      %v1271 = vshll.u32 %v1215, 16
      %v1273 = vrot.slane %v1271, 5
      %v1274 = vor.u32 %v1270, %v1273
      %v1275 = vrot.slane %v1274, 4
      %v1277 = vshll.u32 %v1216, 16
      %v1279 = vrot.slane %v1277, 5
      %v1280 = vsel %vm495, %v1275, %v1279
      %v1282 = vshrl.u32 %v1217, 16
      %v1284 = vrot.slane %v1282, 4
      %v1285 = vshll.u32 %v1217, 16
      %v1287 = vrot.slane %v1285, 5
      %v1288 = vor.u32 %v1284, %v1287
      %v1289 = vrot.slane %v1288, 4
      %v1291 = vshll.u32 %v1218, 16
      %v1293 = vrot.slane %v1291, 5
      %v1294 = vsel %vm495, %v1289, %v1293
      %v1296 = vshrl.u32 %v1219, 16
      %v1298 = vrot.slane %v1296, 4
      %v1299 = vshll.u32 %v1219, 16
      %v1301 = vrot.slane %v1299, 5
      %v1302 = vor.u32 %v1298, %v1301
      %v1303 = vrot.slane %v1302, 4
      %v1305 = vshll.u32 %v1220, 16
      %v1307 = vrot.slane %v1305, 5
      %v1308 = vsel %vm495, %v1303, %v1307
      %v1310 = vshrl.u32 %v1221, 16
      %v1312 = vrot.slane %v1310, 4
      %v1313 = vshll.u32 %v1221, 16
      %v1315 = vrot.slane %v1313, 5
      %v1316 = vor.u32 %v1312, %v1315
      %v1317 = vrot.slane %v1316, 4
      %v1319 = vshll.u32 %v1222, 16
      %v1321 = vrot.slane %v1319, 5
      %v1322 = vsel %vm495, %v1317, %v1321
      %v1324 = vshrl.u32 %v1223, 16
      %v1326 = vrot.slane %v1324, 4
      %v1327 = vshll.u32 %v1223, 16
      %v1329 = vrot.slane %v1327, 5
      %v1330 = vor.u32 %v1326, %v1329
      %v1331 = vrot.slane %v1330, 4
      %v1333 = vshll.u32 %v1224, 16
      %v1335 = vrot.slane %v1333, 5
      %v1336 = vsel %vm495, %v1331, %v1335
      %s1337 = scalar_lea.vmem %s1, 16
      %v1338 = vld [vmem:[%s1337] sm:$0x3]
      %v1339 = vunpack.c.l.b16 %v1238
      %v1340 = vunpack.c.l.b16 %v1252
      %v1341 = vunpack.c.l.b16 %v1266
      %v1342 = vunpack.c.l.b16 %v1280
      %v1343 = vunpack.c.l.b16 %v1294
      %v1344 = vunpack.c.l.b16 %v1308
      %v1345 = vunpack.c.l.b16 %v1322
      %v1346 = vunpack.c.l.b16 %v1336
      %v1347 = vpack.c.b16 %v1340, %v1339
      %v1348 = vpack.c.b16 %v1342, %v1341
      %v1349 = vpack.c.b16 %v1344, %v1343
      %v1350 = vpack.c.b16 %v1346, %v1345
      %v1352 = vsel %vm367, %v1347, 0
      %v1355 = vsel %vm367, %v1348, 0
      %v1358 = vsel %vm367, %v1349, 0
      %v1361 = vsel %vm367, %v1350, 0
      %v1364 = vsel %vm380, %v1338, 0
      %1366 = vmatpush.bf16.msra.mxu0 0
      %1367 = vmatpush.bf16.msra.mxu0 0
      %1368 = vmatpush.bf16.msra.mxu0 0
      %1369 = vmatpush.bf16.msra.mxu0 0
      %1370 = vmatpush.bf16.msra.mxu0 0
      %1371 = vmatpush.bf16.msra.mxu0 0
      %1372 = vmatpush.bf16.msra.mxu0 0
      %1373 = vmatpush.bf16.msra.mxu0 %v1364
      %1374 = vmatmul.bf16.gmra.mxu0 %v1352
      %v1375 = vpop.f32.mrf.mxu0
      %v1376 = vadd.f32 0.0, %v1375
      %v1377 = vpop.f32.mrf.mxu0
      %v1378 = vadd.f32 0.0, %v1377
      %1379 = vmatmul.bf16.gmra.mxu0 %v1355
      %v1380 = vpop.f32.mrf.mxu0
      %v1381 = vadd.f32 0.0, %v1380
      %v1382 = vpop.f32.mrf.mxu0
      %v1383 = vadd.f32 0.0, %v1382
      %1384 = vmatmul.bf16.gmra.mxu0 %v1358
      %v1385 = vpop.f32.mrf.mxu0
      %v1386 = vadd.f32 0.0, %v1385
      %v1387 = vpop.f32.mrf.mxu0
      %v1388 = vadd.f32 0.0, %v1387
      %1389 = vmatmul.bf16.gmra.mxu0 %v1361
      %v1390 = vpop.f32.mrf.mxu0
      %v1391 = vadd.f32 0.0, %v1390
      %v1392 = vpop.f32.mrf.mxu0
      %v1393 = vadd.f32 0.0, %v1392
      %1394 = vdwg.mxu0
      %v1395 = vadd.f32 %v1201, %v1376
      %v1396 = vadd.f32 %v1202, %v1378
      %v1397 = vadd.f32 %v1203, %v1381
      %v1398 = vadd.f32 %v1204, %v1383
      %v1399 = vadd.f32 %v1205, %v1386
      %v1400 = vadd.f32 %v1206, %v1388
      %v1401 = vadd.f32 %v1207, %v1391
      %v1402 = vadd.f32 %v1208, %v1393
      %v1403 = vpack.c.bf16 %v1395, %v1395
      %v1404 = vpack.c.bf16 %v1396, %v1396
      %v1405 = vpack.c.bf16 %v1397, %v1397
      %v1406 = vpack.c.bf16 %v1398, %v1398
      %v1407 = vpack.c.bf16 %v1399, %v1399
      %v1408 = vpack.c.bf16 %v1400, %v1400
      %v1409 = vpack.c.bf16 %v1401, %v1401
      %v1410 = vpack.c.bf16 %v1402, %v1402
      %1411 = vst [vmem:[%s295] sm:$0xf] %v1403
      %1412 = vst [vmem:[%s295 + $0x4] sm:$0xf] %v1404
      %1413 = vst [vmem:[%s295 + $0x8] sm:$0xf] %v1405
      %1414 = vst [vmem:[%s295 + $0xc] sm:$0xf] %v1406
      %1415 = vst [vmem:[%s295 + $0x10] sm:$0xf] %v1407
      %1416 = vst [vmem:[%s295 + $0x14] sm:$0xf] %v1408
      %1417 = vst [vmem:[%s295 + $0x18] sm:$0xf] %v1409
      %1418 = vst [vmem:[%s295 + $0x1c] sm:$0xf] %v1410
      %v1419 = vld [vmem:[%s309] sm:$0x1]
      %v1420 = vadd.f32 %v1395, %v1396
      %v1421 = vadd.f32 %v1420, %v1397
      %v1422 = vadd.f32 %v1421, %v1398
      %v1423 = vadd.f32 %v1422, %v1399
      %v1424 = vadd.f32 %v1423, %v1400
      %v1425 = vadd.f32 %v1424, %v1401
      %v1426 = vadd.f32 %v1425, %v1402
      %v1427 = vrot.slane %v1426, 4
      %v1428 = vadd.f32 %v1426, %v1427
      %v1429 = vrot.slane %v1428, 2
      %v1430 = vadd.f32 %v1428, %v1429
      %v1431 = vrot.slane %v1430, 1
      %v1432 = vadd.f32 %v1430, %v1431
      %v1433 = vadd.f32 %v1419, %v1432
      %1434 = vst [vmem:[%s309] sm:$0x1] %v1433
      %v1435 = vld [vmem:[%s309 + $0x1] sm:$0x1]
      %v1436 = vmul.f32 %v1395, %v1395
      %v1437 = vmul.f32 %v1396, %v1396
      %v1438 = vmul.f32 %v1397, %v1397
      %v1439 = vmul.f32 %v1398, %v1398
      %v1440 = vmul.f32 %v1399, %v1399
      %v1441 = vmul.f32 %v1400, %v1400
      %v1442 = vmul.f32 %v1401, %v1401
      %v1443 = vmul.f32 %v1402, %v1402
      %v1444 = vadd.f32 %v1436, %v1437
      %v1445 = vadd.f32 %v1444, %v1438
      %v1446 = vadd.f32 %v1445, %v1439
      %v1447 = vadd.f32 %v1446, %v1440
      %v1448 = vadd.f32 %v1447, %v1441
      %v1449 = vadd.f32 %v1448, %v1442
      %v1450 = vadd.f32 %v1449, %v1443
      %v1451 = vrot.slane %v1450, 4
      %v1452 = vadd.f32 %v1450, %v1451
      %v1453 = vrot.slane %v1452, 2
      %v1454 = vadd.f32 %v1452, %v1453
      %v1455 = vrot.slane %v1454, 1
      %v1456 = vadd.f32 %v1454, %v1455
      %v1457 = vadd.f32 %v1435, %v1456
      %1458 = vst [vmem:[%s309 + $0x1] sm:$0x1] %v1457
      %v1459 = vld [vmem:[%s761] sm:$0xf]
      %v1460 = vld [vmem:[%s761 + $0x8] sm:$0xf]
      %v1461 = vld [vmem:[%s761 + $0x10] sm:$0xf]
      %v1462 = vld [vmem:[%s761 + $0x18] sm:$0xf]
      %v1463 = vld [vmem:[%s761 + $0x20] sm:$0xf]
      %v1464 = vld [vmem:[%s761 + $0x28] sm:$0xf]
      %v1465 = vld [vmem:[%s761 + $0x30] sm:$0xf]
      %v1466 = vld [vmem:[%s761 + $0x38] sm:$0xf]
      %v1467 = vld [vmem:[%s2] sm:$0x3]
      %v1476 = vunpack.c.l.b16 %v1459
      %v1477 = vunpack.c.l.b16 %v1460
      %v1478 = vunpack.c.l.b16 %v1461
      %v1479 = vunpack.c.l.b16 %v1462
      %v1480 = vunpack.c.l.b16 %v1463
      %v1481 = vunpack.c.l.b16 %v1464
      %v1482 = vunpack.c.l.b16 %v1465
      %v1483 = vunpack.c.l.b16 %v1466
      %v1484 = vpack.c.b16 %v1477, %v1476
      %v1485 = vpack.c.b16 %v1479, %v1478
      %v1486 = vpack.c.b16 %v1481, %v1480
      %v1487 = vpack.c.b16 %v1483, %v1482
      %v1489 = vsel %vm367, %v1484, 0
      %v1492 = vsel %vm367, %v1485, 0
      %v1495 = vsel %vm367, %v1486, 0
      %v1498 = vsel %vm367, %v1487, 0
      %v1501 = vsel %vm380, %v1467, 0
      %1503 = vmatpush.bf16.msra.mxu0 0
      %1504 = vmatpush.bf16.msra.mxu0 0
      %1505 = vmatpush.bf16.msra.mxu0 0
      %1506 = vmatpush.bf16.msra.mxu0 0
      %1507 = vmatpush.bf16.msra.mxu0 0
      %1508 = vmatpush.bf16.msra.mxu0 0
      %1509 = vmatpush.bf16.msra.mxu0 0
      %1510 = vmatpush.bf16.msra.mxu0 %v1501
      %1511 = vmatmul.bf16.gmra.mxu0 %v1489
      %v1512 = vpop.f32.mrf.mxu0
      %v1513 = vadd.f32 0.0, %v1512
      %v1514 = vpop.f32.mrf.mxu0
      %v1515 = vadd.f32 0.0, %v1514
      %1516 = vmatmul.bf16.gmra.mxu0 %v1492
      %v1517 = vpop.f32.mrf.mxu0
      %v1518 = vadd.f32 0.0, %v1517
      %v1519 = vpop.f32.mrf.mxu0
      %v1520 = vadd.f32 0.0, %v1519
      %1521 = vmatmul.bf16.gmra.mxu0 %v1495
      %v1522 = vpop.f32.mrf.mxu0
      %v1523 = vadd.f32 0.0, %v1522
      %v1524 = vpop.f32.mrf.mxu0
      %v1525 = vadd.f32 0.0, %v1524
      %1526 = vmatmul.bf16.gmra.mxu0 %v1498
      %v1527 = vpop.f32.mrf.mxu0
      %v1528 = vadd.f32 0.0, %v1527
      %v1529 = vpop.f32.mrf.mxu0
      %v1530 = vadd.f32 0.0, %v1529
      %1531 = vdwg.mxu0
      %v1532 = vpack.c.bf16 %v1513, %v1513
      %v1533 = vpack.c.bf16 %v1515, %v1515
      %v1534 = vpack.c.bf16 %v1518, %v1518
      %v1535 = vpack.c.bf16 %v1520, %v1520
      %v1536 = vpack.c.bf16 %v1523, %v1523
      %v1537 = vpack.c.bf16 %v1525, %v1525
      %v1538 = vpack.c.bf16 %v1528, %v1528
      %v1539 = vpack.c.bf16 %v1530, %v1530
      %1540 = vst [vmem:[%s303] sm:$0xf] %v1532
      %1541 = vst [vmem:[%s303 + $0x4] sm:$0xf] %v1533
      %1542 = vst [vmem:[%s303 + $0x8] sm:$0xf] %v1534
      %1543 = vst [vmem:[%s303 + $0xc] sm:$0xf] %v1535
      %1544 = vst [vmem:[%s303 + $0x10] sm:$0xf] %v1536
      %1545 = vst [vmem:[%s303 + $0x14] sm:$0xf] %v1537
      %1546 = vst [vmem:[%s303 + $0x18] sm:$0xf] %v1538
      %1547 = vst [vmem:[%s303 + $0x1c] sm:$0xf] %v1539
      %v1548 = vld [vmem:[%s313] sm:$0x1]
      %v1549 = vadd.f32 %v1513, %v1515
      %v1550 = vadd.f32 %v1549, %v1518
      %v1551 = vadd.f32 %v1550, %v1520
      %v1552 = vadd.f32 %v1551, %v1523
      %v1553 = vadd.f32 %v1552, %v1525
      %v1554 = vadd.f32 %v1553, %v1528
      %v1555 = vadd.f32 %v1554, %v1530
      %v1556 = vrot.slane %v1555, 4
      %v1557 = vadd.f32 %v1555, %v1556
      %v1558 = vrot.slane %v1557, 2
      %v1559 = vadd.f32 %v1557, %v1558
      %v1560 = vrot.slane %v1559, 1
      %v1561 = vadd.f32 %v1559, %v1560
      %v1562 = vadd.f32 %v1548, %v1561
      %1563 = vst [vmem:[%s313] sm:$0x1] %v1562
      %v1564 = vld [vmem:[%s313 + $0x1] sm:$0x1]
      %v1565 = vmul.f32 %v1513, %v1513
      %v1566 = vmul.f32 %v1515, %v1515
      %v1567 = vmul.f32 %v1518, %v1518
      %v1568 = vmul.f32 %v1520, %v1520
      %v1569 = vmul.f32 %v1523, %v1523
      %v1570 = vmul.f32 %v1525, %v1525
      %v1571 = vmul.f32 %v1528, %v1528
      %v1572 = vmul.f32 %v1530, %v1530
      %v1573 = vadd.f32 %v1565, %v1566
      %v1574 = vadd.f32 %v1573, %v1567
      %v1575 = vadd.f32 %v1574, %v1568
      %v1576 = vadd.f32 %v1575, %v1569
      %v1577 = vadd.f32 %v1576, %v1570
      %v1578 = vadd.f32 %v1577, %v1571
      %v1579 = vadd.f32 %v1578, %v1572
      %v1580 = vrot.slane %v1579, 4
      %v1581 = vadd.f32 %v1579, %v1580
      %v1582 = vrot.slane %v1581, 2
      %v1583 = vadd.f32 %v1581, %v1582
      %v1584 = vrot.slane %v1583, 1
      %v1585 = vadd.f32 %v1583, %v1584
      %v1586 = vadd.f32 %v1564, %v1585
      %1587 = vst [vmem:[%s313 + $0x1] sm:$0x1] %v1586
      %s1588 = sadd.s32 %s22, %s23
      %s1589 = smul.u32 8, %s1588
      %p1590 = scmp.lt.s32.totalorder %s1589, 15
      %s1591 = scalar_select %p1590, %s1589, 15
      %s1592 = smul.addr %s1591, 4
      %s1593 = scalar_lea.vmem %s3, %s1592
      %s1594 = sadd.s32 %s22, %s23
      %s1595 = smul.u32 8, %s1594
      %p1596 = scmp.lt.s32.totalorder %s1595, 15
      %s1597 = scalar_select %p1596, %s1595, 15
      %s1598 = smul.addr %s1597, 4
      %s1599 = scalar_lea.vmem %s4, %s1598
      %p1600 = scmp.lt.s32.totalorder %s22, 1
      %s1601 = scalar_select %p1600, %s22, 1
      %s1602 = smul.addr %s1601, 2
      %s1603 = scalar_lea.vmem %s5, %s1602
      %p1604 = scmp.lt.s32.totalorder %s22, 1
      %s1605 = scalar_select %p1604, %s22, 1
      %s1606 = smul.addr %s1605, 2
      %s1607 = scalar_lea.vmem %s6, %s1606
      // Predicated region
      $region37: #{resnet_layer.6} parent=31 // pred_check
        %p1608 = pneg %p118
      $region38: #{resnet_layer.6} parent=31 // pred_check_branch
        %1610 = sbr.rel (%p1608) target = $region40
      $region39: #{resnet_layer.6} parent=31 // pred_region
        %s1611 = sadd.s32 %s22, %s23
        %s1612 = smul.u32 8, %s1611
      $region40: #{resnet_layer.6} parent=31 // pred_fallthru
        _
      // Predicated region
      $region41: #{resnet_layer.6} parent=31 // pred_check
        %p1613 = pneg %p146
      $region42: #{resnet_layer.6} parent=31 // pred_check_branch
        %1615 = sbr.rel (%p1613) target = $region44
      $region43: #{resnet_layer.6} parent=31 // pred_region
        %s1616 = sadd.s32 %s22, %s23
        %s1617 = smul.u32 8, %s1616
      $region44: #{resnet_layer.6} parent=31 // pred_fallthru
        _
      // Predicated region
      $region45: #{resnet_layer.6} parent=31 // pred_check
        %p1618 = pneg %p172
      $region46: #{resnet_layer.6} parent=31 // pred_check_branch
        %1620 = sbr.rel (%p1618) target = $region48
      $region47: #{resnet_layer.6} parent=31 // pred_region
        _
      $region48: #{resnet_layer.6} parent=31 // pred_fallthru
        _
      // Predicated region
      $region49: #{resnet_layer.6} parent=31 // pred_check
        %p1621 = pneg %p198
      $region50: #{resnet_layer.6} parent=31 // pred_check_branch
        %1623 = sbr.rel (%p1621) target = $region52
      $region51: #{resnet_layer.6} parent=31 // pred_region
        _
      $region52: #{resnet_layer.6} parent=31 // pred_fallthru
        _
    $region32: #{resnet_layer.6} parent=5 // pred_fallthru
      _
    %p1624 = scmp.le.s32.totalorder 2, %s13
    // Predicated region
    $region53: #{resnet_layer.6} parent=5 // pred_check
      %p1625 = pneg %p1624
    $region54: #{resnet_layer.6} parent=5 // pred_check_branch
      %1627 = sbr.rel (%p1625) target = $region56
    $region55: #{resnet_layer.6} parent=5 // pred_region
      %s1628 = ssub.s32 %s13, 2
      // Predicated region
      $region57: #{resnet_layer.6} parent=55 // pred_check
        %p1629 = pneg %p124
      $region58: #{resnet_layer.6} parent=55 // pred_check_branch
        %1631 = sbr.rel (%p1629) target = $region60
      $region59: #{resnet_layer.6} parent=55 // pred_region
        %s1632 = sadd.s32 %s24, %s25
        %s1633 = smul.u32 8, %s1632
        %p1634 = scmp.lt.s32.totalorder %s1633, 15
        %s1635 = scalar_select %p1634, %s1633, 15
        %s1636 = smul.addr %s1635, 4
        %s1637 = scalar_lea.vmem %s3, %s1636
      $region60: #{resnet_layer.6} parent=55 // pred_fallthru
        _
      // Predicated region
      $region61: #{resnet_layer.6} parent=55 // pred_check
        %p1638 = pneg %p152
      $region62: #{resnet_layer.6} parent=55 // pred_check_branch
        %1640 = sbr.rel (%p1638) target = $region64
      $region63: #{resnet_layer.6} parent=55 // pred_region
        %s1641 = sadd.s32 %s24, %s25
        %s1642 = smul.u32 8, %s1641
        %p1643 = scmp.lt.s32.totalorder %s1642, 15
        %s1644 = scalar_select %p1643, %s1642, 15
        %s1645 = smul.addr %s1644, 4
        %s1646 = scalar_lea.vmem %s4, %s1645
      $region64: #{resnet_layer.6} parent=55 // pred_fallthru
        _
      // Predicated region
      $region65: #{resnet_layer.6} parent=55 // pred_check
        %p1647 = pneg %p178
      $region66: #{resnet_layer.6} parent=55 // pred_check_branch
        %1649 = sbr.rel (%p1647) target = $region68
      $region67: #{resnet_layer.6} parent=55 // pred_region
        %p1650 = scmp.lt.s32.totalorder %s24, 1
        %s1651 = scalar_select %p1650, %s24, 1
        %s1652 = smul.addr %s1651, 2
        %s1653 = scalar_lea.vmem %s5, %s1652
      $region68: #{resnet_layer.6} parent=55 // pred_fallthru
        _
      // Predicated region
      $region69: #{resnet_layer.6} parent=55 // pred_check
        %p1654 = pneg %p204
      $region70: #{resnet_layer.6} parent=55 // pred_check_branch
        %1656 = sbr.rel (%p1654) target = $region72
      $region71: #{resnet_layer.6} parent=55 // pred_region
        %p1657 = scmp.lt.s32.totalorder %s24, 1
        %s1658 = scalar_select %p1657, %s24, 1
        %s1659 = smul.addr %s1658, 2
        %s1660 = scalar_lea.vmem %s6, %s1659
      $region72: #{resnet_layer.6} parent=55 // pred_fallthru
        _
    $region56: #{resnet_layer.6} parent=5 // pred_fallthru
      _
  $region6: #{resnet_layer.6} parent=0 // loop_footer
    %s17 = sadd.s32 1, %s13
  $region7: #{resnet_layer.6} parent=0 // loop_footer_branch
    %12 = sbr.rel target = $region3
  $region8: #{resnet_layer.6} parent=0 // loop_exit
    _

// kernel: resnet_layer.7
$region0: #{resnet_layer.7}
  #allocation0 [shape = 'u32[]', space=smem, size = 0x4, offset = 0x4, fixed_abs, tag = 'smem constant byte address 0x4 - core index']
  #allocation1 [shape = 'u32[72,128]{1,0:T(1,128)}', space=vmem, size = 0x9000, scoped, tag = 'internal scratch']
  #allocation2 [shape = 'f32[10,17,128]{2,1,0:T(8,128)}', space=vmem, size = 0x1e000, scoped, tag = 'scratch operand']
  %s0 = inlined_call_operand.vmem [shape: bf16[16,8,128], index: 0, kind: input, shape index: {}]
  %s1 = inlined_call_operand.vmem [shape: f32[1,1,128], index: 1, kind: input, shape index: {}]
  %s2 = inlined_call_operand.vmem [shape: f32[1,1,128], index: 2, kind: input, shape index: {}]
  %s3 = inlined_call_operand.vmem [shape: bf16[9,128,128], index: 3, kind: input, shape index: {}]
  %s4 = inlined_call_operand.vmem [shape: bf16[16,8,128], index: 4, kind: output, shape index: {0}]
  %s5 = inlined_call_operand.vmem [shape: f32[2,2,128], index: 5, kind: output, shape index: {1}]
  %6 = xla_tuple %s4, %s5
  %s7 = sld [smem:[#allocation0]]
  $region61: #{resnet_layer.7} parent=0
    _
  %s9 = ssub.s32 1, %s7
  %s10 = scalar_select 0, %s9, %s7
  loop: start=0, step=1, limit=4
  $region2: #{resnet_layer.7} parent=0 // loop_pre_header
    _
  $region3: #{resnet_layer.7} parent=0 // loop_header
    %s12 = sphi 0, %s16
    %p13 = scmp.ge.s32.totalorder %s12, 4
    %s19 = sphi 0, %s31
    %s20 = sphi 0, %s27
    %s21 = sphi 0, %s19
    %s22 = sphi 0, %s20
    %s23 = sphi 0, %s21
    %s24 = sphi 0, %s22
    %s34 = sphi 0, %s36
    %s37 = sphi 0, %s34
    %s38 = sphi 0, %s37
    %s54 = sphi 0, %s38
    %s58 = sphi 0, %s58
    %s60 = sphi 0, %s58
    %s61 = sphi 0, %s60
    %s75 = sphi 0, %s61
    %s79 = sphi 0, %s79
    %s81 = sphi 0, %s79
    %s82 = sphi 0, %s81
    %s96 = sphi 0, %s82
    %s100 = sphi 0, %s100
    %s102 = sphi 0, %s100
    %s103 = sphi 0, %s102
    %s117 = sphi 0, %s103
    %s125 = sphi 0, %s127
    %s128 = sphi 0, %s125
    %s129 = sphi 0, %s128
    %s145 = sphi 0, %s129
    %s151 = sphi 0, %s153
    %s154 = sphi 0, %s151
    %s155 = sphi 0, %s154
    %s171 = sphi 0, %s155
  $region4: #{resnet_layer.7} parent=0 // loop_header_branch
    %15 = sbr.rel (%p13) target = $region8
  $region5: #{resnet_layer.7} parent=0 // loop_body
    %s17 = ssub.s32 %s12, 1
    %s18 = ssub.s32 %s12, 2
    %s25 = sadd.s32 1, %s20
    %p26 = scmp.ge.s32.totalorder %s25, 1
    %s27 = scalar_select %p26, 0, %s25
    %s28 = sadd.s32 1, %s19
    %s29 = scalar_select %p26, %s28, %s19
    %p30 = scmp.ge.s32.totalorder %s29, 2
    %s31 = scalar_select %p30, 0, %s29
    %s32 = ssub.s32 %s19, %s31
    %p33 = scmp.eq.s32.totalorder %s32, 0
    %s35 = sadd.s32 %s34, 1
    %s36 = scalar_select %p33, %s34, %s35
    %p39 = pneg %p33
    %p40 = scmp.eq.s32.totalorder %s12, 1
    %p41 = por %p39, %p40
    %p42 = scmp.ne.s32.totalorder %s34, %s37
    %p43 = scmp.eq.s32.totalorder %s12, 0
    %p44 = por %p42, %p43
    %p45 = scmp.ne.s32.totalorder %s34, %s37
    %p46 = scmp.eq.s32.totalorder %s17, 1
    %p47 = por %p45, %p46
    %p48 = scmp.ne.s32.totalorder %s37, %s38
    %p49 = scmp.eq.s32.totalorder %s17, 0
    %p50 = por %p48, %p49
    %p51 = scmp.ne.s32.totalorder %s37, %s38
    %p52 = scmp.eq.s32.totalorder %s18, 1
    %p53 = por %p51, %p52
    %p55 = scmp.ne.s32.totalorder %s38, %s54
    %p56 = scmp.eq.s32.totalorder %s18, 0
    %p57 = por %p55, %p56
    %s59 = sadd.s32 %s58, 1
    %p62 = scmp.eq.s32.totalorder %s12, 1
    %p63 = scmp.ne.s32.totalorder %s58, %s60
    %p64 = scmp.eq.s32.totalorder %s12, 0
    %p65 = por %p63, %p64
    %p66 = scmp.ne.s32.totalorder %s58, %s60
    %p67 = scmp.eq.s32.totalorder %s17, 1
    %p68 = por %p66, %p67
    %p69 = scmp.ne.s32.totalorder %s60, %s61
    %p70 = scmp.eq.s32.totalorder %s17, 0
    %p71 = por %p69, %p70
    %p72 = scmp.ne.s32.totalorder %s60, %s61
    %p73 = scmp.eq.s32.totalorder %s18, 1
    %p74 = por %p72, %p73
    %p76 = scmp.ne.s32.totalorder %s61, %s75
    %p77 = scmp.eq.s32.totalorder %s18, 0
    %p78 = por %p76, %p77
    %s80 = sadd.s32 %s79, 1
    %p83 = scmp.eq.s32.totalorder %s12, 1
    %p84 = scmp.ne.s32.totalorder %s79, %s81
    %p85 = scmp.eq.s32.totalorder %s12, 0
    %p86 = por %p84, %p85
    %p87 = scmp.ne.s32.totalorder %s79, %s81
    %p88 = scmp.eq.s32.totalorder %s17, 1
    %p89 = por %p87, %p88
    %p90 = scmp.ne.s32.totalorder %s81, %s82
    %p91 = scmp.eq.s32.totalorder %s17, 0
    %p92 = por %p90, %p91
    %p93 = scmp.ne.s32.totalorder %s81, %s82
    %p94 = scmp.eq.s32.totalorder %s18, 1
    %p95 = por %p93, %p94
    %p97 = scmp.ne.s32.totalorder %s82, %s96
    %p98 = scmp.eq.s32.totalorder %s18, 0
    %p99 = por %p97, %p98
    %s101 = sadd.s32 %s100, 1
    %p104 = scmp.eq.s32.totalorder %s12, 1
    %p105 = scmp.ne.s32.totalorder %s100, %s102
    %p106 = scmp.eq.s32.totalorder %s12, 0
    %p107 = por %p105, %p106
    %p108 = scmp.ne.s32.totalorder %s100, %s102
    %p109 = scmp.eq.s32.totalorder %s17, 1
    %p110 = por %p108, %p109
    %p111 = scmp.ne.s32.totalorder %s102, %s103
    %p112 = scmp.eq.s32.totalorder %s17, 0
    %p113 = por %p111, %p112
    %p114 = scmp.ne.s32.totalorder %s102, %s103
    %p115 = scmp.eq.s32.totalorder %s18, 1
    %p116 = por %p114, %p115
    %p118 = scmp.ne.s32.totalorder %s103, %s117
    %p119 = scmp.eq.s32.totalorder %s18, 0
    %p120 = por %p118, %p119
    %s121 = sadd.s32 %s19, %s20
    %s122 = sadd.s32 %s31, %s27
    %s123 = ssub.s32 %s121, %s122
    %p124 = scmp.eq.s32.totalorder %s123, 0
    %s126 = sadd.s32 %s125, 1
    %s127 = scalar_select %p124, %s125, %s126
    %p130 = pneg %p124
    %p131 = scmp.eq.s32.totalorder %s12, 1
    %p132 = por %p130, %p131
    %p133 = scmp.ne.s32.totalorder %s125, %s128
    %p134 = scmp.eq.s32.totalorder %s12, 0
    %p135 = por %p133, %p134
    %p136 = scmp.ne.s32.totalorder %s125, %s128
    %p137 = scmp.eq.s32.totalorder %s17, 1
    %p138 = por %p136, %p137
    %p139 = scmp.ne.s32.totalorder %s128, %s129
    %p140 = scmp.eq.s32.totalorder %s17, 0
    %p141 = por %p139, %p140
    %p142 = scmp.ne.s32.totalorder %s128, %s129
    %p143 = scmp.eq.s32.totalorder %s18, 1
    %p144 = por %p142, %p143
    %p146 = scmp.ne.s32.totalorder %s129, %s145
    %p147 = scmp.eq.s32.totalorder %s18, 0
    %p148 = por %p146, %p147
    %s149 = ssub.s32 %s19, %s31
    %p150 = scmp.eq.s32.totalorder %s149, 0
    %s152 = sadd.s32 %s151, 1
    %s153 = scalar_select %p150, %s151, %s152
    %p156 = pneg %p150
    %p157 = scmp.eq.s32.totalorder %s12, 1
    %p158 = por %p156, %p157
    %p159 = scmp.ne.s32.totalorder %s151, %s154
    %p160 = scmp.eq.s32.totalorder %s12, 0
    %p161 = por %p159, %p160
    %p162 = scmp.ne.s32.totalorder %s151, %s154
    %p163 = scmp.eq.s32.totalorder %s17, 1
    %p164 = por %p162, %p163
    %p165 = scmp.ne.s32.totalorder %s154, %s155
    %p166 = scmp.eq.s32.totalorder %s17, 0
    %p167 = por %p165, %p166
    %p168 = scmp.ne.s32.totalorder %s154, %s155
    %p169 = scmp.eq.s32.totalorder %s18, 1
    %p170 = por %p168, %p169
    %p172 = scmp.ne.s32.totalorder %s155, %s171
    %p173 = scmp.eq.s32.totalorder %s18, 0
    %p174 = por %p172, %p173
    %p175 = scmp.le.s32.totalorder 1, %s12
    %p176 = scmp.lt.s32.totalorder %s12, 3
    %p177 = pnand %p175, %p176
    %p178 = pneg %p177
    // Predicated region
    $region9: #{resnet_layer.7} parent=5 // pred_check
      _
    $region10: #{resnet_layer.7} parent=5 // pred_check_branch
      %180 = sbr.rel (%p177) target = $region12
    $region11: #{resnet_layer.7} parent=5 // pred_region
      %s181 = ssub.s32 %s12, 1
      // Predicated region
      $region13: #{resnet_layer.7} parent=11 // pred_check
        %p182 = pneg %p71
      $region14: #{resnet_layer.7} parent=11 // pred_check_branch
        %184 = sbr.rel (%p182) target = $region16
      $region15: #{resnet_layer.7} parent=11 // pred_region
        _
      $region16: #{resnet_layer.7} parent=11 // pred_fallthru
        _
      // Predicated region
      $region17: #{resnet_layer.7} parent=11 // pred_check
        %p185 = pneg %p92
      $region18: #{resnet_layer.7} parent=11 // pred_check_branch
        %187 = sbr.rel (%p185) target = $region20
      $region19: #{resnet_layer.7} parent=11 // pred_region
        _
      $region20: #{resnet_layer.7} parent=11 // pred_fallthru
        _
      // Predicated region
      $region21: #{resnet_layer.7} parent=11 // pred_check
        %p188 = pneg %p113
      $region22: #{resnet_layer.7} parent=11 // pred_check_branch
        %190 = sbr.rel (%p188) target = $region24
      $region23: #{resnet_layer.7} parent=11 // pred_region
        _
      $region24: #{resnet_layer.7} parent=11 // pred_fallthru
        _
    $region12: #{resnet_layer.7} parent=5 // pred_fallthru
      _
    %p191 = scmp.lt.s32.totalorder %s12, 2
    // Predicated region
    $region25: #{resnet_layer.7} parent=5 // pred_check
      %p192 = pneg %p191
    $region26: #{resnet_layer.7} parent=5 // pred_check_branch
      %194 = sbr.rel (%p192) target = $region28
    $region27: #{resnet_layer.7} parent=5 // pred_region
      // Predicated region
      $region29: #{resnet_layer.7} parent=27 // pred_check
        %p195 = pneg %p44
      $region30: #{resnet_layer.7} parent=27 // pred_check_branch
        %197 = sbr.rel (%p195) target = $region32
      $region31: #{resnet_layer.7} parent=27 // pred_region
        %s198 = smul.u32 8, %s19
        %p199 = scmp.lt.s32.totalorder %s198, 15
        %s200 = scalar_select %p199, %s198, 15
        %s201 = smul.addr %s200, 4
        %s202 = scalar_lea.vmem %s0, %s201
        %s203 = smul.u32 8, %s19
      $region32: #{resnet_layer.7} parent=27 // pred_fallthru
        _
    $region28: #{resnet_layer.7} parent=5 // pred_fallthru
      _
    %p204 = scmp.le.s32.totalorder 1, %s12
    %p205 = scmp.lt.s32.totalorder %s12, 3
    %p206 = pnand %p204, %p205
    %p207 = pneg %p206
    // Predicated region
    $region33: #{resnet_layer.7} parent=5 // pred_check
      _
    $region34: #{resnet_layer.7} parent=5 // pred_check_branch
      %209 = sbr.rel (%p206) target = $region36
    $region35: #{resnet_layer.7} parent=5 // pred_region
      %s210 = ssub.s32 %s12, 1
      %s211 = smul.u32 8, %s21
      %p212 = scmp.lt.s32.totalorder %s211, 15
      %s213 = scalar_select %p212, %s211, 15
      %s214 = smul.addr %s213, 4
      %s215 = scalar_lea.vmem %s0, %s214
      %p216 = pneg %p50
      %p217 = pneg %p47
      %p218 = pneg %p71
      %p219 = pneg %p68
      %p220 = pneg %p92
      %p221 = pneg %p89
      %p222 = pneg %p113
      %p223 = pneg %p110
      %p224 = pneg %p141
      %p225 = pneg %p138
      %s226 = sadd.s32 %s21, %s22
      %s227 = smul.u32 8, %s226
      %p228 = scmp.lt.s32.totalorder %s227, 15
      %s229 = scalar_select %p228, %s227, 15
      %s230 = smul.addr %s229, 4
      %s231 = scalar_lea.vmem %s4, %s230
      %p232 = pneg %p167
      %p233 = pneg %p164
      %p234 = scmp.lt.s32.totalorder %s21, 1
      %s235 = scalar_select %p234, %s21, 1
      %s236 = smul.addr %s235, 2
      %s237 = scalar_lea.vmem %s5, %s236
      %s238 = smul.u32 8, %s21
      %p239 = scmp.lt.s32.totalorder %s238, 15
      %s240 = scalar_select %p239, %s238, 15
      %s241 = smul.addr %s240, 4
      %s242 = scalar_lea.vmem %s0, %s241
      %s243 = smul.u32 8, %s21
      %s244 = sadd.s32 %s21, %s22
      %s245 = smul.u32 8, %s244
      %p246 = scmp.lt.s32.totalorder %s245, 15
      %s247 = scalar_select %p246, %s245, 15
      %s248 = smul.addr %s247, 4
      %s249 = scalar_lea.vmem %s4, %s248
      %s250 = sadd.s32 %s21, %s22
      %s251 = smul.u32 8, %s250
      %p252 = scmp.lt.s32.totalorder %s21, 1
      %s253 = scalar_select %p252, %s21, 1
      %s254 = smul.addr %s253, 2
      %s255 = scalar_lea.vmem %s5, %s254
      %p256 = scmp.eq.s32.totalorder %s22, 0
      // Predicated region
      $region37: #{resnet_layer.7} parent=35 // pred_check
        %p257 = pneg %p256
      $region38: #{resnet_layer.7} parent=35 // pred_check_branch
        %259 = sbr.rel (%p257) target = $region40
      $region39: #{resnet_layer.7} parent=35 // pred_region
        %260 = vst [vmem:[#allocation2] sm:$0xff] 0.0
        %261 = vst [vmem:[#allocation2 + $0x8] sm:$0xff] 0.0
        %262 = vst [vmem:[#allocation2 + $0x10] sm:$0x1] 0.0
        %263 = vst [vmem:[#allocation2 + $0x18] sm:$0xff] 0.0
        %264 = vst [vmem:[#allocation2 + $0x20] sm:$0xff] 0.0
        %265 = vst [vmem:[#allocation2 + $0x28] sm:$0x1] 0.0
        %266 = vst [vmem:[#allocation2 + $0x30] sm:$0xff] 0.0
        %267 = vst [vmem:[#allocation2 + $0x38] sm:$0xff] 0.0
        %268 = vst [vmem:[#allocation2 + $0x40] sm:$0x1] 0.0
        %269 = vst [vmem:[#allocation2 + $0x48] sm:$0xff] 0.0
        %270 = vst [vmem:[#allocation2 + $0x50] sm:$0xff] 0.0
        %271 = vst [vmem:[#allocation2 + $0x58] sm:$0x1] 0.0
        %272 = vst [vmem:[#allocation2 + $0x60] sm:$0xff] 0.0
        %273 = vst [vmem:[#allocation2 + $0x68] sm:$0xff] 0.0
        %274 = vst [vmem:[#allocation2 + $0x70] sm:$0x1] 0.0
        %275 = vst [vmem:[#allocation2 + $0x78] sm:$0xff] 0.0
        %276 = vst [vmem:[#allocation2 + $0x80] sm:$0xff] 0.0
        %277 = vst [vmem:[#allocation2 + $0x88] sm:$0x1] 0.0
        %278 = vst [vmem:[#allocation2 + $0x90] sm:$0xff] 0.0
        %279 = vst [vmem:[#allocation2 + $0x98] sm:$0xff] 0.0
        %280 = vst [vmem:[#allocation2 + $0xa0] sm:$0x1] 0.0
        %281 = vst [vmem:[#allocation2 + $0xa8] sm:$0xff] 0.0
        %282 = vst [vmem:[#allocation2 + $0xb0] sm:$0xff] 0.0
        %283 = vst [vmem:[#allocation2 + $0xb8] sm:$0x1] 0.0
        %284 = vst [vmem:[#allocation2 + $0xc0] sm:$0xff] 0.0
        %285 = vst [vmem:[#allocation2 + $0xc8] sm:$0xff] 0.0
        %286 = vst [vmem:[#allocation2 + $0xd0] sm:$0x1] 0.0
        %287 = vst [vmem:[#allocation2 + $0xd8] sm:$0xff] 0.0
        %288 = vst [vmem:[#allocation2 + $0xe0] sm:$0xff] 0.0
        %289 = vst [vmem:[#allocation2 + $0xe8] sm:$0x1] 0.0
        %v290 = vld [vmem:[%s242] sm:$0xf]
        %v291 = vld [vmem:[%s242 + $0x4] sm:$0xf]
        %v292 = vld [vmem:[%s242 + $0x8] sm:$0xf]
        %v293 = vld [vmem:[%s242 + $0xc] sm:$0xf]
        %v294 = vld [vmem:[%s242 + $0x10] sm:$0xf]
        %v295 = vld [vmem:[%s242 + $0x14] sm:$0xf]
        %v296 = vld [vmem:[%s242 + $0x18] sm:$0xf]
        %v297 = vld [vmem:[%s242 + $0x1c] sm:$0xf]
        %v298 = vunpack.c.l.bf16 %v290
        %v299 = vunpack.c.l.bf16 %v291
        %v300 = vunpack.c.l.bf16 %v292
        %v301 = vunpack.c.l.bf16 %v293
        %v302 = vunpack.c.l.bf16 %v294
        %v303 = vunpack.c.l.bf16 %v295
        %v304 = vunpack.c.l.bf16 %v296
        %v305 = vunpack.c.l.bf16 %v297
        %v306 = vld [vmem:[%s1] sm:$0x1]
        %v308 = vperm.slane %v306, 0
        %v310 = vmul.f32 %v298, %v308
        %v311 = vmul.f32 %v299, %v308
        %v312 = vmul.f32 %v300, %v308
        %v313 = vmul.f32 %v301, %v308
        %v314 = vmul.f32 %v302, %v308
        %v315 = vmul.f32 %v303, %v308
        %v316 = vmul.f32 %v304, %v308
        %v317 = vmul.f32 %v305, %v308
        %v318 = vld [vmem:[%s2] sm:$0x1]
        %v320 = vperm.slane %v318, 0
        %v322 = vadd.f32 %v310, %v320
        %v323 = vadd.f32 %v311, %v320
        %v324 = vadd.f32 %v312, %v320
        %v325 = vadd.f32 %v313, %v320
        %v326 = vadd.f32 %v314, %v320
        %v327 = vadd.f32 %v315, %v320
        %v328 = vadd.f32 %v316, %v320
        %v329 = vadd.f32 %v317, %v320
        %vm330 = vcmp.ge.f32.partialorder %v322, 0.0
        %vm331 = vcmp.ge.f32.partialorder %v323, 0.0
        %vm332 = vcmp.ge.f32.partialorder %v324, 0.0
        %vm333 = vcmp.ge.f32.partialorder %v325, 0.0
        %vm334 = vcmp.ge.f32.partialorder %v326, 0.0
        %vm335 = vcmp.ge.f32.partialorder %v327, 0.0
        %vm336 = vcmp.ge.f32.partialorder %v328, 0.0
        %vm337 = vcmp.ge.f32.partialorder %v329, 0.0
        %v338 = vmul.f32 %v322, 0.01
        %v339 = vmul.f32 %v323, 0.01
        %v340 = vmul.f32 %v324, 0.01
        %v341 = vmul.f32 %v325, 0.01
        %v342 = vmul.f32 %v326, 0.01
        %v343 = vmul.f32 %v327, 0.01
        %v344 = vmul.f32 %v328, 0.01
        %v345 = vmul.f32 %v329, 0.01
        %v346 = vsel %vm330, %v322, %v338
        %v347 = vsel %vm331, %v323, %v339
        %v348 = vsel %vm332, %v324, %v340
        %v349 = vsel %vm333, %v325, %v341
        %v350 = vsel %vm334, %v326, %v342
        %v351 = vsel %vm335, %v327, %v343
        %v352 = vsel %vm336, %v328, %v344
        %v353 = vsel %vm337, %v329, %v345
        %s354 = scalar_lea.vmem [#allocation2], 24
        %355 = vst [vmem:[%s354 + $0x8] sm:$0xff] %v346
        %356 = vst [vmem:[%s354 + $0x20] sm:$0xff] %v347
        %357 = vst [vmem:[%s354 + $0x38] sm:$0xff] %v348
        %358 = vst [vmem:[%s354 + $0x50] sm:$0xff] %v349
        %359 = vst [vmem:[%s354 + $0x68] sm:$0xff] %v350
        %360 = vst [vmem:[%s354 + $0x80] sm:$0xff] %v351
        %361 = vst [vmem:[%s354 + $0x98] sm:$0xff] %v352
        %362 = vst [vmem:[%s354 + $0xb0] sm:$0xff] %v353
        %363 = vst [vmem:[%s255] sm:$0x3] 0.0
      $region40: #{resnet_layer.7} parent=35 // pred_fallthru
        _
      %s364 = smul.u32 %s22, 8
      %s365 = smul.u32 %s364, 24
      %s366 = scalar_lea.vmem [#allocation2], %s365
      %v367 = vld [vmem:[%s366 + $0x7] sm:$0xff]
      %v368 = vld [vmem:[%s366 + $0x1f] sm:$0xff]
      %v369 = vld [vmem:[%s366 + $0x37] sm:$0xff]
      %v370 = vld [vmem:[%s366 + $0x4f] sm:$0xff]
      %v371 = vld [vmem:[%s366 + $0x67] sm:$0xff]
      %v372 = vld [vmem:[%s366 + $0x7f] sm:$0xff]
      %v373 = vld [vmem:[%s366 + $0x97] sm:$0xff]
      %v374 = vld [vmem:[%s366 + $0xaf] sm:$0xff]
      %v375 = vpack.c.bf16 %v368, %v367
      %v376 = vpack.c.bf16 %v370, %v369
      %v377 = vpack.c.bf16 %v372, %v371
      %v378 = vpack.c.bf16 %v374, %v373
      %v379 = vld [vmem:[%s3] sm:$0xf]
      %v380 = vld [vmem:[%s3 + $0x4] sm:$0xf]
      %v381 = vld [vmem:[%s3 + $0x8] sm:$0xf]
      %v382 = vld [vmem:[%s3 + $0xc] sm:$0xf]
      %v383 = vld [vmem:[%s3 + $0x10] sm:$0xf]
      %v384 = vld [vmem:[%s3 + $0x14] sm:$0xf]
      %v385 = vld [vmem:[%s3 + $0x18] sm:$0xf]
      %v386 = vld [vmem:[%s3 + $0x1c] sm:$0xf]
      %v387 = vld [vmem:[%s3 + $0x20] sm:$0xf]
      %v388 = vld [vmem:[%s3 + $0x24] sm:$0xf]
      %v389 = vld [vmem:[%s3 + $0x28] sm:$0xf]
      %v390 = vld [vmem:[%s3 + $0x2c] sm:$0xf]
      %v391 = vld [vmem:[%s3 + $0x30] sm:$0xf]
      %v392 = vld [vmem:[%s3 + $0x34] sm:$0xf]
      %v393 = vld [vmem:[%s3 + $0x38] sm:$0xf]
      %v394 = vld [vmem:[%s3 + $0x3c] sm:$0xf]
      %v395 = vld [vmem:[%s366 + $0x8] sm:$0xff]
      %v396 = vld [vmem:[%s366 + $0x20] sm:$0xff]
      %v397 = vld [vmem:[%s366 + $0x38] sm:$0xff]
      %v398 = vld [vmem:[%s366 + $0x50] sm:$0xff]
      %v399 = vld [vmem:[%s366 + $0x68] sm:$0xff]
      %v400 = vld [vmem:[%s366 + $0x80] sm:$0xff]
      %v401 = vld [vmem:[%s366 + $0x98] sm:$0xff]
      %v402 = vld [vmem:[%s366 + $0xb0] sm:$0xff]
      %v403 = vpack.c.bf16 %v396, %v395
      %v404 = vpack.c.bf16 %v398, %v397
      %v405 = vpack.c.bf16 %v400, %v399
      %v406 = vpack.c.bf16 %v402, %v401
      %s407 = scalar_lea.vmem %s3, 64
      %v408 = vld [vmem:[%s407] sm:$0xf]
      %v409 = vld [vmem:[%s407 + $0x4] sm:$0xf]
      %v410 = vld [vmem:[%s407 + $0x8] sm:$0xf]
      %v411 = vld [vmem:[%s407 + $0xc] sm:$0xf]
      %v412 = vld [vmem:[%s407 + $0x10] sm:$0xf]
      %v413 = vld [vmem:[%s407 + $0x14] sm:$0xf]
      %v414 = vld [vmem:[%s407 + $0x18] sm:$0xf]
      %v415 = vld [vmem:[%s407 + $0x1c] sm:$0xf]
      %v416 = vld [vmem:[%s407 + $0x20] sm:$0xf]
      %v417 = vld [vmem:[%s407 + $0x24] sm:$0xf]
      %v418 = vld [vmem:[%s407 + $0x28] sm:$0xf]
      %v419 = vld [vmem:[%s407 + $0x2c] sm:$0xf]
      %v420 = vld [vmem:[%s407 + $0x30] sm:$0xf]
      %v421 = vld [vmem:[%s407 + $0x34] sm:$0xf]
      %v422 = vld [vmem:[%s407 + $0x38] sm:$0xf]
      %v423 = vld [vmem:[%s407 + $0x3c] sm:$0xf]
      %v440 = vunpack.c.l.b16 %v408
      %v441 = vunpack.c.l.b16 %v409
      %v442 = vunpack.c.l.b16 %v410
      %v443 = vunpack.c.l.b16 %v411
      %v444 = vunpack.c.l.b16 %v412
      %v445 = vunpack.c.l.b16 %v413
      %v446 = vunpack.c.l.b16 %v414
      %v447 = vunpack.c.l.b16 %v415
      %v448 = vunpack.c.l.b16 %v416
      %v449 = vunpack.c.l.b16 %v417
      %v450 = vunpack.c.l.b16 %v418
      %v451 = vunpack.c.l.b16 %v419
      %v452 = vunpack.c.l.b16 %v420
      %v453 = vunpack.c.l.b16 %v421
      %v454 = vunpack.c.l.b16 %v422
      %v455 = vunpack.c.l.b16 %v423
      %v456 = vpack.c.b16 %v441, %v440
      %v457 = vpack.c.b16 %v443, %v442
      %v458 = vpack.c.b16 %v445, %v444
      %v459 = vpack.c.b16 %v447, %v446
      %v460 = vpack.c.b16 %v449, %v448
      %v461 = vpack.c.b16 %v451, %v450
      %v462 = vpack.c.b16 %v453, %v452
      %v463 = vpack.c.b16 %v455, %v454
      %472 = vmatpush.bf16.msra.mxu0 %v463
      %473 = vmatpush.bf16.msra.mxu0 %v462
      %474 = vmatpush.bf16.msra.mxu0 %v461
      %475 = vmatpush.bf16.msra.mxu0 %v460
      %476 = vmatpush.bf16.msra.mxu0 %v459
      %477 = vmatpush.bf16.msra.mxu0 %v458
      %478 = vmatpush.bf16.msra.mxu0 %v457
      %479 = vmatpush.bf16.msra.mxu0 %v456
      %480 = vmatmul.bf16.gmra.mxu0 %v403
      %v481 = vpop.f32.mrf.mxu0
      %v482 = vadd.f32 0.0, %v481
      %v483 = vpop.f32.mrf.mxu0
      %v484 = vadd.f32 0.0, %v483
      %485 = vmatmul.bf16.gmra.mxu0 %v404
      %v486 = vpop.f32.mrf.mxu0
      %v487 = vadd.f32 0.0, %v486
      %v488 = vpop.f32.mrf.mxu0
      %v489 = vadd.f32 0.0, %v488
      %490 = vmatmul.bf16.gmra.mxu0 %v405
      %v491 = vpop.f32.mrf.mxu0
      %v492 = vadd.f32 0.0, %v491
      %v493 = vpop.f32.mrf.mxu0
      %v494 = vadd.f32 0.0, %v493
      %495 = vmatmul.bf16.gmra.mxu0 %v406
      %v496 = vpop.f32.mrf.mxu0
      %v497 = vadd.f32 0.0, %v496
      %v498 = vpop.f32.mrf.mxu0
      %v499 = vadd.f32 0.0, %v498
      %500 = vdwg.mxu0
      %v517 = vunpack.c.l.b16 %v379
      %v518 = vunpack.c.l.b16 %v380
      %v519 = vunpack.c.l.b16 %v381
      %v520 = vunpack.c.l.b16 %v382
      %v521 = vunpack.c.l.b16 %v383
      %v522 = vunpack.c.l.b16 %v384
      %v523 = vunpack.c.l.b16 %v385
      %v524 = vunpack.c.l.b16 %v386
      %v525 = vunpack.c.l.b16 %v387
      %v526 = vunpack.c.l.b16 %v388
      %v527 = vunpack.c.l.b16 %v389
      %v528 = vunpack.c.l.b16 %v390
      %v529 = vunpack.c.l.b16 %v391
      %v530 = vunpack.c.l.b16 %v392
      %v531 = vunpack.c.l.b16 %v393
      %v532 = vunpack.c.l.b16 %v394
      %v533 = vpack.c.b16 %v518, %v517
      %v534 = vpack.c.b16 %v520, %v519
      %v535 = vpack.c.b16 %v522, %v521
      %v536 = vpack.c.b16 %v524, %v523
      %v537 = vpack.c.b16 %v526, %v525
      %v538 = vpack.c.b16 %v528, %v527
      %v539 = vpack.c.b16 %v530, %v529
      %v540 = vpack.c.b16 %v532, %v531
      %549 = vmatpush.bf16.msra.mxu0 %v540
      %550 = vmatpush.bf16.msra.mxu0 %v539
      %551 = vmatpush.bf16.msra.mxu0 %v538
      %552 = vmatpush.bf16.msra.mxu0 %v537
      %553 = vmatpush.bf16.msra.mxu0 %v536
      %554 = vmatpush.bf16.msra.mxu0 %v535
      %555 = vmatpush.bf16.msra.mxu0 %v534
      %556 = vmatpush.bf16.msra.mxu0 %v533
      %557 = vmatmul.bf16.gmra.mxu0 %v375
      %v558 = vpop.f32.mrf.mxu0
      %v559 = vadd.f32 %v482, %v558
      %v560 = vpop.f32.mrf.mxu0
      %v561 = vadd.f32 %v484, %v560
      %562 = vmatmul.bf16.gmra.mxu0 %v376
      %v563 = vpop.f32.mrf.mxu0
      %v564 = vadd.f32 %v487, %v563
      %v565 = vpop.f32.mrf.mxu0
      %v566 = vadd.f32 %v489, %v565
      %567 = vmatmul.bf16.gmra.mxu0 %v377
      %v568 = vpop.f32.mrf.mxu0
      %v569 = vadd.f32 %v492, %v568
      %v570 = vpop.f32.mrf.mxu0
      %v571 = vadd.f32 %v494, %v570
      %572 = vmatmul.bf16.gmra.mxu0 %v378
      %v573 = vpop.f32.mrf.mxu0
      %v574 = vadd.f32 %v497, %v573
      %v575 = vpop.f32.mrf.mxu0
      %v576 = vadd.f32 %v499, %v575
      %577 = vdwg.mxu0
      %v578 = vld [vmem:[%s366 + $0x9] sm:$0xff]
      %v579 = vld [vmem:[%s366 + $0x21] sm:$0xff]
      %v580 = vld [vmem:[%s366 + $0x39] sm:$0xff]
      %v581 = vld [vmem:[%s366 + $0x51] sm:$0xff]
      %v582 = vld [vmem:[%s366 + $0x69] sm:$0xff]
      %v583 = vld [vmem:[%s366 + $0x81] sm:$0xff]
      %v584 = vld [vmem:[%s366 + $0x99] sm:$0xff]
      %v585 = vld [vmem:[%s366 + $0xb1] sm:$0xff]
      %v586 = vpack.c.bf16 %v579, %v578
      %v587 = vpack.c.bf16 %v581, %v580
      %v588 = vpack.c.bf16 %v583, %v582
      %v589 = vpack.c.bf16 %v585, %v584
      %s590 = scalar_lea.vmem %s3, 128
      %v591 = vld [vmem:[%s590] sm:$0xf]
      %v592 = vld [vmem:[%s590 + $0x4] sm:$0xf]
      %v593 = vld [vmem:[%s590 + $0x8] sm:$0xf]
      %v594 = vld [vmem:[%s590 + $0xc] sm:$0xf]
      %v595 = vld [vmem:[%s590 + $0x10] sm:$0xf]
      %v596 = vld [vmem:[%s590 + $0x14] sm:$0xf]
      %v597 = vld [vmem:[%s590 + $0x18] sm:$0xf]
      %v598 = vld [vmem:[%s590 + $0x1c] sm:$0xf]
      %v599 = vld [vmem:[%s590 + $0x20] sm:$0xf]
      %v600 = vld [vmem:[%s590 + $0x24] sm:$0xf]
      %v601 = vld [vmem:[%s590 + $0x28] sm:$0xf]
      %v602 = vld [vmem:[%s590 + $0x2c] sm:$0xf]
      %v603 = vld [vmem:[%s590 + $0x30] sm:$0xf]
      %v604 = vld [vmem:[%s590 + $0x34] sm:$0xf]
      %v605 = vld [vmem:[%s590 + $0x38] sm:$0xf]
      %v606 = vld [vmem:[%s590 + $0x3c] sm:$0xf]
      %v623 = vunpack.c.l.b16 %v591
      %v624 = vunpack.c.l.b16 %v592
      %v625 = vunpack.c.l.b16 %v593
      %v626 = vunpack.c.l.b16 %v594
      %v627 = vunpack.c.l.b16 %v595
      %v628 = vunpack.c.l.b16 %v596
      %v629 = vunpack.c.l.b16 %v597
      %v630 = vunpack.c.l.b16 %v598
      %v631 = vunpack.c.l.b16 %v599
      %v632 = vunpack.c.l.b16 %v600
      %v633 = vunpack.c.l.b16 %v601
      %v634 = vunpack.c.l.b16 %v602
      %v635 = vunpack.c.l.b16 %v603
      %v636 = vunpack.c.l.b16 %v604
      %v637 = vunpack.c.l.b16 %v605
      %v638 = vunpack.c.l.b16 %v606
      %v639 = vpack.c.b16 %v624, %v623
      %v640 = vpack.c.b16 %v626, %v625
      %v641 = vpack.c.b16 %v628, %v627
      %v642 = vpack.c.b16 %v630, %v629
      %v643 = vpack.c.b16 %v632, %v631
      %v644 = vpack.c.b16 %v634, %v633
      %v645 = vpack.c.b16 %v636, %v635
      %v646 = vpack.c.b16 %v638, %v637
      %655 = vmatpush.bf16.msra.mxu0 %v646
      %656 = vmatpush.bf16.msra.mxu0 %v645
      %657 = vmatpush.bf16.msra.mxu0 %v644
      %658 = vmatpush.bf16.msra.mxu0 %v643
      %659 = vmatpush.bf16.msra.mxu0 %v642
      %660 = vmatpush.bf16.msra.mxu0 %v641
      %661 = vmatpush.bf16.msra.mxu0 %v640
      %662 = vmatpush.bf16.msra.mxu0 %v639
      %663 = vmatmul.bf16.gmra.mxu0 %v586
      %v664 = vpop.f32.mrf.mxu0
      %v665 = vadd.f32 0.0, %v664
      %v666 = vpop.f32.mrf.mxu0
      %v667 = vadd.f32 0.0, %v666
      %668 = vmatmul.bf16.gmra.mxu0 %v587
      %v669 = vpop.f32.mrf.mxu0
      %v670 = vadd.f32 0.0, %v669
      %v671 = vpop.f32.mrf.mxu0
      %v672 = vadd.f32 0.0, %v671
      %673 = vmatmul.bf16.gmra.mxu0 %v588
      %v674 = vpop.f32.mrf.mxu0
      %v675 = vadd.f32 0.0, %v674
      %v676 = vpop.f32.mrf.mxu0
      %v677 = vadd.f32 0.0, %v676
      %678 = vmatmul.bf16.gmra.mxu0 %v589
      %v679 = vpop.f32.mrf.mxu0
      %v680 = vadd.f32 0.0, %v679
      %v681 = vpop.f32.mrf.mxu0
      %v682 = vadd.f32 0.0, %v681
      %683 = vdwg.mxu0
      %v684 = vadd.f32 %v559, %v665
      %v685 = vadd.f32 %v561, %v667
      %v686 = vadd.f32 %v564, %v670
      %v687 = vadd.f32 %v566, %v672
      %v688 = vadd.f32 %v569, %v675
      %v689 = vadd.f32 %v571, %v677
      %v690 = vadd.f32 %v574, %v680
      %v691 = vadd.f32 %v576, %v682
      %s692 = sadd.s32 %s364, 1
      %s693 = smul.u32 %s692, 24
      %s694 = scalar_lea.vmem [#allocation2], %s693
      %v695 = vld [vmem:[%s694 + $0x7] sm:$0xff]
      %v696 = vld [vmem:[%s694 + $0x1f] sm:$0xff]
      %v697 = vld [vmem:[%s694 + $0x37] sm:$0xff]
      %v698 = vld [vmem:[%s694 + $0x4f] sm:$0xff]
      %v699 = vld [vmem:[%s694 + $0x67] sm:$0xff]
      %v700 = vld [vmem:[%s694 + $0x7f] sm:$0xff]
      %v701 = vld [vmem:[%s694 + $0x97] sm:$0xff]
      %v702 = vld [vmem:[%s694 + $0xaf] sm:$0xff]
      %v703 = vpack.c.bf16 %v696, %v695
      %v704 = vpack.c.bf16 %v698, %v697
      %v705 = vpack.c.bf16 %v700, %v699
      %v706 = vpack.c.bf16 %v702, %v701
      %s707 = scalar_lea.vmem %s3, 192
      %v708 = vld [vmem:[%s707] sm:$0xf]
      %v709 = vld [vmem:[%s707 + $0x4] sm:$0xf]
      %v710 = vld [vmem:[%s707 + $0x8] sm:$0xf]
      %v711 = vld [vmem:[%s707 + $0xc] sm:$0xf]
      %v712 = vld [vmem:[%s707 + $0x10] sm:$0xf]
      %v713 = vld [vmem:[%s707 + $0x14] sm:$0xf]
      %v714 = vld [vmem:[%s707 + $0x18] sm:$0xf]
      %v715 = vld [vmem:[%s707 + $0x1c] sm:$0xf]
      %v716 = vld [vmem:[%s707 + $0x20] sm:$0xf]
      %v717 = vld [vmem:[%s707 + $0x24] sm:$0xf]
      %v718 = vld [vmem:[%s707 + $0x28] sm:$0xf]
      %v719 = vld [vmem:[%s707 + $0x2c] sm:$0xf]
      %v720 = vld [vmem:[%s707 + $0x30] sm:$0xf]
      %v721 = vld [vmem:[%s707 + $0x34] sm:$0xf]
      %v722 = vld [vmem:[%s707 + $0x38] sm:$0xf]
      %v723 = vld [vmem:[%s707 + $0x3c] sm:$0xf]
      %v740 = vunpack.c.l.b16 %v708
      %v741 = vunpack.c.l.b16 %v709
      %v742 = vunpack.c.l.b16 %v710
      %v743 = vunpack.c.l.b16 %v711
      %v744 = vunpack.c.l.b16 %v712
      %v745 = vunpack.c.l.b16 %v713
      %v746 = vunpack.c.l.b16 %v714
      %v747 = vunpack.c.l.b16 %v715
      %v748 = vunpack.c.l.b16 %v716
      %v749 = vunpack.c.l.b16 %v717
      %v750 = vunpack.c.l.b16 %v718
      %v751 = vunpack.c.l.b16 %v719
      %v752 = vunpack.c.l.b16 %v720
      %v753 = vunpack.c.l.b16 %v721
      %v754 = vunpack.c.l.b16 %v722
      %v755 = vunpack.c.l.b16 %v723
      %v756 = vpack.c.b16 %v741, %v740
      %v757 = vpack.c.b16 %v743, %v742
      %v758 = vpack.c.b16 %v745, %v744
      %v759 = vpack.c.b16 %v747, %v746
      %v760 = vpack.c.b16 %v749, %v748
      %v761 = vpack.c.b16 %v751, %v750
      %v762 = vpack.c.b16 %v753, %v752
      %v763 = vpack.c.b16 %v755, %v754
      %772 = vmatpush.bf16.msra.mxu0 %v763
      %773 = vmatpush.bf16.msra.mxu0 %v762
      %774 = vmatpush.bf16.msra.mxu0 %v761
      %775 = vmatpush.bf16.msra.mxu0 %v760
      %776 = vmatpush.bf16.msra.mxu0 %v759
      %777 = vmatpush.bf16.msra.mxu0 %v758
      %778 = vmatpush.bf16.msra.mxu0 %v757
      %779 = vmatpush.bf16.msra.mxu0 %v756
      %780 = vmatmul.bf16.gmra.mxu0 %v703
      %v781 = vpop.f32.mrf.mxu0
      %v782 = vadd.f32 0.0, %v781
      %v783 = vpop.f32.mrf.mxu0
      %v784 = vadd.f32 0.0, %v783
      %785 = vmatmul.bf16.gmra.mxu0 %v704
      %v786 = vpop.f32.mrf.mxu0
      %v787 = vadd.f32 0.0, %v786
      %v788 = vpop.f32.mrf.mxu0
      %v789 = vadd.f32 0.0, %v788
      %790 = vmatmul.bf16.gmra.mxu0 %v705
      %v791 = vpop.f32.mrf.mxu0
      %v792 = vadd.f32 0.0, %v791
      %v793 = vpop.f32.mrf.mxu0
      %v794 = vadd.f32 0.0, %v793
      %795 = vmatmul.bf16.gmra.mxu0 %v706
      %v796 = vpop.f32.mrf.mxu0
      %v797 = vadd.f32 0.0, %v796
      %v798 = vpop.f32.mrf.mxu0
      %v799 = vadd.f32 0.0, %v798
      %800 = vdwg.mxu0
      %v801 = vadd.f32 %v684, %v782
      %v802 = vadd.f32 %v685, %v784
      %v803 = vadd.f32 %v686, %v787
      %v804 = vadd.f32 %v687, %v789
      %v805 = vadd.f32 %v688, %v792
      %v806 = vadd.f32 %v689, %v794
      %v807 = vadd.f32 %v690, %v797
      %v808 = vadd.f32 %v691, %v799
      %v809 = vld [vmem:[%s694 + $0x8] sm:$0xff]
      %v810 = vld [vmem:[%s694 + $0x20] sm:$0xff]
      %v811 = vld [vmem:[%s694 + $0x38] sm:$0xff]
      %v812 = vld [vmem:[%s694 + $0x50] sm:$0xff]
      %v813 = vld [vmem:[%s694 + $0x68] sm:$0xff]
      %v814 = vld [vmem:[%s694 + $0x80] sm:$0xff]
      %v815 = vld [vmem:[%s694 + $0x98] sm:$0xff]
      %v816 = vld [vmem:[%s694 + $0xb0] sm:$0xff]
      %v817 = vpack.c.bf16 %v810, %v809
      %v818 = vpack.c.bf16 %v812, %v811
      %v819 = vpack.c.bf16 %v814, %v813
      %v820 = vpack.c.bf16 %v816, %v815
      %s821 = scalar_lea.vmem %s3, 256
      %v822 = vld [vmem:[%s821] sm:$0xf]
      %v823 = vld [vmem:[%s821 + $0x4] sm:$0xf]
      %v824 = vld [vmem:[%s821 + $0x8] sm:$0xf]
      %v825 = vld [vmem:[%s821 + $0xc] sm:$0xf]
      %v826 = vld [vmem:[%s821 + $0x10] sm:$0xf]
      %v827 = vld [vmem:[%s821 + $0x14] sm:$0xf]
      %v828 = vld [vmem:[%s821 + $0x18] sm:$0xf]
      %v829 = vld [vmem:[%s821 + $0x1c] sm:$0xf]
      %v830 = vld [vmem:[%s821 + $0x20] sm:$0xf]
      %v831 = vld [vmem:[%s821 + $0x24] sm:$0xf]
      %v832 = vld [vmem:[%s821 + $0x28] sm:$0xf]
      %v833 = vld [vmem:[%s821 + $0x2c] sm:$0xf]
      %v834 = vld [vmem:[%s821 + $0x30] sm:$0xf]
      %v835 = vld [vmem:[%s821 + $0x34] sm:$0xf]
      %v836 = vld [vmem:[%s821 + $0x38] sm:$0xf]
      %v837 = vld [vmem:[%s821 + $0x3c] sm:$0xf]
      %v854 = vunpack.c.l.b16 %v822
      %v855 = vunpack.c.l.b16 %v823
      %v856 = vunpack.c.l.b16 %v824
      %v857 = vunpack.c.l.b16 %v825
      %v858 = vunpack.c.l.b16 %v826
      %v859 = vunpack.c.l.b16 %v827
      %v860 = vunpack.c.l.b16 %v828
      %v861 = vunpack.c.l.b16 %v829
      %v862 = vunpack.c.l.b16 %v830
      %v863 = vunpack.c.l.b16 %v831
      %v864 = vunpack.c.l.b16 %v832
      %v865 = vunpack.c.l.b16 %v833
      %v866 = vunpack.c.l.b16 %v834
      %v867 = vunpack.c.l.b16 %v835
      %v868 = vunpack.c.l.b16 %v836
      %v869 = vunpack.c.l.b16 %v837
      %v870 = vpack.c.b16 %v855, %v854
      %v871 = vpack.c.b16 %v857, %v856
      %v872 = vpack.c.b16 %v859, %v858
      %v873 = vpack.c.b16 %v861, %v860
      %v874 = vpack.c.b16 %v863, %v862
      %v875 = vpack.c.b16 %v865, %v864
      %v876 = vpack.c.b16 %v867, %v866
      %v877 = vpack.c.b16 %v869, %v868
      %886 = vmatpush.bf16.msra.mxu0 %v877
      %887 = vmatpush.bf16.msra.mxu0 %v876
      %888 = vmatpush.bf16.msra.mxu0 %v875
      %889 = vmatpush.bf16.msra.mxu0 %v874
      %890 = vmatpush.bf16.msra.mxu0 %v873
      %891 = vmatpush.bf16.msra.mxu0 %v872
      %892 = vmatpush.bf16.msra.mxu0 %v871
      %893 = vmatpush.bf16.msra.mxu0 %v870
      %894 = vmatmul.bf16.gmra.mxu0 %v817
      %v895 = vpop.f32.mrf.mxu0
      %v896 = vadd.f32 0.0, %v895
      %v897 = vpop.f32.mrf.mxu0
      %v898 = vadd.f32 0.0, %v897
      %899 = vmatmul.bf16.gmra.mxu0 %v818
      %v900 = vpop.f32.mrf.mxu0
      %v901 = vadd.f32 0.0, %v900
      %v902 = vpop.f32.mrf.mxu0
      %v903 = vadd.f32 0.0, %v902
      %904 = vmatmul.bf16.gmra.mxu0 %v819
      %v905 = vpop.f32.mrf.mxu0
      %v906 = vadd.f32 0.0, %v905
      %v907 = vpop.f32.mrf.mxu0
      %v908 = vadd.f32 0.0, %v907
      %909 = vmatmul.bf16.gmra.mxu0 %v820
      %v910 = vpop.f32.mrf.mxu0
      %v911 = vadd.f32 0.0, %v910
      %v912 = vpop.f32.mrf.mxu0
      %v913 = vadd.f32 0.0, %v912
      %914 = vdwg.mxu0
      %v915 = vadd.f32 %v801, %v896
      %v916 = vadd.f32 %v802, %v898
      %v917 = vadd.f32 %v803, %v901
      %v918 = vadd.f32 %v804, %v903
      %v919 = vadd.f32 %v805, %v906
      %v920 = vadd.f32 %v806, %v908
      %v921 = vadd.f32 %v807, %v911
      %v922 = vadd.f32 %v808, %v913
      %v923 = vld [vmem:[%s694 + $0x9] sm:$0xff]
      %v924 = vld [vmem:[%s694 + $0x21] sm:$0xff]
      %v925 = vld [vmem:[%s694 + $0x39] sm:$0xff]
      %v926 = vld [vmem:[%s694 + $0x51] sm:$0xff]
      %v927 = vld [vmem:[%s694 + $0x69] sm:$0xff]
      %v928 = vld [vmem:[%s694 + $0x81] sm:$0xff]
      %v929 = vld [vmem:[%s694 + $0x99] sm:$0xff]
      %v930 = vld [vmem:[%s694 + $0xb1] sm:$0xff]
      %v931 = vpack.c.bf16 %v924, %v923
      %v932 = vpack.c.bf16 %v926, %v925
      %v933 = vpack.c.bf16 %v928, %v927
      %v934 = vpack.c.bf16 %v930, %v929
      %s935 = scalar_lea.vmem %s3, 320
      %v936 = vld [vmem:[%s935] sm:$0xf]
      %v937 = vld [vmem:[%s935 + $0x4] sm:$0xf]
      %v938 = vld [vmem:[%s935 + $0x8] sm:$0xf]
      %v939 = vld [vmem:[%s935 + $0xc] sm:$0xf]
      %v940 = vld [vmem:[%s935 + $0x10] sm:$0xf]
      %v941 = vld [vmem:[%s935 + $0x14] sm:$0xf]
      %v942 = vld [vmem:[%s935 + $0x18] sm:$0xf]
      %v943 = vld [vmem:[%s935 + $0x1c] sm:$0xf]
      %v944 = vld [vmem:[%s935 + $0x20] sm:$0xf]
      %v945 = vld [vmem:[%s935 + $0x24] sm:$0xf]
      %v946 = vld [vmem:[%s935 + $0x28] sm:$0xf]
      %v947 = vld [vmem:[%s935 + $0x2c] sm:$0xf]
      %v948 = vld [vmem:[%s935 + $0x30] sm:$0xf]
      %v949 = vld [vmem:[%s935 + $0x34] sm:$0xf]
      %v950 = vld [vmem:[%s935 + $0x38] sm:$0xf]
      %v951 = vld [vmem:[%s935 + $0x3c] sm:$0xf]
      %v968 = vunpack.c.l.b16 %v936
      %v969 = vunpack.c.l.b16 %v937
      %v970 = vunpack.c.l.b16 %v938
      %v971 = vunpack.c.l.b16 %v939
      %v972 = vunpack.c.l.b16 %v940
      %v973 = vunpack.c.l.b16 %v941
      %v974 = vunpack.c.l.b16 %v942
      %v975 = vunpack.c.l.b16 %v943
      %v976 = vunpack.c.l.b16 %v944
      %v977 = vunpack.c.l.b16 %v945
      %v978 = vunpack.c.l.b16 %v946
      %v979 = vunpack.c.l.b16 %v947
      %v980 = vunpack.c.l.b16 %v948
      %v981 = vunpack.c.l.b16 %v949
      %v982 = vunpack.c.l.b16 %v950
      %v983 = vunpack.c.l.b16 %v951
      %v984 = vpack.c.b16 %v969, %v968
      %v985 = vpack.c.b16 %v971, %v970
      %v986 = vpack.c.b16 %v973, %v972
      %v987 = vpack.c.b16 %v975, %v974
      %v988 = vpack.c.b16 %v977, %v976
      %v989 = vpack.c.b16 %v979, %v978
      %v990 = vpack.c.b16 %v981, %v980
      %v991 = vpack.c.b16 %v983, %v982
      %1000 = vmatpush.bf16.msra.mxu0 %v991
      %1001 = vmatpush.bf16.msra.mxu0 %v990
      %1002 = vmatpush.bf16.msra.mxu0 %v989
      %1003 = vmatpush.bf16.msra.mxu0 %v988
      %1004 = vmatpush.bf16.msra.mxu0 %v987
      %1005 = vmatpush.bf16.msra.mxu0 %v986
      %1006 = vmatpush.bf16.msra.mxu0 %v985
      %1007 = vmatpush.bf16.msra.mxu0 %v984
      %1008 = vmatmul.bf16.gmra.mxu0 %v931
      %v1009 = vpop.f32.mrf.mxu0
      %v1010 = vadd.f32 0.0, %v1009
      %v1011 = vpop.f32.mrf.mxu0
      %v1012 = vadd.f32 0.0, %v1011
      %1013 = vmatmul.bf16.gmra.mxu0 %v932
      %v1014 = vpop.f32.mrf.mxu0
      %v1015 = vadd.f32 0.0, %v1014
      %v1016 = vpop.f32.mrf.mxu0
      %v1017 = vadd.f32 0.0, %v1016
      %1018 = vmatmul.bf16.gmra.mxu0 %v933
      %v1019 = vpop.f32.mrf.mxu0
      %v1020 = vadd.f32 0.0, %v1019
      %v1021 = vpop.f32.mrf.mxu0
      %v1022 = vadd.f32 0.0, %v1021
      %1023 = vmatmul.bf16.gmra.mxu0 %v934
      %v1024 = vpop.f32.mrf.mxu0
      %v1025 = vadd.f32 0.0, %v1024
      %v1026 = vpop.f32.mrf.mxu0
      %v1027 = vadd.f32 0.0, %v1026
      %1028 = vdwg.mxu0
      %v1029 = vadd.f32 %v915, %v1010
      %v1030 = vadd.f32 %v916, %v1012
      %v1031 = vadd.f32 %v917, %v1015
      %v1032 = vadd.f32 %v918, %v1017
      %v1033 = vadd.f32 %v919, %v1020
      %v1034 = vadd.f32 %v920, %v1022
      %v1035 = vadd.f32 %v921, %v1025
      %v1036 = vadd.f32 %v922, %v1027
      %s1037 = sadd.s32 %s364, 2
      %s1038 = smul.u32 %s1037, 24
      %s1039 = scalar_lea.vmem [#allocation2], %s1038
      %v1040 = vld [vmem:[%s1039 + $0x7] sm:$0xff]
      %v1041 = vld [vmem:[%s1039 + $0x1f] sm:$0xff]
      %v1042 = vld [vmem:[%s1039 + $0x37] sm:$0xff]
      %v1043 = vld [vmem:[%s1039 + $0x4f] sm:$0xff]
      %v1044 = vld [vmem:[%s1039 + $0x67] sm:$0xff]
      %v1045 = vld [vmem:[%s1039 + $0x7f] sm:$0xff]
      %v1046 = vld [vmem:[%s1039 + $0x97] sm:$0xff]
      %v1047 = vld [vmem:[%s1039 + $0xaf] sm:$0xff]
      %v1048 = vpack.c.bf16 %v1041, %v1040
      %v1049 = vpack.c.bf16 %v1043, %v1042
      %v1050 = vpack.c.bf16 %v1045, %v1044
      %v1051 = vpack.c.bf16 %v1047, %v1046
      %s1052 = scalar_lea.vmem %s3, 384
      %v1053 = vld [vmem:[%s1052] sm:$0xf]
      %v1054 = vld [vmem:[%s1052 + $0x4] sm:$0xf]
      %v1055 = vld [vmem:[%s1052 + $0x8] sm:$0xf]
      %v1056 = vld [vmem:[%s1052 + $0xc] sm:$0xf]
      %v1057 = vld [vmem:[%s1052 + $0x10] sm:$0xf]
      %v1058 = vld [vmem:[%s1052 + $0x14] sm:$0xf]
      %v1059 = vld [vmem:[%s1052 + $0x18] sm:$0xf]
      %v1060 = vld [vmem:[%s1052 + $0x1c] sm:$0xf]
      %v1061 = vld [vmem:[%s1052 + $0x20] sm:$0xf]
      %v1062 = vld [vmem:[%s1052 + $0x24] sm:$0xf]
      %v1063 = vld [vmem:[%s1052 + $0x28] sm:$0xf]
      %v1064 = vld [vmem:[%s1052 + $0x2c] sm:$0xf]
      %v1065 = vld [vmem:[%s1052 + $0x30] sm:$0xf]
      %v1066 = vld [vmem:[%s1052 + $0x34] sm:$0xf]
      %v1067 = vld [vmem:[%s1052 + $0x38] sm:$0xf]
      %v1068 = vld [vmem:[%s1052 + $0x3c] sm:$0xf]
      %v1085 = vunpack.c.l.b16 %v1053
      %v1086 = vunpack.c.l.b16 %v1054
      %v1087 = vunpack.c.l.b16 %v1055
      %v1088 = vunpack.c.l.b16 %v1056
      %v1089 = vunpack.c.l.b16 %v1057
      %v1090 = vunpack.c.l.b16 %v1058
      %v1091 = vunpack.c.l.b16 %v1059
      %v1092 = vunpack.c.l.b16 %v1060
      %v1093 = vunpack.c.l.b16 %v1061
      %v1094 = vunpack.c.l.b16 %v1062
      %v1095 = vunpack.c.l.b16 %v1063
      %v1096 = vunpack.c.l.b16 %v1064
      %v1097 = vunpack.c.l.b16 %v1065
      %v1098 = vunpack.c.l.b16 %v1066
      %v1099 = vunpack.c.l.b16 %v1067
      %v1100 = vunpack.c.l.b16 %v1068
      %v1101 = vpack.c.b16 %v1086, %v1085
      %v1102 = vpack.c.b16 %v1088, %v1087
      %v1103 = vpack.c.b16 %v1090, %v1089
      %v1104 = vpack.c.b16 %v1092, %v1091
      %v1105 = vpack.c.b16 %v1094, %v1093
      %v1106 = vpack.c.b16 %v1096, %v1095
      %v1107 = vpack.c.b16 %v1098, %v1097
      %v1108 = vpack.c.b16 %v1100, %v1099
      %1117 = vmatpush.bf16.msra.mxu0 %v1108
      %1118 = vmatpush.bf16.msra.mxu0 %v1107
      %1119 = vmatpush.bf16.msra.mxu0 %v1106
      %1120 = vmatpush.bf16.msra.mxu0 %v1105
      %1121 = vmatpush.bf16.msra.mxu0 %v1104
      %1122 = vmatpush.bf16.msra.mxu0 %v1103
      %1123 = vmatpush.bf16.msra.mxu0 %v1102
      %1124 = vmatpush.bf16.msra.mxu0 %v1101
      %1125 = vmatmul.bf16.gmra.mxu0 %v1048
      %v1126 = vpop.f32.mrf.mxu0
      %v1127 = vadd.f32 0.0, %v1126
      %v1128 = vpop.f32.mrf.mxu0
      %v1129 = vadd.f32 0.0, %v1128
      %1130 = vmatmul.bf16.gmra.mxu0 %v1049
      %v1131 = vpop.f32.mrf.mxu0
      %v1132 = vadd.f32 0.0, %v1131
      %v1133 = vpop.f32.mrf.mxu0
      %v1134 = vadd.f32 0.0, %v1133
      %1135 = vmatmul.bf16.gmra.mxu0 %v1050
      %v1136 = vpop.f32.mrf.mxu0
      %v1137 = vadd.f32 0.0, %v1136
      %v1138 = vpop.f32.mrf.mxu0
      %v1139 = vadd.f32 0.0, %v1138
      %1140 = vmatmul.bf16.gmra.mxu0 %v1051
      %v1141 = vpop.f32.mrf.mxu0
      %v1142 = vadd.f32 0.0, %v1141
      %v1143 = vpop.f32.mrf.mxu0
      %v1144 = vadd.f32 0.0, %v1143
      %1145 = vdwg.mxu0
      %v1146 = vadd.f32 %v1029, %v1127
      %v1147 = vadd.f32 %v1030, %v1129
      %v1148 = vadd.f32 %v1031, %v1132
      %v1149 = vadd.f32 %v1032, %v1134
      %v1150 = vadd.f32 %v1033, %v1137
      %v1151 = vadd.f32 %v1034, %v1139
      %v1152 = vadd.f32 %v1035, %v1142
      %v1153 = vadd.f32 %v1036, %v1144
      %v1154 = vld [vmem:[%s1039 + $0x8] sm:$0xff]
      %v1155 = vld [vmem:[%s1039 + $0x20] sm:$0xff]
      %v1156 = vld [vmem:[%s1039 + $0x38] sm:$0xff]
      %v1157 = vld [vmem:[%s1039 + $0x50] sm:$0xff]
      %v1158 = vld [vmem:[%s1039 + $0x68] sm:$0xff]
      %v1159 = vld [vmem:[%s1039 + $0x80] sm:$0xff]
      %v1160 = vld [vmem:[%s1039 + $0x98] sm:$0xff]
      %v1161 = vld [vmem:[%s1039 + $0xb0] sm:$0xff]
      %v1162 = vpack.c.bf16 %v1155, %v1154
      %v1163 = vpack.c.bf16 %v1157, %v1156
      %v1164 = vpack.c.bf16 %v1159, %v1158
      %v1165 = vpack.c.bf16 %v1161, %v1160
      %s1166 = scalar_lea.vmem %s3, 448
      %v1167 = vld [vmem:[%s1166] sm:$0xf]
      %v1168 = vld [vmem:[%s1166 + $0x4] sm:$0xf]
      %v1169 = vld [vmem:[%s1166 + $0x8] sm:$0xf]
      %v1170 = vld [vmem:[%s1166 + $0xc] sm:$0xf]
      %v1171 = vld [vmem:[%s1166 + $0x10] sm:$0xf]
      %v1172 = vld [vmem:[%s1166 + $0x14] sm:$0xf]
      %v1173 = vld [vmem:[%s1166 + $0x18] sm:$0xf]
      %v1174 = vld [vmem:[%s1166 + $0x1c] sm:$0xf]
      %v1175 = vld [vmem:[%s1166 + $0x20] sm:$0xf]
      %v1176 = vld [vmem:[%s1166 + $0x24] sm:$0xf]
      %v1177 = vld [vmem:[%s1166 + $0x28] sm:$0xf]
      %v1178 = vld [vmem:[%s1166 + $0x2c] sm:$0xf]
      %v1179 = vld [vmem:[%s1166 + $0x30] sm:$0xf]
      %v1180 = vld [vmem:[%s1166 + $0x34] sm:$0xf]
      %v1181 = vld [vmem:[%s1166 + $0x38] sm:$0xf]
      %v1182 = vld [vmem:[%s1166 + $0x3c] sm:$0xf]
      %v1199 = vunpack.c.l.b16 %v1167
      %v1200 = vunpack.c.l.b16 %v1168
      %v1201 = vunpack.c.l.b16 %v1169
      %v1202 = vunpack.c.l.b16 %v1170
      %v1203 = vunpack.c.l.b16 %v1171
      %v1204 = vunpack.c.l.b16 %v1172
      %v1205 = vunpack.c.l.b16 %v1173
      %v1206 = vunpack.c.l.b16 %v1174
      %v1207 = vunpack.c.l.b16 %v1175
      %v1208 = vunpack.c.l.b16 %v1176
      %v1209 = vunpack.c.l.b16 %v1177
      %v1210 = vunpack.c.l.b16 %v1178
      %v1211 = vunpack.c.l.b16 %v1179
      %v1212 = vunpack.c.l.b16 %v1180
      %v1213 = vunpack.c.l.b16 %v1181
      %v1214 = vunpack.c.l.b16 %v1182
      %v1215 = vpack.c.b16 %v1200, %v1199
      %v1216 = vpack.c.b16 %v1202, %v1201
      %v1217 = vpack.c.b16 %v1204, %v1203
      %v1218 = vpack.c.b16 %v1206, %v1205
      %v1219 = vpack.c.b16 %v1208, %v1207
      %v1220 = vpack.c.b16 %v1210, %v1209
      %v1221 = vpack.c.b16 %v1212, %v1211
      %v1222 = vpack.c.b16 %v1214, %v1213
      %1231 = vmatpush.bf16.msra.mxu0 %v1222
      %1232 = vmatpush.bf16.msra.mxu0 %v1221
      %1233 = vmatpush.bf16.msra.mxu0 %v1220
      %1234 = vmatpush.bf16.msra.mxu0 %v1219
      %1235 = vmatpush.bf16.msra.mxu0 %v1218
      %1236 = vmatpush.bf16.msra.mxu0 %v1217
      %1237 = vmatpush.bf16.msra.mxu0 %v1216
      %1238 = vmatpush.bf16.msra.mxu0 %v1215
      %1239 = vmatmul.bf16.gmra.mxu0 %v1162
      %v1240 = vpop.f32.mrf.mxu0
      %v1241 = vadd.f32 0.0, %v1240
      %v1242 = vpop.f32.mrf.mxu0
      %v1243 = vadd.f32 0.0, %v1242
      %1244 = vmatmul.bf16.gmra.mxu0 %v1163
      %v1245 = vpop.f32.mrf.mxu0
      %v1246 = vadd.f32 0.0, %v1245
      %v1247 = vpop.f32.mrf.mxu0
      %v1248 = vadd.f32 0.0, %v1247
      %1249 = vmatmul.bf16.gmra.mxu0 %v1164
      %v1250 = vpop.f32.mrf.mxu0
      %v1251 = vadd.f32 0.0, %v1250
      %v1252 = vpop.f32.mrf.mxu0
      %v1253 = vadd.f32 0.0, %v1252
      %1254 = vmatmul.bf16.gmra.mxu0 %v1165
      %v1255 = vpop.f32.mrf.mxu0
      %v1256 = vadd.f32 0.0, %v1255
      %v1257 = vpop.f32.mrf.mxu0
      %v1258 = vadd.f32 0.0, %v1257
      %1259 = vdwg.mxu0
      %v1260 = vadd.f32 %v1146, %v1241
      %v1261 = vadd.f32 %v1147, %v1243
      %v1262 = vadd.f32 %v1148, %v1246
      %v1263 = vadd.f32 %v1149, %v1248
      %v1264 = vadd.f32 %v1150, %v1251
      %v1265 = vadd.f32 %v1151, %v1253
      %v1266 = vadd.f32 %v1152, %v1256
      %v1267 = vadd.f32 %v1153, %v1258
      %v1268 = vld [vmem:[%s1039 + $0x9] sm:$0xff]
      %v1269 = vld [vmem:[%s1039 + $0x21] sm:$0xff]
      %v1270 = vld [vmem:[%s1039 + $0x39] sm:$0xff]
      %v1271 = vld [vmem:[%s1039 + $0x51] sm:$0xff]
      %v1272 = vld [vmem:[%s1039 + $0x69] sm:$0xff]
      %v1273 = vld [vmem:[%s1039 + $0x81] sm:$0xff]
      %v1274 = vld [vmem:[%s1039 + $0x99] sm:$0xff]
      %v1275 = vld [vmem:[%s1039 + $0xb1] sm:$0xff]
      %v1276 = vpack.c.bf16 %v1269, %v1268
      %v1277 = vpack.c.bf16 %v1271, %v1270
      %v1278 = vpack.c.bf16 %v1273, %v1272
      %v1279 = vpack.c.bf16 %v1275, %v1274
      %s1280 = scalar_lea.vmem %s3, 512
      %v1281 = vld [vmem:[%s1280] sm:$0xf]
      %v1282 = vld [vmem:[%s1280 + $0x4] sm:$0xf]
      %v1283 = vld [vmem:[%s1280 + $0x8] sm:$0xf]
      %v1284 = vld [vmem:[%s1280 + $0xc] sm:$0xf]
      %v1285 = vld [vmem:[%s1280 + $0x10] sm:$0xf]
      %v1286 = vld [vmem:[%s1280 + $0x14] sm:$0xf]
      %v1287 = vld [vmem:[%s1280 + $0x18] sm:$0xf]
      %v1288 = vld [vmem:[%s1280 + $0x1c] sm:$0xf]
      %v1289 = vld [vmem:[%s1280 + $0x20] sm:$0xf]
      %v1290 = vld [vmem:[%s1280 + $0x24] sm:$0xf]
      %v1291 = vld [vmem:[%s1280 + $0x28] sm:$0xf]
      %v1292 = vld [vmem:[%s1280 + $0x2c] sm:$0xf]
      %v1293 = vld [vmem:[%s1280 + $0x30] sm:$0xf]
      %v1294 = vld [vmem:[%s1280 + $0x34] sm:$0xf]
      %v1295 = vld [vmem:[%s1280 + $0x38] sm:$0xf]
      %v1296 = vld [vmem:[%s1280 + $0x3c] sm:$0xf]
      %v1313 = vunpack.c.l.b16 %v1281
      %v1314 = vunpack.c.l.b16 %v1282
      %v1315 = vunpack.c.l.b16 %v1283
      %v1316 = vunpack.c.l.b16 %v1284
      %v1317 = vunpack.c.l.b16 %v1285
      %v1318 = vunpack.c.l.b16 %v1286
      %v1319 = vunpack.c.l.b16 %v1287
      %v1320 = vunpack.c.l.b16 %v1288
      %v1321 = vunpack.c.l.b16 %v1289
      %v1322 = vunpack.c.l.b16 %v1290
      %v1323 = vunpack.c.l.b16 %v1291
      %v1324 = vunpack.c.l.b16 %v1292
      %v1325 = vunpack.c.l.b16 %v1293
      %v1326 = vunpack.c.l.b16 %v1294
      %v1327 = vunpack.c.l.b16 %v1295
      %v1328 = vunpack.c.l.b16 %v1296
      %v1329 = vpack.c.b16 %v1314, %v1313
      %v1330 = vpack.c.b16 %v1316, %v1315
      %v1331 = vpack.c.b16 %v1318, %v1317
      %v1332 = vpack.c.b16 %v1320, %v1319
      %v1333 = vpack.c.b16 %v1322, %v1321
      %v1334 = vpack.c.b16 %v1324, %v1323
      %v1335 = vpack.c.b16 %v1326, %v1325
      %v1336 = vpack.c.b16 %v1328, %v1327
      %1345 = vmatpush.bf16.msra.mxu0 %v1336
      %1346 = vmatpush.bf16.msra.mxu0 %v1335
      %1347 = vmatpush.bf16.msra.mxu0 %v1334
      %1348 = vmatpush.bf16.msra.mxu0 %v1333
      %1349 = vmatpush.bf16.msra.mxu0 %v1332
      %1350 = vmatpush.bf16.msra.mxu0 %v1331
      %1351 = vmatpush.bf16.msra.mxu0 %v1330
      %1352 = vmatpush.bf16.msra.mxu0 %v1329
      %1353 = vmatmul.bf16.gmra.mxu0 %v1276
      %v1354 = vpop.f32.mrf.mxu0
      %v1355 = vadd.f32 0.0, %v1354
      %v1356 = vpop.f32.mrf.mxu0
      %v1357 = vadd.f32 0.0, %v1356
      %1358 = vmatmul.bf16.gmra.mxu0 %v1277
      %v1359 = vpop.f32.mrf.mxu0
      %v1360 = vadd.f32 0.0, %v1359
      %v1361 = vpop.f32.mrf.mxu0
      %v1362 = vadd.f32 0.0, %v1361
      %1363 = vmatmul.bf16.gmra.mxu0 %v1278
      %v1364 = vpop.f32.mrf.mxu0
      %v1365 = vadd.f32 0.0, %v1364
      %v1366 = vpop.f32.mrf.mxu0
      %v1367 = vadd.f32 0.0, %v1366
      %1368 = vmatmul.bf16.gmra.mxu0 %v1279
      %v1369 = vpop.f32.mrf.mxu0
      %v1370 = vadd.f32 0.0, %v1369
      %v1371 = vpop.f32.mrf.mxu0
      %v1372 = vadd.f32 0.0, %v1371
      %1373 = vdwg.mxu0
      %v1374 = vadd.f32 %v1260, %v1355
      %v1375 = vadd.f32 %v1261, %v1357
      %v1376 = vadd.f32 %v1262, %v1360
      %v1377 = vadd.f32 %v1263, %v1362
      %v1378 = vadd.f32 %v1264, %v1365
      %v1379 = vadd.f32 %v1265, %v1367
      %v1380 = vadd.f32 %v1266, %v1370
      %v1381 = vadd.f32 %v1267, %v1372
      %v1382 = vpack.c.bf16 %v1374, %v1374
      %v1383 = vpack.c.bf16 %v1375, %v1375
      %v1384 = vpack.c.bf16 %v1376, %v1376
      %v1385 = vpack.c.bf16 %v1377, %v1377
      %v1386 = vpack.c.bf16 %v1378, %v1378
      %v1387 = vpack.c.bf16 %v1379, %v1379
      %v1388 = vpack.c.bf16 %v1380, %v1380
      %v1389 = vpack.c.bf16 %v1381, %v1381
      %1390 = vst [vmem:[%s249] sm:$0xf] %v1382
      %1391 = vst [vmem:[%s249 + $0x4] sm:$0xf] %v1383
      %1392 = vst [vmem:[%s249 + $0x8] sm:$0xf] %v1384
      %1393 = vst [vmem:[%s249 + $0xc] sm:$0xf] %v1385
      %1394 = vst [vmem:[%s249 + $0x10] sm:$0xf] %v1386
      %1395 = vst [vmem:[%s249 + $0x14] sm:$0xf] %v1387
      %1396 = vst [vmem:[%s249 + $0x18] sm:$0xf] %v1388
      %1397 = vst [vmem:[%s249 + $0x1c] sm:$0xf] %v1389
      %v1398 = vld [vmem:[%s255] sm:$0x1]
      %v1399 = vadd.f32 %v1374, %v1375
      %v1400 = vadd.f32 %v1399, %v1376
      %v1401 = vadd.f32 %v1400, %v1377
      %v1402 = vadd.f32 %v1401, %v1378
      %v1403 = vadd.f32 %v1402, %v1379
      %v1404 = vadd.f32 %v1403, %v1380
      %v1405 = vadd.f32 %v1404, %v1381
      %v1406 = vrot.slane %v1405, 4
      %v1407 = vadd.f32 %v1405, %v1406
      %v1408 = vrot.slane %v1407, 2
      %v1409 = vadd.f32 %v1407, %v1408
      %v1410 = vrot.slane %v1409, 1
      %v1411 = vadd.f32 %v1409, %v1410
      %v1412 = vadd.f32 %v1398, %v1411
      %1413 = vst [vmem:[%s255] sm:$0x1] %v1412
      %v1414 = vld [vmem:[%s255 + $0x1] sm:$0x1]
      %v1415 = vmul.f32 %v1374, %v1374
      %v1416 = vmul.f32 %v1375, %v1375
      %v1417 = vmul.f32 %v1376, %v1376
      %v1418 = vmul.f32 %v1377, %v1377
      %v1419 = vmul.f32 %v1378, %v1378
      %v1420 = vmul.f32 %v1379, %v1379
      %v1421 = vmul.f32 %v1380, %v1380
      %v1422 = vmul.f32 %v1381, %v1381
      %v1423 = vadd.f32 %v1415, %v1416
      %v1424 = vadd.f32 %v1423, %v1417
      %v1425 = vadd.f32 %v1424, %v1418
      %v1426 = vadd.f32 %v1425, %v1419
      %v1427 = vadd.f32 %v1426, %v1420
      %v1428 = vadd.f32 %v1427, %v1421
      %v1429 = vadd.f32 %v1428, %v1422
      %v1430 = vrot.slane %v1429, 4
      %v1431 = vadd.f32 %v1429, %v1430
      %v1432 = vrot.slane %v1431, 2
      %v1433 = vadd.f32 %v1431, %v1432
      %v1434 = vrot.slane %v1433, 1
      %v1435 = vadd.f32 %v1433, %v1434
      %v1436 = vadd.f32 %v1414, %v1435
      %1437 = vst [vmem:[%s255 + $0x1] sm:$0x1] %v1436
      %s1438 = sadd.s32 %s21, %s22
      %s1439 = smul.u32 8, %s1438
      %p1440 = scmp.lt.s32.totalorder %s1439, 15
      %s1441 = scalar_select %p1440, %s1439, 15
      %s1442 = smul.addr %s1441, 4
      %s1443 = scalar_lea.vmem %s4, %s1442
      %p1444 = scmp.lt.s32.totalorder %s21, 1
      %s1445 = scalar_select %p1444, %s21, 1
      %s1446 = smul.addr %s1445, 2
      %s1447 = scalar_lea.vmem %s5, %s1446
      // Predicated region
      $region41: #{resnet_layer.7} parent=35 // pred_check
        %p1448 = pneg %p138
      $region42: #{resnet_layer.7} parent=35 // pred_check_branch
        %1450 = sbr.rel (%p1448) target = $region44
      $region43: #{resnet_layer.7} parent=35 // pred_region
        %s1451 = sadd.s32 %s21, %s22
        %s1452 = smul.u32 8, %s1451
      $region44: #{resnet_layer.7} parent=35 // pred_fallthru
        _
      // Predicated region
      $region45: #{resnet_layer.7} parent=35 // pred_check
        %p1453 = pneg %p164
      $region46: #{resnet_layer.7} parent=35 // pred_check_branch
        %1455 = sbr.rel (%p1453) target = $region48
      $region47: #{resnet_layer.7} parent=35 // pred_region
        _
      $region48: #{resnet_layer.7} parent=35 // pred_fallthru
        _
    $region36: #{resnet_layer.7} parent=5 // pred_fallthru
      _
    %p1456 = scmp.le.s32.totalorder 2, %s12
    // Predicated region
    $region49: #{resnet_layer.7} parent=5 // pred_check
      %p1457 = pneg %p1456
    $region50: #{resnet_layer.7} parent=5 // pred_check_branch
      %1459 = sbr.rel (%p1457) target = $region52
    $region51: #{resnet_layer.7} parent=5 // pred_region
      %s1460 = ssub.s32 %s12, 2
      // Predicated region
      $region53: #{resnet_layer.7} parent=51 // pred_check
        %p1461 = pneg %p144
      $region54: #{resnet_layer.7} parent=51 // pred_check_branch
        %1463 = sbr.rel (%p1461) target = $region56
      $region55: #{resnet_layer.7} parent=51 // pred_region
        %s1464 = sadd.s32 %s23, %s24
        %s1465 = smul.u32 8, %s1464
        %p1466 = scmp.lt.s32.totalorder %s1465, 15
        %s1467 = scalar_select %p1466, %s1465, 15
        %s1468 = smul.addr %s1467, 4
        %s1469 = scalar_lea.vmem %s4, %s1468
      $region56: #{resnet_layer.7} parent=51 // pred_fallthru
        _
      // Predicated region
      $region57: #{resnet_layer.7} parent=51 // pred_check
        %p1470 = pneg %p170
      $region58: #{resnet_layer.7} parent=51 // pred_check_branch
        %1472 = sbr.rel (%p1470) target = $region60
      $region59: #{resnet_layer.7} parent=51 // pred_region
        %p1473 = scmp.lt.s32.totalorder %s23, 1
        %s1474 = scalar_select %p1473, %s23, 1
        %s1475 = smul.addr %s1474, 2
        %s1476 = scalar_lea.vmem %s5, %s1475
      $region60: #{resnet_layer.7} parent=51 // pred_fallthru
        _
    $region52: #{resnet_layer.7} parent=5 // pred_fallthru
      _
  $region6: #{resnet_layer.7} parent=0 // loop_footer
    %s16 = sadd.s32 1, %s12
  $region7: #{resnet_layer.7} parent=0 // loop_footer_branch
    %11 = sbr.rel target = $region3
  $region8: #{resnet_layer.7} parent=0 // loop_exit
    _

// kernel: resnet_layer.9
$region0: #{resnet_layer.9}
  #allocation0 [shape = 'u32[]', space=smem, size = 0x4, offset = 0x4, fixed_abs, tag = 'smem constant byte address 0x4 - core index']
  #allocation1 [shape = 'u32[72,128]{1,0:T(1,128)}', space=vmem, size = 0x9000, scoped, tag = 'internal scratch']
  %s0 = inlined_call_operand.vmem [shape: bf16[2,10,10,128], index: 0, kind: input, shape index: {}]
  %s1 = inlined_call_operand.vmem [shape: bf16[9,128,128], index: 1, kind: input, shape index: {}]
  %s2 = inlined_call_operand.vmem [shape: bf16[16,8,128], index: 2, kind: output, shape index: {0}]
  %s3 = inlined_call_operand.vmem [shape: f32[2,2,128], index: 3, kind: output, shape index: {1}]
  %4 = xla_tuple %s2, %s3
  %s5 = sld [smem:[#allocation0]]
  $region53: #{resnet_layer.9} parent=0
    _
  %s7 = ssub.s32 1, %s5
  %s8 = scalar_select 0, %s7, %s5
  loop: start=0, step=1, limit=4
  $region2: #{resnet_layer.9} parent=0 // loop_pre_header
    _
  $region3: #{resnet_layer.9} parent=0 // loop_header
    %s10 = sphi 0, %s14
    %p11 = scmp.ge.s32.totalorder %s10, 4
    %s17 = sphi 0, %s29
    %s18 = sphi 0, %s25
    %s19 = sphi 0, %s17
    %s20 = sphi 0, %s18
    %s21 = sphi 0, %s19
    %s22 = sphi 0, %s20
    %s32 = sphi 0, %s34
    %s35 = sphi 0, %s32
    %s36 = sphi 0, %s35
    %s52 = sphi 0, %s36
    %s56 = sphi 0, %s56
    %s58 = sphi 0, %s56
    %s59 = sphi 0, %s58
    %s73 = sphi 0, %s59
    %s81 = sphi 0, %s83
    %s84 = sphi 0, %s81
    %s85 = sphi 0, %s84
    %s101 = sphi 0, %s85
    %s107 = sphi 0, %s109
    %s110 = sphi 0, %s107
    %s111 = sphi 0, %s110
    %s127 = sphi 0, %s111
  $region4: #{resnet_layer.9} parent=0 // loop_header_branch
    %13 = sbr.rel (%p11) target = $region8
  $region5: #{resnet_layer.9} parent=0 // loop_body
    %s15 = ssub.s32 %s10, 1
    %s16 = ssub.s32 %s10, 2
    %s23 = sadd.s32 1, %s18
    %p24 = scmp.ge.s32.totalorder %s23, 1
    %s25 = scalar_select %p24, 0, %s23
    %s26 = sadd.s32 1, %s17
    %s27 = scalar_select %p24, %s26, %s17
    %p28 = scmp.ge.s32.totalorder %s27, 2
    %s29 = scalar_select %p28, 0, %s27
    %s30 = ssub.s32 %s17, %s29
    %p31 = scmp.eq.s32.totalorder %s30, 0
    %s33 = sadd.s32 %s32, 1
    %s34 = scalar_select %p31, %s32, %s33
    %p37 = pneg %p31
    %p38 = scmp.eq.s32.totalorder %s10, 1
    %p39 = por %p37, %p38
    %p40 = scmp.ne.s32.totalorder %s32, %s35
    %p41 = scmp.eq.s32.totalorder %s10, 0
    %p42 = por %p40, %p41
    %p43 = scmp.ne.s32.totalorder %s32, %s35
    %p44 = scmp.eq.s32.totalorder %s15, 1
    %p45 = por %p43, %p44
    %p46 = scmp.ne.s32.totalorder %s35, %s36
    %p47 = scmp.eq.s32.totalorder %s15, 0
    %p48 = por %p46, %p47
    %p49 = scmp.ne.s32.totalorder %s35, %s36
    %p50 = scmp.eq.s32.totalorder %s16, 1
    %p51 = por %p49, %p50
    %p53 = scmp.ne.s32.totalorder %s36, %s52
    %p54 = scmp.eq.s32.totalorder %s16, 0
    %p55 = por %p53, %p54
    %s57 = sadd.s32 %s56, 1
    %p60 = scmp.eq.s32.totalorder %s10, 1
    %p61 = scmp.ne.s32.totalorder %s56, %s58
    %p62 = scmp.eq.s32.totalorder %s10, 0
    %p63 = por %p61, %p62
    %p64 = scmp.ne.s32.totalorder %s56, %s58
    %p65 = scmp.eq.s32.totalorder %s15, 1
    %p66 = por %p64, %p65
    %p67 = scmp.ne.s32.totalorder %s58, %s59
    %p68 = scmp.eq.s32.totalorder %s15, 0
    %p69 = por %p67, %p68
    %p70 = scmp.ne.s32.totalorder %s58, %s59
    %p71 = scmp.eq.s32.totalorder %s16, 1
    %p72 = por %p70, %p71
    %p74 = scmp.ne.s32.totalorder %s59, %s73
    %p75 = scmp.eq.s32.totalorder %s16, 0
    %p76 = por %p74, %p75
    %s77 = sadd.s32 %s17, %s18
    %s78 = sadd.s32 %s29, %s25
    %s79 = ssub.s32 %s77, %s78
    %p80 = scmp.eq.s32.totalorder %s79, 0
    %s82 = sadd.s32 %s81, 1
    %s83 = scalar_select %p80, %s81, %s82
    %p86 = pneg %p80
    %p87 = scmp.eq.s32.totalorder %s10, 1
    %p88 = por %p86, %p87
    %p89 = scmp.ne.s32.totalorder %s81, %s84
    %p90 = scmp.eq.s32.totalorder %s10, 0
    %p91 = por %p89, %p90
    %p92 = scmp.ne.s32.totalorder %s81, %s84
    %p93 = scmp.eq.s32.totalorder %s15, 1
    %p94 = por %p92, %p93
    %p95 = scmp.ne.s32.totalorder %s84, %s85
    %p96 = scmp.eq.s32.totalorder %s15, 0
    %p97 = por %p95, %p96
    %p98 = scmp.ne.s32.totalorder %s84, %s85
    %p99 = scmp.eq.s32.totalorder %s16, 1
    %p100 = por %p98, %p99
    %p102 = scmp.ne.s32.totalorder %s85, %s101
    %p103 = scmp.eq.s32.totalorder %s16, 0
    %p104 = por %p102, %p103
    %s105 = ssub.s32 %s17, %s29
    %p106 = scmp.eq.s32.totalorder %s105, 0
    %s108 = sadd.s32 %s107, 1
    %s109 = scalar_select %p106, %s107, %s108
    %p112 = pneg %p106
    %p113 = scmp.eq.s32.totalorder %s10, 1
    %p114 = por %p112, %p113
    %p115 = scmp.ne.s32.totalorder %s107, %s110
    %p116 = scmp.eq.s32.totalorder %s10, 0
    %p117 = por %p115, %p116
    %p118 = scmp.ne.s32.totalorder %s107, %s110
    %p119 = scmp.eq.s32.totalorder %s15, 1
    %p120 = por %p118, %p119
    %p121 = scmp.ne.s32.totalorder %s110, %s111
    %p122 = scmp.eq.s32.totalorder %s15, 0
    %p123 = por %p121, %p122
    %p124 = scmp.ne.s32.totalorder %s110, %s111
    %p125 = scmp.eq.s32.totalorder %s16, 1
    %p126 = por %p124, %p125
    %p128 = scmp.ne.s32.totalorder %s111, %s127
    %p129 = scmp.eq.s32.totalorder %s16, 0
    %p130 = por %p128, %p129
    %p131 = scmp.le.s32.totalorder 1, %s10
    %p132 = scmp.lt.s32.totalorder %s10, 3
    %p133 = pnand %p131, %p132
    %p134 = pneg %p133
    // Predicated region
    $region9: #{resnet_layer.9} parent=5 // pred_check
      _
    $region10: #{resnet_layer.9} parent=5 // pred_check_branch
      %136 = sbr.rel (%p133) target = $region12
    $region11: #{resnet_layer.9} parent=5 // pred_region
      %s137 = ssub.s32 %s10, 1
      // Predicated region
      $region13: #{resnet_layer.9} parent=11 // pred_check
        %p138 = pneg %p69
      $region14: #{resnet_layer.9} parent=11 // pred_check_branch
        %140 = sbr.rel (%p138) target = $region16
      $region15: #{resnet_layer.9} parent=11 // pred_region
        _
      $region16: #{resnet_layer.9} parent=11 // pred_fallthru
        _
    $region12: #{resnet_layer.9} parent=5 // pred_fallthru
      _
    %p141 = scmp.lt.s32.totalorder %s10, 2
    // Predicated region
    $region17: #{resnet_layer.9} parent=5 // pred_check
      %p142 = pneg %p141
    $region18: #{resnet_layer.9} parent=5 // pred_check_branch
      %144 = sbr.rel (%p142) target = $region20
    $region19: #{resnet_layer.9} parent=5 // pred_region
      // Predicated region
      $region21: #{resnet_layer.9} parent=19 // pred_check
        %p145 = pneg %p42
      $region22: #{resnet_layer.9} parent=19 // pred_check_branch
        %147 = sbr.rel (%p145) target = $region24
      $region23: #{resnet_layer.9} parent=19 // pred_region
        %p148 = scmp.lt.s32.totalorder %s17, 1
        %s149 = scalar_select %p148, %s17, 1
        %s150 = smul.addr %s149, 20
        %s151 = smul.addr %s150, 4
        %s152 = scalar_lea.vmem %s0, %s151
      $region24: #{resnet_layer.9} parent=19 // pred_fallthru
        _
    $region20: #{resnet_layer.9} parent=5 // pred_fallthru
      _
    %p153 = scmp.le.s32.totalorder 1, %s10
    %p154 = scmp.lt.s32.totalorder %s10, 3
    %p155 = pnand %p153, %p154
    %p156 = pneg %p155
    // Predicated region
    $region25: #{resnet_layer.9} parent=5 // pred_check
      _
    $region26: #{resnet_layer.9} parent=5 // pred_check_branch
      %158 = sbr.rel (%p155) target = $region28
    $region27: #{resnet_layer.9} parent=5 // pred_region
      %s159 = ssub.s32 %s10, 1
      %p160 = scmp.lt.s32.totalorder %s19, 1
      %s161 = scalar_select %p160, %s19, 1
      %s162 = smul.addr %s161, 20
      %s163 = smul.addr %s162, 4
      %s164 = scalar_lea.vmem %s0, %s163
      %p165 = pneg %p48
      %p166 = pneg %p45
      %p167 = pneg %p69
      %p168 = pneg %p66
      %p169 = pneg %p97
      %p170 = pneg %p94
      %s171 = sadd.s32 %s19, %s20
      %s172 = smul.u32 8, %s171
      %p173 = scmp.lt.s32.totalorder %s172, 15
      %s174 = scalar_select %p173, %s172, 15
      %s175 = smul.addr %s174, 4
      %s176 = scalar_lea.vmem %s2, %s175
      %p177 = pneg %p123
      %p178 = pneg %p120
      %p179 = scmp.lt.s32.totalorder %s19, 1
      %s180 = scalar_select %p179, %s19, 1
      %s181 = smul.addr %s180, 2
      %s182 = scalar_lea.vmem %s3, %s181
      %p183 = scmp.lt.s32.totalorder %s19, 1
      %s184 = scalar_select %p183, %s19, 1
      %s185 = smul.addr %s184, 20
      %s186 = smul.addr %s185, 4
      %s187 = scalar_lea.vmem %s0, %s186
      %s188 = sadd.s32 %s19, %s20
      %s189 = smul.u32 8, %s188
      %p190 = scmp.lt.s32.totalorder %s189, 15
      %s191 = scalar_select %p190, %s189, 15
      %s192 = smul.addr %s191, 4
      %s193 = scalar_lea.vmem %s2, %s192
      %s194 = sadd.s32 %s19, %s20
      %s195 = smul.u32 8, %s194
      %p196 = scmp.lt.s32.totalorder %s19, 1
      %s197 = scalar_select %p196, %s19, 1
      %s198 = smul.addr %s197, 2
      %s199 = scalar_lea.vmem %s3, %s198
      %s200 = smul.u32 %s20, 8
      %p201 = scmp.eq.s32.totalorder %s20, 0
      // Predicated region
      $region29: #{resnet_layer.9} parent=27 // pred_check
        %p202 = pneg %p201
      $region30: #{resnet_layer.9} parent=27 // pred_check_branch
        %204 = sbr.rel (%p202) target = $region32
      $region31: #{resnet_layer.9} parent=27 // pred_region
        %205 = vst [vmem:[%s199] sm:$0x3] 0.0
      $region32: #{resnet_layer.9} parent=27 // pred_fallthru
        _
      %s206 = smul.u32 %s200, 2
      %s207 = smul.addr %s206, 4
      %s208 = scalar_lea.vmem %s187, %s207
      %v209 = vld [vmem:[%s208] sm:$0xf]
      %v210 = vld [vmem:[%s208 + $0x8] sm:$0xf]
      %v211 = vld [vmem:[%s208 + $0x10] sm:$0xf]
      %v212 = vld [vmem:[%s208 + $0x18] sm:$0xf]
      %v213 = vld [vmem:[%s208 + $0x20] sm:$0xf]
      %v214 = vld [vmem:[%s208 + $0x28] sm:$0xf]
      %v215 = vld [vmem:[%s208 + $0x30] sm:$0xf]
      %v216 = vld [vmem:[%s208 + $0x38] sm:$0xf]
      %v217 = vld [vmem:[%s1] sm:$0xf]
      %v218 = vld [vmem:[%s1 + $0x4] sm:$0xf]
      %v219 = vld [vmem:[%s1 + $0x8] sm:$0xf]
      %v220 = vld [vmem:[%s1 + $0xc] sm:$0xf]
      %v221 = vld [vmem:[%s1 + $0x10] sm:$0xf]
      %v222 = vld [vmem:[%s1 + $0x14] sm:$0xf]
      %v223 = vld [vmem:[%s1 + $0x18] sm:$0xf]
      %v224 = vld [vmem:[%s1 + $0x1c] sm:$0xf]
      %v225 = vld [vmem:[%s1 + $0x20] sm:$0xf]
      %v226 = vld [vmem:[%s1 + $0x24] sm:$0xf]
      %v227 = vld [vmem:[%s1 + $0x28] sm:$0xf]
      %v228 = vld [vmem:[%s1 + $0x2c] sm:$0xf]
      %v229 = vld [vmem:[%s1 + $0x30] sm:$0xf]
      %v230 = vld [vmem:[%s1 + $0x34] sm:$0xf]
      %v231 = vld [vmem:[%s1 + $0x38] sm:$0xf]
      %v232 = vld [vmem:[%s1 + $0x3c] sm:$0xf]
      %v233 = vld [vmem:[%s208 + $0x4] sm:$0x1]
      %v234 = vld [vmem:[%s208 + $0xc] sm:$0x1]
      %v235 = vld [vmem:[%s208 + $0x14] sm:$0x1]
      %v236 = vld [vmem:[%s208 + $0x1c] sm:$0x1]
      %v237 = vld [vmem:[%s208 + $0x24] sm:$0x1]
      %v238 = vld [vmem:[%s208 + $0x2c] sm:$0x1]
      %v239 = vld [vmem:[%s208 + $0x34] sm:$0x1]
      %v240 = vld [vmem:[%s208 + $0x3c] sm:$0x1]
      %vm241 = vsmask.f32 3328
      %vm242 = vsmask.f32 7440
      %vm243 = vmor %vm241, %vm242
      %v245 = vshrl.u32 %v209, 16
      %v247 = vrot.slane %v245, 4
      %v248 = vshll.u32 %v209, 16
      %v250 = vrot.slane %v248, 5
      %v251 = vor.u32 %v247, %v250
      %v252 = vrot.slane %v251, 4
      %v254 = vshll.u32 %v233, 16
      %v256 = vrot.slane %v254, 5
      %v257 = vsel %vm243, %v252, %v256
      %v259 = vshrl.u32 %v210, 16
      %v261 = vrot.slane %v259, 4
      %v262 = vshll.u32 %v210, 16
      %v264 = vrot.slane %v262, 5
      %v265 = vor.u32 %v261, %v264
      %v266 = vrot.slane %v265, 4
      %v268 = vshll.u32 %v234, 16
      %v270 = vrot.slane %v268, 5
      %v271 = vsel %vm243, %v266, %v270
      %v273 = vshrl.u32 %v211, 16
      %v275 = vrot.slane %v273, 4
      %v276 = vshll.u32 %v211, 16
      %v278 = vrot.slane %v276, 5
      %v279 = vor.u32 %v275, %v278
      %v280 = vrot.slane %v279, 4
      %v282 = vshll.u32 %v235, 16
      %v284 = vrot.slane %v282, 5
      %v285 = vsel %vm243, %v280, %v284
      %v287 = vshrl.u32 %v212, 16
      %v289 = vrot.slane %v287, 4
      %v290 = vshll.u32 %v212, 16
      %v292 = vrot.slane %v290, 5
      %v293 = vor.u32 %v289, %v292
      %v294 = vrot.slane %v293, 4
      %v296 = vshll.u32 %v236, 16
      %v298 = vrot.slane %v296, 5
      %v299 = vsel %vm243, %v294, %v298
      %v301 = vshrl.u32 %v213, 16
      %v303 = vrot.slane %v301, 4
      %v304 = vshll.u32 %v213, 16
      %v306 = vrot.slane %v304, 5
      %v307 = vor.u32 %v303, %v306
      %v308 = vrot.slane %v307, 4
      %v310 = vshll.u32 %v237, 16
      %v312 = vrot.slane %v310, 5
      %v313 = vsel %vm243, %v308, %v312
      %v315 = vshrl.u32 %v214, 16
      %v317 = vrot.slane %v315, 4
      %v318 = vshll.u32 %v214, 16
      %v320 = vrot.slane %v318, 5
      %v321 = vor.u32 %v317, %v320
      %v322 = vrot.slane %v321, 4
      %v324 = vshll.u32 %v238, 16
      %v326 = vrot.slane %v324, 5
      %v327 = vsel %vm243, %v322, %v326
      %v329 = vshrl.u32 %v215, 16
      %v331 = vrot.slane %v329, 4
      %v332 = vshll.u32 %v215, 16
      %v334 = vrot.slane %v332, 5
      %v335 = vor.u32 %v331, %v334
      %v336 = vrot.slane %v335, 4
      %v338 = vshll.u32 %v239, 16
      %v340 = vrot.slane %v338, 5
      %v341 = vsel %vm243, %v336, %v340
      %v343 = vshrl.u32 %v216, 16
      %v345 = vrot.slane %v343, 4
      %v346 = vshll.u32 %v216, 16
      %v348 = vrot.slane %v346, 5
      %v349 = vor.u32 %v345, %v348
      %v350 = vrot.slane %v349, 4
      %v352 = vshll.u32 %v240, 16
      %v354 = vrot.slane %v352, 5
      %v355 = vsel %vm243, %v350, %v354
      %s356 = scalar_lea.vmem %s1, 64
      %v357 = vld [vmem:[%s356] sm:$0xf]
      %v358 = vld [vmem:[%s356 + $0x4] sm:$0xf]
      %v359 = vld [vmem:[%s356 + $0x8] sm:$0xf]
      %v360 = vld [vmem:[%s356 + $0xc] sm:$0xf]
      %v361 = vld [vmem:[%s356 + $0x10] sm:$0xf]
      %v362 = vld [vmem:[%s356 + $0x14] sm:$0xf]
      %v363 = vld [vmem:[%s356 + $0x18] sm:$0xf]
      %v364 = vld [vmem:[%s356 + $0x1c] sm:$0xf]
      %v365 = vld [vmem:[%s356 + $0x20] sm:$0xf]
      %v366 = vld [vmem:[%s356 + $0x24] sm:$0xf]
      %v367 = vld [vmem:[%s356 + $0x28] sm:$0xf]
      %v368 = vld [vmem:[%s356 + $0x2c] sm:$0xf]
      %v369 = vld [vmem:[%s356 + $0x30] sm:$0xf]
      %v370 = vld [vmem:[%s356 + $0x34] sm:$0xf]
      %v371 = vld [vmem:[%s356 + $0x38] sm:$0xf]
      %v372 = vld [vmem:[%s356 + $0x3c] sm:$0xf]
      %v373 = vunpack.c.l.b16 %v257
      %v374 = vunpack.c.l.b16 %v271
      %v375 = vunpack.c.l.b16 %v285
      %v376 = vunpack.c.l.b16 %v299
      %v377 = vunpack.c.l.b16 %v313
      %v378 = vunpack.c.l.b16 %v327
      %v379 = vunpack.c.l.b16 %v341
      %v380 = vunpack.c.l.b16 %v355
      %v381 = vpack.c.b16 %v374, %v373
      %v382 = vpack.c.b16 %v376, %v375
      %v383 = vpack.c.b16 %v378, %v377
      %v384 = vpack.c.b16 %v380, %v379
      %v405 = vunpack.c.l.b16 %v357
      %v406 = vunpack.c.l.b16 %v358
      %v407 = vunpack.c.l.b16 %v359
      %v408 = vunpack.c.l.b16 %v360
      %v409 = vunpack.c.l.b16 %v361
      %v410 = vunpack.c.l.b16 %v362
      %v411 = vunpack.c.l.b16 %v363
      %v412 = vunpack.c.l.b16 %v364
      %v413 = vunpack.c.l.b16 %v365
      %v414 = vunpack.c.l.b16 %v366
      %v415 = vunpack.c.l.b16 %v367
      %v416 = vunpack.c.l.b16 %v368
      %v417 = vunpack.c.l.b16 %v369
      %v418 = vunpack.c.l.b16 %v370
      %v419 = vunpack.c.l.b16 %v371
      %v420 = vunpack.c.l.b16 %v372
      %v421 = vpack.c.b16 %v406, %v405
      %v422 = vpack.c.b16 %v408, %v407
      %v423 = vpack.c.b16 %v410, %v409
      %v424 = vpack.c.b16 %v412, %v411
      %v425 = vpack.c.b16 %v414, %v413
      %v426 = vpack.c.b16 %v416, %v415
      %v427 = vpack.c.b16 %v418, %v417
      %v428 = vpack.c.b16 %v420, %v419
      %437 = vmatpush.bf16.msra.mxu0 %v428
      %438 = vmatpush.bf16.msra.mxu0 %v427
      %439 = vmatpush.bf16.msra.mxu0 %v426
      %440 = vmatpush.bf16.msra.mxu0 %v425
      %441 = vmatpush.bf16.msra.mxu0 %v424
      %442 = vmatpush.bf16.msra.mxu0 %v423
      %443 = vmatpush.bf16.msra.mxu0 %v422
      %444 = vmatpush.bf16.msra.mxu0 %v421
      %445 = vmatmul.bf16.gmra.mxu0 %v381
      %v446 = vpop.f32.mrf.mxu0
      %v447 = vadd.f32 0.0, %v446
      %v448 = vpop.f32.mrf.mxu0
      %v449 = vadd.f32 0.0, %v448
      %450 = vmatmul.bf16.gmra.mxu0 %v382
      %v451 = vpop.f32.mrf.mxu0
      %v452 = vadd.f32 0.0, %v451
      %v453 = vpop.f32.mrf.mxu0
      %v454 = vadd.f32 0.0, %v453
      %455 = vmatmul.bf16.gmra.mxu0 %v383
      %v456 = vpop.f32.mrf.mxu0
      %v457 = vadd.f32 0.0, %v456
      %v458 = vpop.f32.mrf.mxu0
      %v459 = vadd.f32 0.0, %v458
      %460 = vmatmul.bf16.gmra.mxu0 %v384
      %v461 = vpop.f32.mrf.mxu0
      %v462 = vadd.f32 0.0, %v461
      %v463 = vpop.f32.mrf.mxu0
      %v464 = vadd.f32 0.0, %v463
      %465 = vdwg.mxu0
      %v474 = vunpack.c.l.b16 %v209
      %v475 = vunpack.c.l.b16 %v210
      %v476 = vunpack.c.l.b16 %v211
      %v477 = vunpack.c.l.b16 %v212
      %v478 = vunpack.c.l.b16 %v213
      %v479 = vunpack.c.l.b16 %v214
      %v480 = vunpack.c.l.b16 %v215
      %v481 = vunpack.c.l.b16 %v216
      %v482 = vpack.c.b16 %v475, %v474
      %v483 = vpack.c.b16 %v477, %v476
      %v484 = vpack.c.b16 %v479, %v478
      %v485 = vpack.c.b16 %v481, %v480
      %v506 = vunpack.c.l.b16 %v217
      %v507 = vunpack.c.l.b16 %v218
      %v508 = vunpack.c.l.b16 %v219
      %v509 = vunpack.c.l.b16 %v220
      %v510 = vunpack.c.l.b16 %v221
      %v511 = vunpack.c.l.b16 %v222
      %v512 = vunpack.c.l.b16 %v223
      %v513 = vunpack.c.l.b16 %v224
      %v514 = vunpack.c.l.b16 %v225
      %v515 = vunpack.c.l.b16 %v226
      %v516 = vunpack.c.l.b16 %v227
      %v517 = vunpack.c.l.b16 %v228
      %v518 = vunpack.c.l.b16 %v229
      %v519 = vunpack.c.l.b16 %v230
      %v520 = vunpack.c.l.b16 %v231
      %v521 = vunpack.c.l.b16 %v232
      %v522 = vpack.c.b16 %v507, %v506
      %v523 = vpack.c.b16 %v509, %v508
      %v524 = vpack.c.b16 %v511, %v510
      %v525 = vpack.c.b16 %v513, %v512
      %v526 = vpack.c.b16 %v515, %v514
      %v527 = vpack.c.b16 %v517, %v516
      %v528 = vpack.c.b16 %v519, %v518
      %v529 = vpack.c.b16 %v521, %v520
      %538 = vmatpush.bf16.msra.mxu0 %v529
      %539 = vmatpush.bf16.msra.mxu0 %v528
      %540 = vmatpush.bf16.msra.mxu0 %v527
      %541 = vmatpush.bf16.msra.mxu0 %v526
      %542 = vmatpush.bf16.msra.mxu0 %v525
      %543 = vmatpush.bf16.msra.mxu0 %v524
      %544 = vmatpush.bf16.msra.mxu0 %v523
      %545 = vmatpush.bf16.msra.mxu0 %v522
      %546 = vmatmul.bf16.gmra.mxu0 %v482
      %v547 = vpop.f32.mrf.mxu0
      %v548 = vadd.f32 %v447, %v547
      %v549 = vpop.f32.mrf.mxu0
      %v550 = vadd.f32 %v449, %v549
      %551 = vmatmul.bf16.gmra.mxu0 %v483
      %v552 = vpop.f32.mrf.mxu0
      %v553 = vadd.f32 %v452, %v552
      %v554 = vpop.f32.mrf.mxu0
      %v555 = vadd.f32 %v454, %v554
      %556 = vmatmul.bf16.gmra.mxu0 %v484
      %v557 = vpop.f32.mrf.mxu0
      %v558 = vadd.f32 %v457, %v557
      %v559 = vpop.f32.mrf.mxu0
      %v560 = vadd.f32 %v459, %v559
      %561 = vmatmul.bf16.gmra.mxu0 %v485
      %v562 = vpop.f32.mrf.mxu0
      %v563 = vadd.f32 %v462, %v562
      %v564 = vpop.f32.mrf.mxu0
      %v565 = vadd.f32 %v464, %v564
      %566 = vdwg.mxu0
      %v567 = vld [vmem:[%s208] sm:$0xe]
      %v568 = vld [vmem:[%s208 + $0x8] sm:$0xe]
      %v569 = vld [vmem:[%s208 + $0x10] sm:$0xe]
      %v570 = vld [vmem:[%s208 + $0x18] sm:$0xe]
      %v571 = vld [vmem:[%s208 + $0x20] sm:$0xe]
      %v572 = vld [vmem:[%s208 + $0x28] sm:$0xe]
      %v573 = vld [vmem:[%s208 + $0x30] sm:$0xe]
      %v574 = vld [vmem:[%s208 + $0x38] sm:$0xe]
      %vm591 = vcmask 1042432
      %vm592 = vcmask 1046532
      %vm593 = vmor %vm591, %vm592
      %v594 = vrot.slane %v567, 5
      %v595 = vrot.slane %v594, 4
      %v596 = vrot.slane %v233, 5
      %v597 = vsel %vm593, %v595, %v596
      %v598 = vrot.slane %v568, 5
      %v599 = vrot.slane %v598, 4
      %v600 = vrot.slane %v234, 5
      %v601 = vsel %vm593, %v599, %v600
      %v602 = vrot.slane %v569, 5
      %v603 = vrot.slane %v602, 4
      %v604 = vrot.slane %v235, 5
      %v605 = vsel %vm593, %v603, %v604
      %v606 = vrot.slane %v570, 5
      %v607 = vrot.slane %v606, 4
      %v608 = vrot.slane %v236, 5
      %v609 = vsel %vm593, %v607, %v608
      %v610 = vrot.slane %v571, 5
      %v611 = vrot.slane %v610, 4
      %v612 = vrot.slane %v237, 5
      %v613 = vsel %vm593, %v611, %v612
      %v614 = vrot.slane %v572, 5
      %v615 = vrot.slane %v614, 4
      %v616 = vrot.slane %v238, 5
      %v617 = vsel %vm593, %v615, %v616
      %v618 = vrot.slane %v573, 5
      %v619 = vrot.slane %v618, 4
      %v620 = vrot.slane %v239, 5
      %v621 = vsel %vm593, %v619, %v620
      %v622 = vrot.slane %v574, 5
      %v623 = vrot.slane %v622, 4
      %v624 = vrot.slane %v240, 5
      %v625 = vsel %vm593, %v623, %v624
      %s626 = scalar_lea.vmem %s1, 128
      %v627 = vld [vmem:[%s626] sm:$0xf]
      %v628 = vld [vmem:[%s626 + $0x4] sm:$0xf]
      %v629 = vld [vmem:[%s626 + $0x8] sm:$0xf]
      %v630 = vld [vmem:[%s626 + $0xc] sm:$0xf]
      %v631 = vld [vmem:[%s626 + $0x10] sm:$0xf]
      %v632 = vld [vmem:[%s626 + $0x14] sm:$0xf]
      %v633 = vld [vmem:[%s626 + $0x18] sm:$0xf]
      %v634 = vld [vmem:[%s626 + $0x1c] sm:$0xf]
      %v635 = vld [vmem:[%s626 + $0x20] sm:$0xf]
      %v636 = vld [vmem:[%s626 + $0x24] sm:$0xf]
      %v637 = vld [vmem:[%s626 + $0x28] sm:$0xf]
      %v638 = vld [vmem:[%s626 + $0x2c] sm:$0xf]
      %v639 = vld [vmem:[%s626 + $0x30] sm:$0xf]
      %v640 = vld [vmem:[%s626 + $0x34] sm:$0xf]
      %v641 = vld [vmem:[%s626 + $0x38] sm:$0xf]
      %v642 = vld [vmem:[%s626 + $0x3c] sm:$0xf]
      %v643 = vunpack.c.l.b16 %v597
      %v644 = vunpack.c.l.b16 %v601
      %v645 = vunpack.c.l.b16 %v605
      %v646 = vunpack.c.l.b16 %v609
      %v647 = vunpack.c.l.b16 %v613
      %v648 = vunpack.c.l.b16 %v617
      %v649 = vunpack.c.l.b16 %v621
      %v650 = vunpack.c.l.b16 %v625
      %v651 = vpack.c.b16 %v644, %v643
      %v652 = vpack.c.b16 %v646, %v645
      %v653 = vpack.c.b16 %v648, %v647
      %v654 = vpack.c.b16 %v650, %v649
      %v675 = vunpack.c.l.b16 %v627
      %v676 = vunpack.c.l.b16 %v628
      %v677 = vunpack.c.l.b16 %v629
      %v678 = vunpack.c.l.b16 %v630
      %v679 = vunpack.c.l.b16 %v631
      %v680 = vunpack.c.l.b16 %v632
      %v681 = vunpack.c.l.b16 %v633
      %v682 = vunpack.c.l.b16 %v634
      %v683 = vunpack.c.l.b16 %v635
      %v684 = vunpack.c.l.b16 %v636
      %v685 = vunpack.c.l.b16 %v637
      %v686 = vunpack.c.l.b16 %v638
      %v687 = vunpack.c.l.b16 %v639
      %v688 = vunpack.c.l.b16 %v640
      %v689 = vunpack.c.l.b16 %v641
      %v690 = vunpack.c.l.b16 %v642
      %v691 = vpack.c.b16 %v676, %v675
      %v692 = vpack.c.b16 %v678, %v677
      %v693 = vpack.c.b16 %v680, %v679
      %v694 = vpack.c.b16 %v682, %v681
      %v695 = vpack.c.b16 %v684, %v683
      %v696 = vpack.c.b16 %v686, %v685
      %v697 = vpack.c.b16 %v688, %v687
      %v698 = vpack.c.b16 %v690, %v689
      %707 = vmatpush.bf16.msra.mxu0 %v698
      %708 = vmatpush.bf16.msra.mxu0 %v697
      %709 = vmatpush.bf16.msra.mxu0 %v696
      %710 = vmatpush.bf16.msra.mxu0 %v695
      %711 = vmatpush.bf16.msra.mxu0 %v694
      %712 = vmatpush.bf16.msra.mxu0 %v693
      %713 = vmatpush.bf16.msra.mxu0 %v692
      %714 = vmatpush.bf16.msra.mxu0 %v691
      %715 = vmatmul.bf16.gmra.mxu0 %v651
      %v716 = vpop.f32.mrf.mxu0
      %v717 = vadd.f32 0.0, %v716
      %v718 = vpop.f32.mrf.mxu0
      %v719 = vadd.f32 0.0, %v718
      %720 = vmatmul.bf16.gmra.mxu0 %v652
      %v721 = vpop.f32.mrf.mxu0
      %v722 = vadd.f32 0.0, %v721
      %v723 = vpop.f32.mrf.mxu0
      %v724 = vadd.f32 0.0, %v723
      %725 = vmatmul.bf16.gmra.mxu0 %v653
      %v726 = vpop.f32.mrf.mxu0
      %v727 = vadd.f32 0.0, %v726
      %v728 = vpop.f32.mrf.mxu0
      %v729 = vadd.f32 0.0, %v728
      %730 = vmatmul.bf16.gmra.mxu0 %v654
      %v731 = vpop.f32.mrf.mxu0
      %v732 = vadd.f32 0.0, %v731
      %v733 = vpop.f32.mrf.mxu0
      %v734 = vadd.f32 0.0, %v733
      %735 = vdwg.mxu0
      %v736 = vadd.f32 %v548, %v717
      %v737 = vadd.f32 %v550, %v719
      %v738 = vadd.f32 %v553, %v722
      %v739 = vadd.f32 %v555, %v724
      %v740 = vadd.f32 %v558, %v727
      %v741 = vadd.f32 %v560, %v729
      %v742 = vadd.f32 %v563, %v732
      %v743 = vadd.f32 %v565, %v734
      %s744 = sadd.s32 %s200, 1
      %s745 = smul.u32 %s744, 2
      %s746 = smul.addr %s745, 4
      %s747 = scalar_lea.vmem %s187, %s746
      %v748 = vld [vmem:[%s747] sm:$0xf]
      %v749 = vld [vmem:[%s747 + $0x8] sm:$0xf]
      %v750 = vld [vmem:[%s747 + $0x10] sm:$0xf]
      %v751 = vld [vmem:[%s747 + $0x18] sm:$0xf]
      %v752 = vld [vmem:[%s747 + $0x20] sm:$0xf]
      %v753 = vld [vmem:[%s747 + $0x28] sm:$0xf]
      %v754 = vld [vmem:[%s747 + $0x30] sm:$0xf]
      %v755 = vld [vmem:[%s747 + $0x38] sm:$0xf]
      %s756 = scalar_lea.vmem %s1, 192
      %v757 = vld [vmem:[%s756] sm:$0xf]
      %v758 = vld [vmem:[%s756 + $0x4] sm:$0xf]
      %v759 = vld [vmem:[%s756 + $0x8] sm:$0xf]
      %v760 = vld [vmem:[%s756 + $0xc] sm:$0xf]
      %v761 = vld [vmem:[%s756 + $0x10] sm:$0xf]
      %v762 = vld [vmem:[%s756 + $0x14] sm:$0xf]
      %v763 = vld [vmem:[%s756 + $0x18] sm:$0xf]
      %v764 = vld [vmem:[%s756 + $0x1c] sm:$0xf]
      %v765 = vld [vmem:[%s756 + $0x20] sm:$0xf]
      %v766 = vld [vmem:[%s756 + $0x24] sm:$0xf]
      %v767 = vld [vmem:[%s756 + $0x28] sm:$0xf]
      %v768 = vld [vmem:[%s756 + $0x2c] sm:$0xf]
      %v769 = vld [vmem:[%s756 + $0x30] sm:$0xf]
      %v770 = vld [vmem:[%s756 + $0x34] sm:$0xf]
      %v771 = vld [vmem:[%s756 + $0x38] sm:$0xf]
      %v772 = vld [vmem:[%s756 + $0x3c] sm:$0xf]
      %v781 = vunpack.c.l.b16 %v748
      %v782 = vunpack.c.l.b16 %v749
      %v783 = vunpack.c.l.b16 %v750
      %v784 = vunpack.c.l.b16 %v751
      %v785 = vunpack.c.l.b16 %v752
      %v786 = vunpack.c.l.b16 %v753
      %v787 = vunpack.c.l.b16 %v754
      %v788 = vunpack.c.l.b16 %v755
      %v789 = vpack.c.b16 %v782, %v781
      %v790 = vpack.c.b16 %v784, %v783
      %v791 = vpack.c.b16 %v786, %v785
      %v792 = vpack.c.b16 %v788, %v787
      %v813 = vunpack.c.l.b16 %v757
      %v814 = vunpack.c.l.b16 %v758
      %v815 = vunpack.c.l.b16 %v759
      %v816 = vunpack.c.l.b16 %v760
      %v817 = vunpack.c.l.b16 %v761
      %v818 = vunpack.c.l.b16 %v762
      %v819 = vunpack.c.l.b16 %v763
      %v820 = vunpack.c.l.b16 %v764
      %v821 = vunpack.c.l.b16 %v765
      %v822 = vunpack.c.l.b16 %v766
      %v823 = vunpack.c.l.b16 %v767
      %v824 = vunpack.c.l.b16 %v768
      %v825 = vunpack.c.l.b16 %v769
      %v826 = vunpack.c.l.b16 %v770
      %v827 = vunpack.c.l.b16 %v771
      %v828 = vunpack.c.l.b16 %v772
      %v829 = vpack.c.b16 %v814, %v813
      %v830 = vpack.c.b16 %v816, %v815
      %v831 = vpack.c.b16 %v818, %v817
      %v832 = vpack.c.b16 %v820, %v819
      %v833 = vpack.c.b16 %v822, %v821
      %v834 = vpack.c.b16 %v824, %v823
      %v835 = vpack.c.b16 %v826, %v825
      %v836 = vpack.c.b16 %v828, %v827
      %845 = vmatpush.bf16.msra.mxu0 %v836
      %846 = vmatpush.bf16.msra.mxu0 %v835
      %847 = vmatpush.bf16.msra.mxu0 %v834
      %848 = vmatpush.bf16.msra.mxu0 %v833
      %849 = vmatpush.bf16.msra.mxu0 %v832
      %850 = vmatpush.bf16.msra.mxu0 %v831
      %851 = vmatpush.bf16.msra.mxu0 %v830
      %852 = vmatpush.bf16.msra.mxu0 %v829
      %853 = vmatmul.bf16.gmra.mxu0 %v789
      %v854 = vpop.f32.mrf.mxu0
      %v855 = vadd.f32 0.0, %v854
      %v856 = vpop.f32.mrf.mxu0
      %v857 = vadd.f32 0.0, %v856
      %858 = vmatmul.bf16.gmra.mxu0 %v790
      %v859 = vpop.f32.mrf.mxu0
      %v860 = vadd.f32 0.0, %v859
      %v861 = vpop.f32.mrf.mxu0
      %v862 = vadd.f32 0.0, %v861
      %863 = vmatmul.bf16.gmra.mxu0 %v791
      %v864 = vpop.f32.mrf.mxu0
      %v865 = vadd.f32 0.0, %v864
      %v866 = vpop.f32.mrf.mxu0
      %v867 = vadd.f32 0.0, %v866
      %868 = vmatmul.bf16.gmra.mxu0 %v792
      %v869 = vpop.f32.mrf.mxu0
      %v870 = vadd.f32 0.0, %v869
      %v871 = vpop.f32.mrf.mxu0
      %v872 = vadd.f32 0.0, %v871
      %873 = vdwg.mxu0
      %v874 = vadd.f32 %v736, %v855
      %v875 = vadd.f32 %v737, %v857
      %v876 = vadd.f32 %v738, %v860
      %v877 = vadd.f32 %v739, %v862
      %v878 = vadd.f32 %v740, %v865
      %v879 = vadd.f32 %v741, %v867
      %v880 = vadd.f32 %v742, %v870
      %v881 = vadd.f32 %v743, %v872
      %v882 = vld [vmem:[%s747] sm:$0xf]
      %v883 = vld [vmem:[%s747 + $0x4] sm:$0x1]
      %v884 = vld [vmem:[%s747 + $0x8] sm:$0xf]
      %v885 = vld [vmem:[%s747 + $0xc] sm:$0x1]
      %v886 = vld [vmem:[%s747 + $0x10] sm:$0xf]
      %v887 = vld [vmem:[%s747 + $0x14] sm:$0x1]
      %v888 = vld [vmem:[%s747 + $0x18] sm:$0xf]
      %v889 = vld [vmem:[%s747 + $0x1c] sm:$0x1]
      %v890 = vld [vmem:[%s747 + $0x20] sm:$0xf]
      %v891 = vld [vmem:[%s747 + $0x24] sm:$0x1]
      %v892 = vld [vmem:[%s747 + $0x28] sm:$0xf]
      %v893 = vld [vmem:[%s747 + $0x2c] sm:$0x1]
      %v894 = vld [vmem:[%s747 + $0x30] sm:$0xf]
      %v895 = vld [vmem:[%s747 + $0x34] sm:$0x1]
      %v896 = vld [vmem:[%s747 + $0x38] sm:$0xf]
      %v897 = vld [vmem:[%s747 + $0x3c] sm:$0x1]
      %v899 = vshrl.u32 %v882, 16
      %v901 = vrot.slane %v899, 4
      %v902 = vshll.u32 %v882, 16
      %v904 = vrot.slane %v902, 5
      %v905 = vor.u32 %v901, %v904
      %v906 = vrot.slane %v905, 4
      %v908 = vshll.u32 %v883, 16
      %v910 = vrot.slane %v908, 5
      %v911 = vsel %vm243, %v906, %v910
      %v913 = vshrl.u32 %v884, 16
      %v915 = vrot.slane %v913, 4
      %v916 = vshll.u32 %v884, 16
      %v918 = vrot.slane %v916, 5
      %v919 = vor.u32 %v915, %v918
      %v920 = vrot.slane %v919, 4
      %v922 = vshll.u32 %v885, 16
      %v924 = vrot.slane %v922, 5
      %v925 = vsel %vm243, %v920, %v924
      %v927 = vshrl.u32 %v886, 16
      %v929 = vrot.slane %v927, 4
      %v930 = vshll.u32 %v886, 16
      %v932 = vrot.slane %v930, 5
      %v933 = vor.u32 %v929, %v932
      %v934 = vrot.slane %v933, 4
      %v936 = vshll.u32 %v887, 16
      %v938 = vrot.slane %v936, 5
      %v939 = vsel %vm243, %v934, %v938
      %v941 = vshrl.u32 %v888, 16
      %v943 = vrot.slane %v941, 4
      %v944 = vshll.u32 %v888, 16
      %v946 = vrot.slane %v944, 5
      %v947 = vor.u32 %v943, %v946
      %v948 = vrot.slane %v947, 4
      %v950 = vshll.u32 %v889, 16
      %v952 = vrot.slane %v950, 5
      %v953 = vsel %vm243, %v948, %v952
      %v955 = vshrl.u32 %v890, 16
      %v957 = vrot.slane %v955, 4
      %v958 = vshll.u32 %v890, 16
      %v960 = vrot.slane %v958, 5
      %v961 = vor.u32 %v957, %v960
      %v962 = vrot.slane %v961, 4
      %v964 = vshll.u32 %v891, 16
      %v966 = vrot.slane %v964, 5
      %v967 = vsel %vm243, %v962, %v966
      %v969 = vshrl.u32 %v892, 16
      %v971 = vrot.slane %v969, 4
      %v972 = vshll.u32 %v892, 16
      %v974 = vrot.slane %v972, 5
      %v975 = vor.u32 %v971, %v974
      %v976 = vrot.slane %v975, 4
      %v978 = vshll.u32 %v893, 16
      %v980 = vrot.slane %v978, 5
      %v981 = vsel %vm243, %v976, %v980
      %v983 = vshrl.u32 %v894, 16
      %v985 = vrot.slane %v983, 4
      %v986 = vshll.u32 %v894, 16
      %v988 = vrot.slane %v986, 5
      %v989 = vor.u32 %v985, %v988
      %v990 = vrot.slane %v989, 4
      %v992 = vshll.u32 %v895, 16
      %v994 = vrot.slane %v992, 5
      %v995 = vsel %vm243, %v990, %v994
      %v997 = vshrl.u32 %v896, 16
      %v999 = vrot.slane %v997, 4
      %v1000 = vshll.u32 %v896, 16
      %v1002 = vrot.slane %v1000, 5
      %v1003 = vor.u32 %v999, %v1002
      %v1004 = vrot.slane %v1003, 4
      %v1006 = vshll.u32 %v897, 16
      %v1008 = vrot.slane %v1006, 5
      %v1009 = vsel %vm243, %v1004, %v1008
      %s1010 = scalar_lea.vmem %s1, 256
      %v1011 = vld [vmem:[%s1010] sm:$0xf]
      %v1012 = vld [vmem:[%s1010 + $0x4] sm:$0xf]
      %v1013 = vld [vmem:[%s1010 + $0x8] sm:$0xf]
      %v1014 = vld [vmem:[%s1010 + $0xc] sm:$0xf]
      %v1015 = vld [vmem:[%s1010 + $0x10] sm:$0xf]
      %v1016 = vld [vmem:[%s1010 + $0x14] sm:$0xf]
      %v1017 = vld [vmem:[%s1010 + $0x18] sm:$0xf]
      %v1018 = vld [vmem:[%s1010 + $0x1c] sm:$0xf]
      %v1019 = vld [vmem:[%s1010 + $0x20] sm:$0xf]
      %v1020 = vld [vmem:[%s1010 + $0x24] sm:$0xf]
      %v1021 = vld [vmem:[%s1010 + $0x28] sm:$0xf]
      %v1022 = vld [vmem:[%s1010 + $0x2c] sm:$0xf]
      %v1023 = vld [vmem:[%s1010 + $0x30] sm:$0xf]
      %v1024 = vld [vmem:[%s1010 + $0x34] sm:$0xf]
      %v1025 = vld [vmem:[%s1010 + $0x38] sm:$0xf]
      %v1026 = vld [vmem:[%s1010 + $0x3c] sm:$0xf]
      %v1027 = vunpack.c.l.b16 %v911
      %v1028 = vunpack.c.l.b16 %v925
      %v1029 = vunpack.c.l.b16 %v939
      %v1030 = vunpack.c.l.b16 %v953
      %v1031 = vunpack.c.l.b16 %v967
      %v1032 = vunpack.c.l.b16 %v981
      %v1033 = vunpack.c.l.b16 %v995
      %v1034 = vunpack.c.l.b16 %v1009
      %v1035 = vpack.c.b16 %v1028, %v1027
      %v1036 = vpack.c.b16 %v1030, %v1029
      %v1037 = vpack.c.b16 %v1032, %v1031
      %v1038 = vpack.c.b16 %v1034, %v1033
      %v1059 = vunpack.c.l.b16 %v1011
      %v1060 = vunpack.c.l.b16 %v1012
      %v1061 = vunpack.c.l.b16 %v1013
      %v1062 = vunpack.c.l.b16 %v1014
      %v1063 = vunpack.c.l.b16 %v1015
      %v1064 = vunpack.c.l.b16 %v1016
      %v1065 = vunpack.c.l.b16 %v1017
      %v1066 = vunpack.c.l.b16 %v1018
      %v1067 = vunpack.c.l.b16 %v1019
      %v1068 = vunpack.c.l.b16 %v1020
      %v1069 = vunpack.c.l.b16 %v1021
      %v1070 = vunpack.c.l.b16 %v1022
      %v1071 = vunpack.c.l.b16 %v1023
      %v1072 = vunpack.c.l.b16 %v1024
      %v1073 = vunpack.c.l.b16 %v1025
      %v1074 = vunpack.c.l.b16 %v1026
      %v1075 = vpack.c.b16 %v1060, %v1059
      %v1076 = vpack.c.b16 %v1062, %v1061
      %v1077 = vpack.c.b16 %v1064, %v1063
      %v1078 = vpack.c.b16 %v1066, %v1065
      %v1079 = vpack.c.b16 %v1068, %v1067
      %v1080 = vpack.c.b16 %v1070, %v1069
      %v1081 = vpack.c.b16 %v1072, %v1071
      %v1082 = vpack.c.b16 %v1074, %v1073
      %1091 = vmatpush.bf16.msra.mxu0 %v1082
      %1092 = vmatpush.bf16.msra.mxu0 %v1081
      %1093 = vmatpush.bf16.msra.mxu0 %v1080
      %1094 = vmatpush.bf16.msra.mxu0 %v1079
      %1095 = vmatpush.bf16.msra.mxu0 %v1078
      %1096 = vmatpush.bf16.msra.mxu0 %v1077
      %1097 = vmatpush.bf16.msra.mxu0 %v1076
      %1098 = vmatpush.bf16.msra.mxu0 %v1075
      %1099 = vmatmul.bf16.gmra.mxu0 %v1035
      %v1100 = vpop.f32.mrf.mxu0
      %v1101 = vadd.f32 0.0, %v1100
      %v1102 = vpop.f32.mrf.mxu0
      %v1103 = vadd.f32 0.0, %v1102
      %1104 = vmatmul.bf16.gmra.mxu0 %v1036
      %v1105 = vpop.f32.mrf.mxu0
      %v1106 = vadd.f32 0.0, %v1105
      %v1107 = vpop.f32.mrf.mxu0
      %v1108 = vadd.f32 0.0, %v1107
      %1109 = vmatmul.bf16.gmra.mxu0 %v1037
      %v1110 = vpop.f32.mrf.mxu0
      %v1111 = vadd.f32 0.0, %v1110
      %v1112 = vpop.f32.mrf.mxu0
      %v1113 = vadd.f32 0.0, %v1112
      %1114 = vmatmul.bf16.gmra.mxu0 %v1038
      %v1115 = vpop.f32.mrf.mxu0
      %v1116 = vadd.f32 0.0, %v1115
      %v1117 = vpop.f32.mrf.mxu0
      %v1118 = vadd.f32 0.0, %v1117
      %1119 = vdwg.mxu0
      %v1120 = vadd.f32 %v874, %v1101
      %v1121 = vadd.f32 %v875, %v1103
      %v1122 = vadd.f32 %v876, %v1106
      %v1123 = vadd.f32 %v877, %v1108
      %v1124 = vadd.f32 %v878, %v1111
      %v1125 = vadd.f32 %v879, %v1113
      %v1126 = vadd.f32 %v880, %v1116
      %v1127 = vadd.f32 %v881, %v1118
      %v1128 = vld [vmem:[%s747] sm:$0xe]
      %v1129 = vld [vmem:[%s747 + $0x8] sm:$0xe]
      %v1130 = vld [vmem:[%s747 + $0x10] sm:$0xe]
      %v1131 = vld [vmem:[%s747 + $0x18] sm:$0xe]
      %v1132 = vld [vmem:[%s747 + $0x20] sm:$0xe]
      %v1133 = vld [vmem:[%s747 + $0x28] sm:$0xe]
      %v1134 = vld [vmem:[%s747 + $0x30] sm:$0xe]
      %v1135 = vld [vmem:[%s747 + $0x38] sm:$0xe]
      %v1152 = vrot.slane %v1128, 5
      %v1153 = vrot.slane %v1152, 4
      %v1154 = vrot.slane %v883, 5
      %v1155 = vsel %vm593, %v1153, %v1154
      %v1156 = vrot.slane %v1129, 5
      %v1157 = vrot.slane %v1156, 4
      %v1158 = vrot.slane %v885, 5
      %v1159 = vsel %vm593, %v1157, %v1158
      %v1160 = vrot.slane %v1130, 5
      %v1161 = vrot.slane %v1160, 4
      %v1162 = vrot.slane %v887, 5
      %v1163 = vsel %vm593, %v1161, %v1162
      %v1164 = vrot.slane %v1131, 5
      %v1165 = vrot.slane %v1164, 4
      %v1166 = vrot.slane %v889, 5
      %v1167 = vsel %vm593, %v1165, %v1166
      %v1168 = vrot.slane %v1132, 5
      %v1169 = vrot.slane %v1168, 4
      %v1170 = vrot.slane %v891, 5
      %v1171 = vsel %vm593, %v1169, %v1170
      %v1172 = vrot.slane %v1133, 5
      %v1173 = vrot.slane %v1172, 4
      %v1174 = vrot.slane %v893, 5
      %v1175 = vsel %vm593, %v1173, %v1174
      %v1176 = vrot.slane %v1134, 5
      %v1177 = vrot.slane %v1176, 4
      %v1178 = vrot.slane %v895, 5
      %v1179 = vsel %vm593, %v1177, %v1178
      %v1180 = vrot.slane %v1135, 5
      %v1181 = vrot.slane %v1180, 4
      %v1182 = vrot.slane %v897, 5
      %v1183 = vsel %vm593, %v1181, %v1182
      %s1184 = scalar_lea.vmem %s1, 320
      %v1185 = vld [vmem:[%s1184] sm:$0xf]
      %v1186 = vld [vmem:[%s1184 + $0x4] sm:$0xf]
      %v1187 = vld [vmem:[%s1184 + $0x8] sm:$0xf]
      %v1188 = vld [vmem:[%s1184 + $0xc] sm:$0xf]
      %v1189 = vld [vmem:[%s1184 + $0x10] sm:$0xf]
      %v1190 = vld [vmem:[%s1184 + $0x14] sm:$0xf]
      %v1191 = vld [vmem:[%s1184 + $0x18] sm:$0xf]
      %v1192 = vld [vmem:[%s1184 + $0x1c] sm:$0xf]
      %v1193 = vld [vmem:[%s1184 + $0x20] sm:$0xf]
      %v1194 = vld [vmem:[%s1184 + $0x24] sm:$0xf]
      %v1195 = vld [vmem:[%s1184 + $0x28] sm:$0xf]
      %v1196 = vld [vmem:[%s1184 + $0x2c] sm:$0xf]
      %v1197 = vld [vmem:[%s1184 + $0x30] sm:$0xf]
      %v1198 = vld [vmem:[%s1184 + $0x34] sm:$0xf]
      %v1199 = vld [vmem:[%s1184 + $0x38] sm:$0xf]
      %v1200 = vld [vmem:[%s1184 + $0x3c] sm:$0xf]
      %v1201 = vunpack.c.l.b16 %v1155
      %v1202 = vunpack.c.l.b16 %v1159
      %v1203 = vunpack.c.l.b16 %v1163
      %v1204 = vunpack.c.l.b16 %v1167
      %v1205 = vunpack.c.l.b16 %v1171
      %v1206 = vunpack.c.l.b16 %v1175
      %v1207 = vunpack.c.l.b16 %v1179
      %v1208 = vunpack.c.l.b16 %v1183
      %v1209 = vpack.c.b16 %v1202, %v1201
      %v1210 = vpack.c.b16 %v1204, %v1203
      %v1211 = vpack.c.b16 %v1206, %v1205
      %v1212 = vpack.c.b16 %v1208, %v1207
      %v1233 = vunpack.c.l.b16 %v1185
      %v1234 = vunpack.c.l.b16 %v1186
      %v1235 = vunpack.c.l.b16 %v1187
      %v1236 = vunpack.c.l.b16 %v1188
      %v1237 = vunpack.c.l.b16 %v1189
      %v1238 = vunpack.c.l.b16 %v1190
      %v1239 = vunpack.c.l.b16 %v1191
      %v1240 = vunpack.c.l.b16 %v1192
      %v1241 = vunpack.c.l.b16 %v1193
      %v1242 = vunpack.c.l.b16 %v1194
      %v1243 = vunpack.c.l.b16 %v1195
      %v1244 = vunpack.c.l.b16 %v1196
      %v1245 = vunpack.c.l.b16 %v1197
      %v1246 = vunpack.c.l.b16 %v1198
      %v1247 = vunpack.c.l.b16 %v1199
      %v1248 = vunpack.c.l.b16 %v1200
      %v1249 = vpack.c.b16 %v1234, %v1233
      %v1250 = vpack.c.b16 %v1236, %v1235
      %v1251 = vpack.c.b16 %v1238, %v1237
      %v1252 = vpack.c.b16 %v1240, %v1239
      %v1253 = vpack.c.b16 %v1242, %v1241
      %v1254 = vpack.c.b16 %v1244, %v1243
      %v1255 = vpack.c.b16 %v1246, %v1245
      %v1256 = vpack.c.b16 %v1248, %v1247
      %1265 = vmatpush.bf16.msra.mxu0 %v1256
      %1266 = vmatpush.bf16.msra.mxu0 %v1255
      %1267 = vmatpush.bf16.msra.mxu0 %v1254
      %1268 = vmatpush.bf16.msra.mxu0 %v1253
      %1269 = vmatpush.bf16.msra.mxu0 %v1252
      %1270 = vmatpush.bf16.msra.mxu0 %v1251
      %1271 = vmatpush.bf16.msra.mxu0 %v1250
      %1272 = vmatpush.bf16.msra.mxu0 %v1249
      %1273 = vmatmul.bf16.gmra.mxu0 %v1209
      %v1274 = vpop.f32.mrf.mxu0
      %v1275 = vadd.f32 0.0, %v1274
      %v1276 = vpop.f32.mrf.mxu0
      %v1277 = vadd.f32 0.0, %v1276
      %1278 = vmatmul.bf16.gmra.mxu0 %v1210
      %v1279 = vpop.f32.mrf.mxu0
      %v1280 = vadd.f32 0.0, %v1279
      %v1281 = vpop.f32.mrf.mxu0
      %v1282 = vadd.f32 0.0, %v1281
      %1283 = vmatmul.bf16.gmra.mxu0 %v1211
      %v1284 = vpop.f32.mrf.mxu0
      %v1285 = vadd.f32 0.0, %v1284
      %v1286 = vpop.f32.mrf.mxu0
      %v1287 = vadd.f32 0.0, %v1286
      %1288 = vmatmul.bf16.gmra.mxu0 %v1212
      %v1289 = vpop.f32.mrf.mxu0
      %v1290 = vadd.f32 0.0, %v1289
      %v1291 = vpop.f32.mrf.mxu0
      %v1292 = vadd.f32 0.0, %v1291
      %1293 = vdwg.mxu0
      %v1294 = vadd.f32 %v1120, %v1275
      %v1295 = vadd.f32 %v1121, %v1277
      %v1296 = vadd.f32 %v1122, %v1280
      %v1297 = vadd.f32 %v1123, %v1282
      %v1298 = vadd.f32 %v1124, %v1285
      %v1299 = vadd.f32 %v1125, %v1287
      %v1300 = vadd.f32 %v1126, %v1290
      %v1301 = vadd.f32 %v1127, %v1292
      %s1302 = sadd.s32 %s200, 2
      %s1303 = smul.u32 %s1302, 2
      %s1304 = smul.addr %s1303, 4
      %s1305 = scalar_lea.vmem %s187, %s1304
      %v1306 = vld [vmem:[%s1305] sm:$0xf]
      %v1307 = vld [vmem:[%s1305 + $0x8] sm:$0xf]
      %v1308 = vld [vmem:[%s1305 + $0x10] sm:$0xf]
      %v1309 = vld [vmem:[%s1305 + $0x18] sm:$0xf]
      %v1310 = vld [vmem:[%s1305 + $0x20] sm:$0xf]
      %v1311 = vld [vmem:[%s1305 + $0x28] sm:$0xf]
      %v1312 = vld [vmem:[%s1305 + $0x30] sm:$0xf]
      %v1313 = vld [vmem:[%s1305 + $0x38] sm:$0xf]
      %s1314 = scalar_lea.vmem %s1, 384
      %v1315 = vld [vmem:[%s1314] sm:$0xf]
      %v1316 = vld [vmem:[%s1314 + $0x4] sm:$0xf]
      %v1317 = vld [vmem:[%s1314 + $0x8] sm:$0xf]
      %v1318 = vld [vmem:[%s1314 + $0xc] sm:$0xf]
      %v1319 = vld [vmem:[%s1314 + $0x10] sm:$0xf]
      %v1320 = vld [vmem:[%s1314 + $0x14] sm:$0xf]
      %v1321 = vld [vmem:[%s1314 + $0x18] sm:$0xf]
      %v1322 = vld [vmem:[%s1314 + $0x1c] sm:$0xf]
      %v1323 = vld [vmem:[%s1314 + $0x20] sm:$0xf]
      %v1324 = vld [vmem:[%s1314 + $0x24] sm:$0xf]
      %v1325 = vld [vmem:[%s1314 + $0x28] sm:$0xf]
      %v1326 = vld [vmem:[%s1314 + $0x2c] sm:$0xf]
      %v1327 = vld [vmem:[%s1314 + $0x30] sm:$0xf]
      %v1328 = vld [vmem:[%s1314 + $0x34] sm:$0xf]
      %v1329 = vld [vmem:[%s1314 + $0x38] sm:$0xf]
      %v1330 = vld [vmem:[%s1314 + $0x3c] sm:$0xf]
      %v1339 = vunpack.c.l.b16 %v1306
      %v1340 = vunpack.c.l.b16 %v1307
      %v1341 = vunpack.c.l.b16 %v1308
      %v1342 = vunpack.c.l.b16 %v1309
      %v1343 = vunpack.c.l.b16 %v1310
      %v1344 = vunpack.c.l.b16 %v1311
      %v1345 = vunpack.c.l.b16 %v1312
      %v1346 = vunpack.c.l.b16 %v1313
      %v1347 = vpack.c.b16 %v1340, %v1339
      %v1348 = vpack.c.b16 %v1342, %v1341
      %v1349 = vpack.c.b16 %v1344, %v1343
      %v1350 = vpack.c.b16 %v1346, %v1345
      %v1371 = vunpack.c.l.b16 %v1315
      %v1372 = vunpack.c.l.b16 %v1316
      %v1373 = vunpack.c.l.b16 %v1317
      %v1374 = vunpack.c.l.b16 %v1318
      %v1375 = vunpack.c.l.b16 %v1319
      %v1376 = vunpack.c.l.b16 %v1320
      %v1377 = vunpack.c.l.b16 %v1321
      %v1378 = vunpack.c.l.b16 %v1322
      %v1379 = vunpack.c.l.b16 %v1323
      %v1380 = vunpack.c.l.b16 %v1324
      %v1381 = vunpack.c.l.b16 %v1325
      %v1382 = vunpack.c.l.b16 %v1326
      %v1383 = vunpack.c.l.b16 %v1327
      %v1384 = vunpack.c.l.b16 %v1328
      %v1385 = vunpack.c.l.b16 %v1329
      %v1386 = vunpack.c.l.b16 %v1330
      %v1387 = vpack.c.b16 %v1372, %v1371
      %v1388 = vpack.c.b16 %v1374, %v1373
      %v1389 = vpack.c.b16 %v1376, %v1375
      %v1390 = vpack.c.b16 %v1378, %v1377
      %v1391 = vpack.c.b16 %v1380, %v1379
      %v1392 = vpack.c.b16 %v1382, %v1381
      %v1393 = vpack.c.b16 %v1384, %v1383
      %v1394 = vpack.c.b16 %v1386, %v1385
      %1403 = vmatpush.bf16.msra.mxu0 %v1394
      %1404 = vmatpush.bf16.msra.mxu0 %v1393
      %1405 = vmatpush.bf16.msra.mxu0 %v1392
      %1406 = vmatpush.bf16.msra.mxu0 %v1391
      %1407 = vmatpush.bf16.msra.mxu0 %v1390
      %1408 = vmatpush.bf16.msra.mxu0 %v1389
      %1409 = vmatpush.bf16.msra.mxu0 %v1388
      %1410 = vmatpush.bf16.msra.mxu0 %v1387
      %1411 = vmatmul.bf16.gmra.mxu0 %v1347
      %v1412 = vpop.f32.mrf.mxu0
      %v1413 = vadd.f32 0.0, %v1412
      %v1414 = vpop.f32.mrf.mxu0
      %v1415 = vadd.f32 0.0, %v1414
      %1416 = vmatmul.bf16.gmra.mxu0 %v1348
      %v1417 = vpop.f32.mrf.mxu0
      %v1418 = vadd.f32 0.0, %v1417
      %v1419 = vpop.f32.mrf.mxu0
      %v1420 = vadd.f32 0.0, %v1419
      %1421 = vmatmul.bf16.gmra.mxu0 %v1349
      %v1422 = vpop.f32.mrf.mxu0
      %v1423 = vadd.f32 0.0, %v1422
      %v1424 = vpop.f32.mrf.mxu0
      %v1425 = vadd.f32 0.0, %v1424
      %1426 = vmatmul.bf16.gmra.mxu0 %v1350
      %v1427 = vpop.f32.mrf.mxu0
      %v1428 = vadd.f32 0.0, %v1427
      %v1429 = vpop.f32.mrf.mxu0
      %v1430 = vadd.f32 0.0, %v1429
      %1431 = vdwg.mxu0
      %v1432 = vadd.f32 %v1294, %v1413
      %v1433 = vadd.f32 %v1295, %v1415
      %v1434 = vadd.f32 %v1296, %v1418
      %v1435 = vadd.f32 %v1297, %v1420
      %v1436 = vadd.f32 %v1298, %v1423
      %v1437 = vadd.f32 %v1299, %v1425
      %v1438 = vadd.f32 %v1300, %v1428
      %v1439 = vadd.f32 %v1301, %v1430
      %v1440 = vld [vmem:[%s1305] sm:$0xf]
      %v1441 = vld [vmem:[%s1305 + $0x4] sm:$0x1]
      %v1442 = vld [vmem:[%s1305 + $0x8] sm:$0xf]
      %v1443 = vld [vmem:[%s1305 + $0xc] sm:$0x1]
      %v1444 = vld [vmem:[%s1305 + $0x10] sm:$0xf]
      %v1445 = vld [vmem:[%s1305 + $0x14] sm:$0x1]
      %v1446 = vld [vmem:[%s1305 + $0x18] sm:$0xf]
      %v1447 = vld [vmem:[%s1305 + $0x1c] sm:$0x1]
      %v1448 = vld [vmem:[%s1305 + $0x20] sm:$0xf]
      %v1449 = vld [vmem:[%s1305 + $0x24] sm:$0x1]
      %v1450 = vld [vmem:[%s1305 + $0x28] sm:$0xf]
      %v1451 = vld [vmem:[%s1305 + $0x2c] sm:$0x1]
      %v1452 = vld [vmem:[%s1305 + $0x30] sm:$0xf]
      %v1453 = vld [vmem:[%s1305 + $0x34] sm:$0x1]
      %v1454 = vld [vmem:[%s1305 + $0x38] sm:$0xf]
      %v1455 = vld [vmem:[%s1305 + $0x3c] sm:$0x1]
      %v1457 = vshrl.u32 %v1440, 16
      %v1459 = vrot.slane %v1457, 4
      %v1460 = vshll.u32 %v1440, 16
      %v1462 = vrot.slane %v1460, 5
      %v1463 = vor.u32 %v1459, %v1462
      %v1464 = vrot.slane %v1463, 4
      %v1466 = vshll.u32 %v1441, 16
      %v1468 = vrot.slane %v1466, 5
      %v1469 = vsel %vm243, %v1464, %v1468
      %v1471 = vshrl.u32 %v1442, 16
      %v1473 = vrot.slane %v1471, 4
      %v1474 = vshll.u32 %v1442, 16
      %v1476 = vrot.slane %v1474, 5
      %v1477 = vor.u32 %v1473, %v1476
      %v1478 = vrot.slane %v1477, 4
      %v1480 = vshll.u32 %v1443, 16
      %v1482 = vrot.slane %v1480, 5
      %v1483 = vsel %vm243, %v1478, %v1482
      %v1485 = vshrl.u32 %v1444, 16
      %v1487 = vrot.slane %v1485, 4
      %v1488 = vshll.u32 %v1444, 16
      %v1490 = vrot.slane %v1488, 5
      %v1491 = vor.u32 %v1487, %v1490
      %v1492 = vrot.slane %v1491, 4
      %v1494 = vshll.u32 %v1445, 16
      %v1496 = vrot.slane %v1494, 5
      %v1497 = vsel %vm243, %v1492, %v1496
      %v1499 = vshrl.u32 %v1446, 16
      %v1501 = vrot.slane %v1499, 4
      %v1502 = vshll.u32 %v1446, 16
      %v1504 = vrot.slane %v1502, 5
      %v1505 = vor.u32 %v1501, %v1504
      %v1506 = vrot.slane %v1505, 4
      %v1508 = vshll.u32 %v1447, 16
      %v1510 = vrot.slane %v1508, 5
      %v1511 = vsel %vm243, %v1506, %v1510
      %v1513 = vshrl.u32 %v1448, 16
      %v1515 = vrot.slane %v1513, 4
      %v1516 = vshll.u32 %v1448, 16
      %v1518 = vrot.slane %v1516, 5
      %v1519 = vor.u32 %v1515, %v1518
      %v1520 = vrot.slane %v1519, 4
      %v1522 = vshll.u32 %v1449, 16
      %v1524 = vrot.slane %v1522, 5
      %v1525 = vsel %vm243, %v1520, %v1524
      %v1527 = vshrl.u32 %v1450, 16
      %v1529 = vrot.slane %v1527, 4
      %v1530 = vshll.u32 %v1450, 16
      %v1532 = vrot.slane %v1530, 5
      %v1533 = vor.u32 %v1529, %v1532
      %v1534 = vrot.slane %v1533, 4
      %v1536 = vshll.u32 %v1451, 16
      %v1538 = vrot.slane %v1536, 5
      %v1539 = vsel %vm243, %v1534, %v1538
      %v1541 = vshrl.u32 %v1452, 16
      %v1543 = vrot.slane %v1541, 4
      %v1544 = vshll.u32 %v1452, 16
      %v1546 = vrot.slane %v1544, 5
      %v1547 = vor.u32 %v1543, %v1546
      %v1548 = vrot.slane %v1547, 4
      %v1550 = vshll.u32 %v1453, 16
      %v1552 = vrot.slane %v1550, 5
      %v1553 = vsel %vm243, %v1548, %v1552
      %v1555 = vshrl.u32 %v1454, 16
      %v1557 = vrot.slane %v1555, 4
      %v1558 = vshll.u32 %v1454, 16
      %v1560 = vrot.slane %v1558, 5
      %v1561 = vor.u32 %v1557, %v1560
      %v1562 = vrot.slane %v1561, 4
      %v1564 = vshll.u32 %v1455, 16
      %v1566 = vrot.slane %v1564, 5
      %v1567 = vsel %vm243, %v1562, %v1566
      %s1568 = scalar_lea.vmem %s1, 448
      %v1569 = vld [vmem:[%s1568] sm:$0xf]
      %v1570 = vld [vmem:[%s1568 + $0x4] sm:$0xf]
      %v1571 = vld [vmem:[%s1568 + $0x8] sm:$0xf]
      %v1572 = vld [vmem:[%s1568 + $0xc] sm:$0xf]
      %v1573 = vld [vmem:[%s1568 + $0x10] sm:$0xf]
      %v1574 = vld [vmem:[%s1568 + $0x14] sm:$0xf]
      %v1575 = vld [vmem:[%s1568 + $0x18] sm:$0xf]
      %v1576 = vld [vmem:[%s1568 + $0x1c] sm:$0xf]
      %v1577 = vld [vmem:[%s1568 + $0x20] sm:$0xf]
      %v1578 = vld [vmem:[%s1568 + $0x24] sm:$0xf]
      %v1579 = vld [vmem:[%s1568 + $0x28] sm:$0xf]
      %v1580 = vld [vmem:[%s1568 + $0x2c] sm:$0xf]
      %v1581 = vld [vmem:[%s1568 + $0x30] sm:$0xf]
      %v1582 = vld [vmem:[%s1568 + $0x34] sm:$0xf]
      %v1583 = vld [vmem:[%s1568 + $0x38] sm:$0xf]
      %v1584 = vld [vmem:[%s1568 + $0x3c] sm:$0xf]
      %v1585 = vunpack.c.l.b16 %v1469
      %v1586 = vunpack.c.l.b16 %v1483
      %v1587 = vunpack.c.l.b16 %v1497
      %v1588 = vunpack.c.l.b16 %v1511
      %v1589 = vunpack.c.l.b16 %v1525
      %v1590 = vunpack.c.l.b16 %v1539
      %v1591 = vunpack.c.l.b16 %v1553
      %v1592 = vunpack.c.l.b16 %v1567
      %v1593 = vpack.c.b16 %v1586, %v1585
      %v1594 = vpack.c.b16 %v1588, %v1587
      %v1595 = vpack.c.b16 %v1590, %v1589
      %v1596 = vpack.c.b16 %v1592, %v1591
      %v1617 = vunpack.c.l.b16 %v1569
      %v1618 = vunpack.c.l.b16 %v1570
      %v1619 = vunpack.c.l.b16 %v1571
      %v1620 = vunpack.c.l.b16 %v1572
      %v1621 = vunpack.c.l.b16 %v1573
      %v1622 = vunpack.c.l.b16 %v1574
      %v1623 = vunpack.c.l.b16 %v1575
      %v1624 = vunpack.c.l.b16 %v1576
      %v1625 = vunpack.c.l.b16 %v1577
      %v1626 = vunpack.c.l.b16 %v1578
      %v1627 = vunpack.c.l.b16 %v1579
      %v1628 = vunpack.c.l.b16 %v1580
      %v1629 = vunpack.c.l.b16 %v1581
      %v1630 = vunpack.c.l.b16 %v1582
      %v1631 = vunpack.c.l.b16 %v1583
      %v1632 = vunpack.c.l.b16 %v1584
      %v1633 = vpack.c.b16 %v1618, %v1617
      %v1634 = vpack.c.b16 %v1620, %v1619
      %v1635 = vpack.c.b16 %v1622, %v1621
      %v1636 = vpack.c.b16 %v1624, %v1623
      %v1637 = vpack.c.b16 %v1626, %v1625
      %v1638 = vpack.c.b16 %v1628, %v1627
      %v1639 = vpack.c.b16 %v1630, %v1629
      %v1640 = vpack.c.b16 %v1632, %v1631
      %1649 = vmatpush.bf16.msra.mxu0 %v1640
      %1650 = vmatpush.bf16.msra.mxu0 %v1639
      %1651 = vmatpush.bf16.msra.mxu0 %v1638
      %1652 = vmatpush.bf16.msra.mxu0 %v1637
      %1653 = vmatpush.bf16.msra.mxu0 %v1636
      %1654 = vmatpush.bf16.msra.mxu0 %v1635
      %1655 = vmatpush.bf16.msra.mxu0 %v1634
      %1656 = vmatpush.bf16.msra.mxu0 %v1633
      %1657 = vmatmul.bf16.gmra.mxu0 %v1593
      %v1658 = vpop.f32.mrf.mxu0
      %v1659 = vadd.f32 0.0, %v1658
      %v1660 = vpop.f32.mrf.mxu0
      %v1661 = vadd.f32 0.0, %v1660
      %1662 = vmatmul.bf16.gmra.mxu0 %v1594
      %v1663 = vpop.f32.mrf.mxu0
      %v1664 = vadd.f32 0.0, %v1663
      %v1665 = vpop.f32.mrf.mxu0
      %v1666 = vadd.f32 0.0, %v1665
      %1667 = vmatmul.bf16.gmra.mxu0 %v1595
      %v1668 = vpop.f32.mrf.mxu0
      %v1669 = vadd.f32 0.0, %v1668
      %v1670 = vpop.f32.mrf.mxu0
      %v1671 = vadd.f32 0.0, %v1670
      %1672 = vmatmul.bf16.gmra.mxu0 %v1596
      %v1673 = vpop.f32.mrf.mxu0
      %v1674 = vadd.f32 0.0, %v1673
      %v1675 = vpop.f32.mrf.mxu0
      %v1676 = vadd.f32 0.0, %v1675
      %1677 = vdwg.mxu0
      %v1678 = vadd.f32 %v1432, %v1659
      %v1679 = vadd.f32 %v1433, %v1661
      %v1680 = vadd.f32 %v1434, %v1664
      %v1681 = vadd.f32 %v1435, %v1666
      %v1682 = vadd.f32 %v1436, %v1669
      %v1683 = vadd.f32 %v1437, %v1671
      %v1684 = vadd.f32 %v1438, %v1674
      %v1685 = vadd.f32 %v1439, %v1676
      %v1686 = vld [vmem:[%s1305] sm:$0xe]
      %v1687 = vld [vmem:[%s1305 + $0x8] sm:$0xe]
      %v1688 = vld [vmem:[%s1305 + $0x10] sm:$0xe]
      %v1689 = vld [vmem:[%s1305 + $0x18] sm:$0xe]
      %v1690 = vld [vmem:[%s1305 + $0x20] sm:$0xe]
      %v1691 = vld [vmem:[%s1305 + $0x28] sm:$0xe]
      %v1692 = vld [vmem:[%s1305 + $0x30] sm:$0xe]
      %v1693 = vld [vmem:[%s1305 + $0x38] sm:$0xe]
      %v1710 = vrot.slane %v1686, 5
      %v1711 = vrot.slane %v1710, 4
      %v1712 = vrot.slane %v1441, 5
      %v1713 = vsel %vm593, %v1711, %v1712
      %v1714 = vrot.slane %v1687, 5
      %v1715 = vrot.slane %v1714, 4
      %v1716 = vrot.slane %v1443, 5
      %v1717 = vsel %vm593, %v1715, %v1716
      %v1718 = vrot.slane %v1688, 5
      %v1719 = vrot.slane %v1718, 4
      %v1720 = vrot.slane %v1445, 5
      %v1721 = vsel %vm593, %v1719, %v1720
      %v1722 = vrot.slane %v1689, 5
      %v1723 = vrot.slane %v1722, 4
      %v1724 = vrot.slane %v1447, 5
      %v1725 = vsel %vm593, %v1723, %v1724
      %v1726 = vrot.slane %v1690, 5
      %v1727 = vrot.slane %v1726, 4
      %v1728 = vrot.slane %v1449, 5
      %v1729 = vsel %vm593, %v1727, %v1728
      %v1730 = vrot.slane %v1691, 5
      %v1731 = vrot.slane %v1730, 4
      %v1732 = vrot.slane %v1451, 5
      %v1733 = vsel %vm593, %v1731, %v1732
      %v1734 = vrot.slane %v1692, 5
      %v1735 = vrot.slane %v1734, 4
      %v1736 = vrot.slane %v1453, 5
      %v1737 = vsel %vm593, %v1735, %v1736
      %v1738 = vrot.slane %v1693, 5
      %v1739 = vrot.slane %v1738, 4
      %v1740 = vrot.slane %v1455, 5
      %v1741 = vsel %vm593, %v1739, %v1740
      %s1742 = scalar_lea.vmem %s1, 512
      %v1743 = vld [vmem:[%s1742] sm:$0xf]
      %v1744 = vld [vmem:[%s1742 + $0x4] sm:$0xf]
      %v1745 = vld [vmem:[%s1742 + $0x8] sm:$0xf]
      %v1746 = vld [vmem:[%s1742 + $0xc] sm:$0xf]
      %v1747 = vld [vmem:[%s1742 + $0x10] sm:$0xf]
      %v1748 = vld [vmem:[%s1742 + $0x14] sm:$0xf]
      %v1749 = vld [vmem:[%s1742 + $0x18] sm:$0xf]
      %v1750 = vld [vmem:[%s1742 + $0x1c] sm:$0xf]
      %v1751 = vld [vmem:[%s1742 + $0x20] sm:$0xf]
      %v1752 = vld [vmem:[%s1742 + $0x24] sm:$0xf]
      %v1753 = vld [vmem:[%s1742 + $0x28] sm:$0xf]
      %v1754 = vld [vmem:[%s1742 + $0x2c] sm:$0xf]
      %v1755 = vld [vmem:[%s1742 + $0x30] sm:$0xf]
      %v1756 = vld [vmem:[%s1742 + $0x34] sm:$0xf]
      %v1757 = vld [vmem:[%s1742 + $0x38] sm:$0xf]
      %v1758 = vld [vmem:[%s1742 + $0x3c] sm:$0xf]
      %v1759 = vunpack.c.l.b16 %v1713
      %v1760 = vunpack.c.l.b16 %v1717
      %v1761 = vunpack.c.l.b16 %v1721
      %v1762 = vunpack.c.l.b16 %v1725
      %v1763 = vunpack.c.l.b16 %v1729
      %v1764 = vunpack.c.l.b16 %v1733
      %v1765 = vunpack.c.l.b16 %v1737
      %v1766 = vunpack.c.l.b16 %v1741
      %v1767 = vpack.c.b16 %v1760, %v1759
      %v1768 = vpack.c.b16 %v1762, %v1761
      %v1769 = vpack.c.b16 %v1764, %v1763
      %v1770 = vpack.c.b16 %v1766, %v1765
      %v1791 = vunpack.c.l.b16 %v1743
      %v1792 = vunpack.c.l.b16 %v1744
      %v1793 = vunpack.c.l.b16 %v1745
      %v1794 = vunpack.c.l.b16 %v1746
      %v1795 = vunpack.c.l.b16 %v1747
      %v1796 = vunpack.c.l.b16 %v1748
      %v1797 = vunpack.c.l.b16 %v1749
      %v1798 = vunpack.c.l.b16 %v1750
      %v1799 = vunpack.c.l.b16 %v1751
      %v1800 = vunpack.c.l.b16 %v1752
      %v1801 = vunpack.c.l.b16 %v1753
      %v1802 = vunpack.c.l.b16 %v1754
      %v1803 = vunpack.c.l.b16 %v1755
      %v1804 = vunpack.c.l.b16 %v1756
      %v1805 = vunpack.c.l.b16 %v1757
      %v1806 = vunpack.c.l.b16 %v1758
      %v1807 = vpack.c.b16 %v1792, %v1791
      %v1808 = vpack.c.b16 %v1794, %v1793
      %v1809 = vpack.c.b16 %v1796, %v1795
      %v1810 = vpack.c.b16 %v1798, %v1797
      %v1811 = vpack.c.b16 %v1800, %v1799
      %v1812 = vpack.c.b16 %v1802, %v1801
      %v1813 = vpack.c.b16 %v1804, %v1803
      %v1814 = vpack.c.b16 %v1806, %v1805
      %1823 = vmatpush.bf16.msra.mxu0 %v1814
      %1824 = vmatpush.bf16.msra.mxu0 %v1813
      %1825 = vmatpush.bf16.msra.mxu0 %v1812
      %1826 = vmatpush.bf16.msra.mxu0 %v1811
      %1827 = vmatpush.bf16.msra.mxu0 %v1810
      %1828 = vmatpush.bf16.msra.mxu0 %v1809
      %1829 = vmatpush.bf16.msra.mxu0 %v1808
      %1830 = vmatpush.bf16.msra.mxu0 %v1807
      %1831 = vmatmul.bf16.gmra.mxu0 %v1767
      %v1832 = vpop.f32.mrf.mxu0
      %v1833 = vadd.f32 0.0, %v1832
      %v1834 = vpop.f32.mrf.mxu0
      %v1835 = vadd.f32 0.0, %v1834
      %1836 = vmatmul.bf16.gmra.mxu0 %v1768
      %v1837 = vpop.f32.mrf.mxu0
      %v1838 = vadd.f32 0.0, %v1837
      %v1839 = vpop.f32.mrf.mxu0
      %v1840 = vadd.f32 0.0, %v1839
      %1841 = vmatmul.bf16.gmra.mxu0 %v1769
      %v1842 = vpop.f32.mrf.mxu0
      %v1843 = vadd.f32 0.0, %v1842
      %v1844 = vpop.f32.mrf.mxu0
      %v1845 = vadd.f32 0.0, %v1844
      %1846 = vmatmul.bf16.gmra.mxu0 %v1770
      %v1847 = vpop.f32.mrf.mxu0
      %v1848 = vadd.f32 0.0, %v1847
      %v1849 = vpop.f32.mrf.mxu0
      %v1850 = vadd.f32 0.0, %v1849
      %1851 = vdwg.mxu0
      %v1852 = vadd.f32 %v1678, %v1833
      %v1853 = vadd.f32 %v1679, %v1835
      %v1854 = vadd.f32 %v1680, %v1838
      %v1855 = vadd.f32 %v1681, %v1840
      %v1856 = vadd.f32 %v1682, %v1843
      %v1857 = vadd.f32 %v1683, %v1845
      %v1858 = vadd.f32 %v1684, %v1848
      %v1859 = vadd.f32 %v1685, %v1850
      %v1860 = vpack.c.bf16 %v1852, %v1852
      %v1861 = vpack.c.bf16 %v1853, %v1853
      %v1862 = vpack.c.bf16 %v1854, %v1854
      %v1863 = vpack.c.bf16 %v1855, %v1855
      %v1864 = vpack.c.bf16 %v1856, %v1856
      %v1865 = vpack.c.bf16 %v1857, %v1857
      %v1866 = vpack.c.bf16 %v1858, %v1858
      %v1867 = vpack.c.bf16 %v1859, %v1859
      %1868 = vst [vmem:[%s193] sm:$0xf] %v1860
      %1869 = vst [vmem:[%s193 + $0x4] sm:$0xf] %v1861
      %1870 = vst [vmem:[%s193 + $0x8] sm:$0xf] %v1862
      %1871 = vst [vmem:[%s193 + $0xc] sm:$0xf] %v1863
      %1872 = vst [vmem:[%s193 + $0x10] sm:$0xf] %v1864
      %1873 = vst [vmem:[%s193 + $0x14] sm:$0xf] %v1865
      %1874 = vst [vmem:[%s193 + $0x18] sm:$0xf] %v1866
      %1875 = vst [vmem:[%s193 + $0x1c] sm:$0xf] %v1867
      %v1876 = vld [vmem:[%s199] sm:$0x1]
      %v1877 = vadd.f32 %v1852, %v1853
      %v1878 = vadd.f32 %v1877, %v1854
      %v1879 = vadd.f32 %v1878, %v1855
      %v1880 = vadd.f32 %v1879, %v1856
      %v1881 = vadd.f32 %v1880, %v1857
      %v1882 = vadd.f32 %v1881, %v1858
      %v1883 = vadd.f32 %v1882, %v1859
      %v1884 = vrot.slane %v1883, 4
      %v1885 = vadd.f32 %v1883, %v1884
      %v1886 = vrot.slane %v1885, 2
      %v1887 = vadd.f32 %v1885, %v1886
      %v1888 = vrot.slane %v1887, 1
      %v1889 = vadd.f32 %v1887, %v1888
      %v1890 = vadd.f32 %v1876, %v1889
      %1891 = vst [vmem:[%s199] sm:$0x1] %v1890
      %v1892 = vld [vmem:[%s199 + $0x1] sm:$0x1]
      %v1893 = vmul.f32 %v1852, %v1852
      %v1894 = vmul.f32 %v1853, %v1853
      %v1895 = vmul.f32 %v1854, %v1854
      %v1896 = vmul.f32 %v1855, %v1855
      %v1897 = vmul.f32 %v1856, %v1856
      %v1898 = vmul.f32 %v1857, %v1857
      %v1899 = vmul.f32 %v1858, %v1858
      %v1900 = vmul.f32 %v1859, %v1859
      %v1901 = vadd.f32 %v1893, %v1894
      %v1902 = vadd.f32 %v1901, %v1895
      %v1903 = vadd.f32 %v1902, %v1896
      %v1904 = vadd.f32 %v1903, %v1897
      %v1905 = vadd.f32 %v1904, %v1898
      %v1906 = vadd.f32 %v1905, %v1899
      %v1907 = vadd.f32 %v1906, %v1900
      %v1908 = vrot.slane %v1907, 4
      %v1909 = vadd.f32 %v1907, %v1908
      %v1910 = vrot.slane %v1909, 2
      %v1911 = vadd.f32 %v1909, %v1910
      %v1912 = vrot.slane %v1911, 1
      %v1913 = vadd.f32 %v1911, %v1912
      %v1914 = vadd.f32 %v1892, %v1913
      %1915 = vst [vmem:[%s199 + $0x1] sm:$0x1] %v1914
      %s1916 = sadd.s32 %s19, %s20
      %s1917 = smul.u32 8, %s1916
      %p1918 = scmp.lt.s32.totalorder %s1917, 15
      %s1919 = scalar_select %p1918, %s1917, 15
      %s1920 = smul.addr %s1919, 4
      %s1921 = scalar_lea.vmem %s2, %s1920
      %p1922 = scmp.lt.s32.totalorder %s19, 1
      %s1923 = scalar_select %p1922, %s19, 1
      %s1924 = smul.addr %s1923, 2
      %s1925 = scalar_lea.vmem %s3, %s1924
      // Predicated region
      $region33: #{resnet_layer.9} parent=27 // pred_check
        %p1926 = pneg %p94
      $region34: #{resnet_layer.9} parent=27 // pred_check_branch
        %1928 = sbr.rel (%p1926) target = $region36
      $region35: #{resnet_layer.9} parent=27 // pred_region
        %s1929 = sadd.s32 %s19, %s20
        %s1930 = smul.u32 8, %s1929
      $region36: #{resnet_layer.9} parent=27 // pred_fallthru
        _
      // Predicated region
      $region37: #{resnet_layer.9} parent=27 // pred_check
        %p1931 = pneg %p120
      $region38: #{resnet_layer.9} parent=27 // pred_check_branch
        %1933 = sbr.rel (%p1931) target = $region40
      $region39: #{resnet_layer.9} parent=27 // pred_region
        _
      $region40: #{resnet_layer.9} parent=27 // pred_fallthru
        _
    $region28: #{resnet_layer.9} parent=5 // pred_fallthru
      _
    %p1934 = scmp.le.s32.totalorder 2, %s10
    // Predicated region
    $region41: #{resnet_layer.9} parent=5 // pred_check
      %p1935 = pneg %p1934
    $region42: #{resnet_layer.9} parent=5 // pred_check_branch
      %1937 = sbr.rel (%p1935) target = $region44
    $region43: #{resnet_layer.9} parent=5 // pred_region
      %s1938 = ssub.s32 %s10, 2
      // Predicated region
      $region45: #{resnet_layer.9} parent=43 // pred_check
        %p1939 = pneg %p100
      $region46: #{resnet_layer.9} parent=43 // pred_check_branch
        %1941 = sbr.rel (%p1939) target = $region48
      $region47: #{resnet_layer.9} parent=43 // pred_region
        %s1942 = sadd.s32 %s21, %s22
        %s1943 = smul.u32 8, %s1942
        %p1944 = scmp.lt.s32.totalorder %s1943, 15
        %s1945 = scalar_select %p1944, %s1943, 15
        %s1946 = smul.addr %s1945, 4
        %s1947 = scalar_lea.vmem %s2, %s1946
      $region48: #{resnet_layer.9} parent=43 // pred_fallthru
        _
      // Predicated region
      $region49: #{resnet_layer.9} parent=43 // pred_check
        %p1948 = pneg %p126
      $region50: #{resnet_layer.9} parent=43 // pred_check_branch
        %1950 = sbr.rel (%p1948) target = $region52
      $region51: #{resnet_layer.9} parent=43 // pred_region
        %p1951 = scmp.lt.s32.totalorder %s21, 1
        %s1952 = scalar_select %p1951, %s21, 1
        %s1953 = smul.addr %s1952, 2
        %s1954 = scalar_lea.vmem %s3, %s1953
      $region52: #{resnet_layer.9} parent=43 // pred_fallthru
        _
    $region44: #{resnet_layer.9} parent=5 // pred_fallthru
      _
  $region6: #{resnet_layer.9} parent=0 // loop_footer
    %s14 = sadd.s32 1, %s10
  $region7: #{resnet_layer.9} parent=0 // loop_footer_branch
    %9 = sbr.rel target = $region3
  $region8: #{resnet_layer.9} parent=0 // loop_exit
    _

</llo_original>
